<compile_context>
chip_gen: v7x
topology: tpu7x:2x2x1
jax: 0.10.0
libtpu: 0.0.40
codegen_flags: <defaults>
</compile_context>

<pallas_src>
import functools

import jax
import jax.numpy as jnp
from jax import lax
from jax.experimental import pallas as pl
from jax.experimental.pallas import tpu as pltpu


# ------------------------------ in-kernel helpers -----------------------------

def _shifted(h, off, lane):
    """out[c, t] = h[c, t + off] for 0 <= t + off < L, zero elsewhere."""
    if off == 0:
        return h
    _, L = h.shape
    src = lane + off
    valid = (src >= 0) & (src < L)
    out = jnp.zeros_like(h)
    # XLU lane rotation (rides the idle XLU slot next to the MXU).  We rotate a
    # lane-index iota alongside the data and keep the rotation whose source
    # index matches, which makes this helper independent of the rotate
    # direction convention; the redundant candidate is pure XLU/VPU filler and
    # is deduplicated across the unrolled layers by CSE.
    for amt in ((-off) % L, off % L):
        rolled_h = pltpu.roll(h, amt, 1)
        rolled_i = pltpu.roll(lane, amt, 1)
        out = jnp.where(valid & (rolled_i == src), rolled_h, out)
    return out


def _tsc_apply(h, W, b, K, dilation, relu):
    """Depthwise conv + 1x1 conv + BatchNorm (all folded into W, b) [+ ReLU].

    h: (Cin, L) f32, W: (Cout, Cin*K) f32, b: (Cout, 1) f32.
    """
    Cin, L = h.shape
    pad = dilation * (K - 1) // 2
    if K == 1:
        stacked = h                                          # (Cin, L)
    else:
        lane = lax.broadcasted_iota(jnp.int32, (Cin, L), 1)
        parts = [_shifted(h, k * dilation - pad, lane) for k in range(K)]
        stacked = jnp.concatenate(parts, axis=0)             # (K*Cin, L)
    y = jnp.dot(W, stacked, preferred_element_type=jnp.float32) + b
    if relu:
        y = jnp.maximum(y, 0.0)
    return y


def _fused_quarznet_kernel(*refs, ops):
    """Whole network, unrolled.  refs = (x_ref, W0, b0, W1, b1, ..., o_ref)."""
    x_ref, o_ref = refs[0], refs[-1]
    w_refs = refs[1:-1]
    h = x_ref[0].astype(jnp.float32)                         # (Cin0, L)
    h_res = None
    wi = 0
    for op in ops:
        kind = op[0]
        if kind == "tsc":
            _, K, dilation, relu = op
            W, b = w_refs[wi][...], w_refs[wi + 1][...]
            wi += 2
            h = _tsc_apply(h, W, b, K, dilation, relu)
        elif kind == "res_pw":      # residual branch: 1x1 conv + BN (folded)
            W, b = w_refs[wi][...], w_refs[wi + 1][...]
            wi += 2
            h_res = jnp.dot(W, h, preferred_element_type=jnp.float32) + b
        else:                        # "res_add": close the TSCBlock
            h = jnp.maximum(h + h_res, 0.0)
            h_res = None
    o_ref[0] = h.astype(o_ref.dtype)


# -------------------------------- pallas wrapper ------------------------------

def quarznet_forward(x, ops, weights):
    """x: (N, Cin0, L) float32.  (ops, weights) from build_fused()."""
    N, Cin0, L = x.shape
    Cp = -(-Cin0 // 8) * 8
    if Cp != Cin0:   # keep every sublane concat / matmul operand tile-aligned
        x = jnp.pad(x, ((0, 0), (0, Cp - Cin0), (0, 0)))
    Cout = weights[-2].shape[0]

    in_specs = [pl.BlockSpec((1, Cp, L), lambda n: (n, 0, 0))]
    # Constant index_maps -> each weight is DMA'd into VMEM once and stays
    # resident across the (parallel) batch grid steps.
    in_specs += [pl.BlockSpec(w.shape, lambda n: (0, 0)) for w in weights]

    return pl.pallas_call(
        functools.partial(_fused_quarznet_kernel, ops=tuple(ops)),
        out_shape=jax.ShapeDtypeStruct((N, Cout, L), x.dtype),
        grid=(N,),
        in_specs=in_specs,
        out_specs=pl.BlockSpec((1, Cout, L), lambda n: (n, 0, 0)),
        compiler_params=pltpu.CompilerParams(
            dimension_semantics=("parallel",)),  # v7x: both TCs get a batch elem
    )(x, *weights)


# --------------------------- parameter construction ---------------------------

_BN_EPS = 1e-5


def _init_bn(key, C):
    kg, kb, km, kv = jax.random.split(key, 4)
    gamma = 1.0 + 0.1 * jax.random.normal(kg, (C,), jnp.float32)
    beta = 0.1 * jax.random.normal(kb, (C,), jnp.float32)
    mean = 0.1 * jax.random.normal(km, (C,), jnp.float32)
    var = 1.0 + 0.1 * jax.random.uniform(kv, (C,), jnp.float32)
    scale = gamma / jnp.sqrt(var + _BN_EPS)       # inference-mode BatchNorm
    shift = beta - mean * scale
    return scale, shift


def init_tsc_raw(key, K, Cin, Cout, dilation=1):
    k0, k1, k2, k3, k4 = jax.random.split(key, 5)
    return dict(
        dw=0.3 * jax.random.normal(k0, (Cin, K), jnp.float32),    # depthwise w
        db=0.1 * jax.random.normal(k1, (Cin,), jnp.float32),      # depthwise b
        pw=jax.random.normal(k2, (Cout, Cin), jnp.float32) * (Cin ** -0.5),
        pb=0.1 * jax.random.normal(k3, (Cout,), jnp.float32),
        bn=_init_bn(k4, Cout),
        K=K, dilation=dilation)


def init_pw_raw(key, Cin, Cout):
    k0, k1, k2 = jax.random.split(key, 3)
    return dict(
        w=jax.random.normal(k0, (Cout, Cin), jnp.float32) * (Cin ** -0.5),
        b=0.1 * jax.random.normal(k1, (Cout,), jnp.float32),
        bn=_init_bn(k2, Cout))


def init_block_raw(key, n_blocks, K, Cin, Cout):
    keys = jax.random.split(key, n_blocks + 1)
    layers = [init_tsc_raw(keys[0], K, Cin, Cout)]
    layers += [init_tsc_raw(keys[i], K, Cout, Cout) for i in range(1, n_blocks)]
    return dict(layers=layers, res=init_pw_raw(keys[n_blocks], Cin, Cout))


def init_quarznet_raw(key, config):
    keys = jax.random.split(key, 8)
    params = {}
    for kk, name in zip(keys[:3], ("c1", "c2", "c3")):
        K, cin, cout = config[name]
        params[name] = init_tsc_raw(kk, K, cin, cout)
    for kk, name in zip(keys[3:], ("b1", "b2", "b3", "b4", "b5")):
        n_blocks, K, cin, cout = config[name]
        params[name] = init_block_raw(kk, n_blocks, K, cin, cout)
    return params


# --------------------- host-side folding into the fused plan ------------------

def _round_up(v, m):
    return -(-v // m) * m


def _fold_tsc(p):
    """Fold depthwise conv(+bias), 1x1 conv(+bias) and BN into one matmul:
         W[o, k*Cin + c] = bn_scale[o] * pw[o, c] * dw[c, k]
         b[o]            = bn_scale[o] * (pw @ db + pb)[o] + bn_shift[o]
    Input channels are zero-padded to a multiple of 8 for aligned stacking."""
    scale, shift = p["bn"]
    Cout, Cin = p["pw"].shape
    K = p["K"]
    Cp = _round_up(Cin, 8)
    pw = jnp.pad(p["pw"], ((0, 0), (0, Cp - Cin)))
    dw = jnp.pad(p["dw"], ((0, Cp - Cin), (0, 0)))
    W = ((pw * scale[:, None])[:, None, :] * dw.T[None, :, :]).reshape(Cout, K * Cp)
    b = scale * (p["pw"] @ p["db"] + p["pb"]) + shift
    return W.astype(jnp.float32), b.reshape(Cout, 1).astype(jnp.float32)


def _fold_pw(p):
    scale, shift = p["bn"]
    Cout, Cin = p["w"].shape
    Cp = _round_up(Cin, 8)
    W = jnp.pad(p["w"], ((0, 0), (0, Cp - Cin))) * scale[:, None]
    b = scale * p["b"] + shift
    return W.astype(jnp.float32), b.reshape(Cout, 1).astype(jnp.float32)


def build_fused(raw):
    """Flatten the network into a static layer plan + flat folded-weight list."""
    ops, weights = [], []

    def add_tsc(p, relu):
        assert p["pw"].shape[0] % 8 == 0, (
            "intermediate channel counts must be multiples of 8")
        W, b = _fold_tsc(p)
        ops.append(("tsc", p["K"], p["dilation"], relu))
        weights.extend([W, b])

    def add_res_pw(p):
        W, b = _fold_pw(p)
        ops.append(("res_pw",))
        weights.extend([W, b])

    add_tsc(raw["c1"], relu=True)                        # TSCActivated
    for name in ("b1", "b2", "b3", "b4", "b5"):          # TSCBlocks
        bp = raw[name]
        add_res_pw(bp["res"])                            # BN(1x1 conv(x)) residual
        for lp in bp["layers"][:-1]:
            add_tsc(lp, relu=True)                       # TSCActivated
        add_tsc(bp["layers"][-1], relu=False)            # final TSC (no ReLU yet)
        ops.append(("res_add",))                         # +residual, then ReLU
    add_tsc(raw["c2"], relu=True)                        # TSCActivated
    add_tsc(raw["c3"], relu=True)                        # TSCActivated
    return ops, weights


# ------------------------- pure-JAX reference (check) -------------------------

def _ref_tsc(x, p, relu, residual=None):
    K, dil = p["K"], p["dilation"]
    scale, shift = p["bn"]
    _, _, L = x.shape
    pad = dil * (K - 1) // 2
    xp = jnp.pad(x, ((0, 0), (0, 0), (pad, pad)))
    acc = jnp.zeros_like(x)
    for k in range(K):
        acc = acc + p["dw"][None, :, k:k + 1] * xp[:, :, k * dil:k * dil + L]
    acc = acc + p["db"][None, :, None]
    y = jnp.einsum("oc,ncl->nol", p["pw"], acc,
                   precision=lax.Precision.HIGHEST) + p["pb"][None, :, None]
    y = scale[None, :, None] * y + shift[None, :, None]
    if residual is not None:
        y = y + residual
    if relu:
        y = jnp.maximum(y, 0.0)
    return y


def _ref_pw(x, p):
    scale, shift = p["bn"]
    y = jnp.einsum("oc,ncl->nol", p["w"], x,
                   precision=lax.Precision.HIGHEST) + p["b"][None, :, None]
    return scale[None, :, None] * y + shift[None, :, None]


def ref_forward(x, raw):
    x = _ref_tsc(x, raw["c1"], relu=True)
    for name in ("b1", "b2", "b3", "b4", "b5"):
        bp = raw[name]
        x_res = _ref_pw(x, bp["res"])
        for lp in bp["layers"][:-1]:
            x = _ref_tsc(x, lp, relu=True)
        x = _ref_tsc(x, bp["layers"][-1], relu=True, residual=x_res)
    x = _ref_tsc(x, raw["c2"], relu=True)
    x = _ref_tsc(x, raw["c3"], relu=True)
    return x


# ------------------------------------ main ------------------------------------

if __name__ == "__main__":
    key = jax.random.PRNGKey(0)
    k_x, k_p = jax.random.split(key)

    N, C_IN, L, HID = 2, 4, 128, 32
    # Mirrors QuarzNet(config): c* = TSCActivated(kernel_size, in, out),
    # b* = TSCBlock(n_blocks, kernel_size, in, out); n_groups=1, dilation=1.
    config = {
        "c1": (3, C_IN, HID),
        "b1": (2, 3, HID, HID),
        "b2": (2, 3, HID, HID),
        "b3": (2, 3, HID, HID),
        "b4": (2, 3, HID, HID),
        "b5": (2, 3, HID, HID),
        "c2": (3, HID, HID),
        "c3": (1, HID, HID),
    }

    raw = init_quarznet_raw(k_p, config)
    ops, weights = build_fused(raw)
    x = jax.random.normal(k_x, (N, C_IN, L), dtype=jnp.float32)

    y = quarznet_forward(x, ops, weights)
    y = jax.block_until_ready(y)

    y_ref = ref_forward(x, raw)
    assert y.shape == (N, HID, L) and y.dtype == jnp.float32
    max_err = float(jnp.max(jnp.abs(y - y_ref)))
    # Kernel matmuls accumulate in f32 on the MXU; folded-BN/bias arithmetic
    # differs slightly from the unfolded XLA reference, hence the tolerance.
    assert bool(jnp.allclose(y, y_ref, atol=2e-3, rtol=2e-3)), max_err

    print("KERNEL_OK")
</pallas_src>

<mosaic_0001>
module attributes {stable_mosaic.version = 11 : i64} {
  func.func @_fused_quarznet_kernel(%arg0: i32, %arg1: memref<1x8x128xf32, #tpu.memory_space<vmem>>, %arg2: memref<32x24xf32, #tpu.memory_space<vmem>>, %arg3: memref<32x1xf32, #tpu.memory_space<vmem>>, %arg4: memref<32x32xf32, #tpu.memory_space<vmem>>, %arg5: memref<32x1xf32, #tpu.memory_space<vmem>>, %arg6: memref<32x96xf32, #tpu.memory_space<vmem>>, %arg7: memref<32x1xf32, #tpu.memory_space<vmem>>, %arg8: memref<32x96xf32, #tpu.memory_space<vmem>>, %arg9: memref<32x1xf32, #tpu.memory_space<vmem>>, %arg10: memref<32x32xf32, #tpu.memory_space<vmem>>, %arg11: memref<32x1xf32, #tpu.memory_space<vmem>>, %arg12: memref<32x96xf32, #tpu.memory_space<vmem>>, %arg13: memref<32x1xf32, #tpu.memory_space<vmem>>, %arg14: memref<32x96xf32, #tpu.memory_space<vmem>>, %arg15: memref<32x1xf32, #tpu.memory_space<vmem>>, %arg16: memref<32x32xf32, #tpu.memory_space<vmem>>, %arg17: memref<32x1xf32, #tpu.memory_space<vmem>>, %arg18: memref<32x96xf32, #tpu.memory_space<vmem>>, %arg19: memref<32x1xf32, #tpu.memory_space<vmem>>, %arg20: memref<32x96xf32, #tpu.memory_space<vmem>>, %arg21: memref<32x1xf32, #tpu.memory_space<vmem>>, %arg22: memref<32x32xf32, #tpu.memory_space<vmem>>, %arg23: memref<32x1xf32, #tpu.memory_space<vmem>>, %arg24: memref<32x96xf32, #tpu.memory_space<vmem>>, %arg25: memref<32x1xf32, #tpu.memory_space<vmem>>, %arg26: memref<32x96xf32, #tpu.memory_space<vmem>>, %arg27: memref<32x1xf32, #tpu.memory_space<vmem>>, %arg28: memref<32x32xf32, #tpu.memory_space<vmem>>, %arg29: memref<32x1xf32, #tpu.memory_space<vmem>>, %arg30: memref<32x96xf32, #tpu.memory_space<vmem>>, %arg31: memref<32x1xf32, #tpu.memory_space<vmem>>, %arg32: memref<32x96xf32, #tpu.memory_space<vmem>>, %arg33: memref<32x1xf32, #tpu.memory_space<vmem>>, %arg34: memref<32x96xf32, #tpu.memory_space<vmem>>, %arg35: memref<32x1xf32, #tpu.memory_space<vmem>>, %arg36: memref<32x32xf32, #tpu.memory_space<vmem>>, %arg37: memref<32x1xf32, #tpu.memory_space<vmem>>, %arg38: memref<1x32x128xf32, #tpu.memory_space<vmem>>) attributes {dimension_semantics = [#tpu.dimension_semantics<parallel>], iteration_bounds = array<i64: 2>, scalar_prefetch = 0 : i64, scratch_operands = 0 : i64, tpu.core_type = #tpu.core_type<tc>, window_params = [{transform_indices = @transform_0, window_bounds = array<i64: 1, 8, 128>}, {pipeline_mode = #tpu.pipeline_mode<synchronous>, transform_indices = @transform_1, window_bounds = array<i64: 32, 24>}, {pipeline_mode = #tpu.pipeline_mode<synchronous>, transform_indices = @transform_2, window_bounds = array<i64: 32, 1>}, {pipeline_mode = #tpu.pipeline_mode<synchronous>, transform_indices = @transform_3, window_bounds = array<i64: 32, 32>}, {pipeline_mode = #tpu.pipeline_mode<synchronous>, transform_indices = @transform_4, window_bounds = array<i64: 32, 1>}, {pipeline_mode = #tpu.pipeline_mode<synchronous>, transform_indices = @transform_5, window_bounds = array<i64: 32, 96>}, {pipeline_mode = #tpu.pipeline_mode<synchronous>, transform_indices = @transform_6, window_bounds = array<i64: 32, 1>}, {pipeline_mode = #tpu.pipeline_mode<synchronous>, transform_indices = @transform_7, window_bounds = array<i64: 32, 96>}, {pipeline_mode = #tpu.pipeline_mode<synchronous>, transform_indices = @transform_8, window_bounds = array<i64: 32, 1>}, {pipeline_mode = #tpu.pipeline_mode<synchronous>, transform_indices = @transform_9, window_bounds = array<i64: 32, 32>}, {pipeline_mode = #tpu.pipeline_mode<synchronous>, transform_indices = @transform_10, window_bounds = array<i64: 32, 1>}, {pipeline_mode = #tpu.pipeline_mode<synchronous>, transform_indices = @transform_11, window_bounds = array<i64: 32, 96>}, {pipeline_mode = #tpu.pipeline_mode<synchronous>, transform_indices = @transform_12, window_bounds = array<i64: 32, 1>}, {pipeline_mode = #tpu.pipeline_mode<synchronous>, transform_indices = @transform_13, window_bounds = array<i64: 32, 96>}, {pipeline_mode = #tpu.pipeline_mode<synchronous>, transform_indices = @transform_14, window_bounds = array<i64: 32, 1>}, {pipeline_mode = #tpu.pipeline_mode<synchronous>, transform_indices = @transform_15, window_bounds = array<i64: 32, 32>}, {pipeline_mode = #tpu.pipeline_mode<synchronous>, transform_indices = @transform_16, window_bounds = array<i64: 32, 1>}, {pipeline_mode = #tpu.pipeline_mode<synchronous>, transform_indices = @transform_17, window_bounds = array<i64: 32, 96>}, {pipeline_mode = #tpu.pipeline_mode<synchronous>, transform_indices = @transform_18, window_bounds = array<i64: 32, 1>}, {pipeline_mode = #tpu.pipeline_mode<synchronous>, transform_indices = @transform_19, window_bounds = array<i64: 32, 96>}, {pipeline_mode = #tpu.pipeline_mode<synchronous>, transform_indices = @transform_20, window_bounds = array<i64: 32, 1>}, {pipeline_mode = #tpu.pipeline_mode<synchronous>, transform_indices = @transform_21, window_bounds = array<i64: 32, 32>}, {pipeline_mode = #tpu.pipeline_mode<synchronous>, transform_indices = @transform_22, window_bounds = array<i64: 32, 1>}, {pipeline_mode = #tpu.pipeline_mode<synchronous>, transform_indices = @transform_23, window_bounds = array<i64: 32, 96>}, {pipeline_mode = #tpu.pipeline_mode<synchronous>, transform_indices = @transform_24, window_bounds = array<i64: 32, 1>}, {pipeline_mode = #tpu.pipeline_mode<synchronous>, transform_indices = @transform_25, window_bounds = array<i64: 32, 96>}, {pipeline_mode = #tpu.pipeline_mode<synchronous>, transform_indices = @transform_26, window_bounds = array<i64: 32, 1>}, {pipeline_mode = #tpu.pipeline_mode<synchronous>, transform_indices = @transform_27, window_bounds = array<i64: 32, 32>}, {pipeline_mode = #tpu.pipeline_mode<synchronous>, transform_indices = @transform_28, window_bounds = array<i64: 32, 1>}, {pipeline_mode = #tpu.pipeline_mode<synchronous>, transform_indices = @transform_29, window_bounds = array<i64: 32, 96>}, {pipeline_mode = #tpu.pipeline_mode<synchronous>, transform_indices = @transform_30, window_bounds = array<i64: 32, 1>}, {pipeline_mode = #tpu.pipeline_mode<synchronous>, transform_indices = @transform_31, window_bounds = array<i64: 32, 96>}, {pipeline_mode = #tpu.pipeline_mode<synchronous>, transform_indices = @transform_32, window_bounds = array<i64: 32, 1>}, {pipeline_mode = #tpu.pipeline_mode<synchronous>, transform_indices = @transform_33, window_bounds = array<i64: 32, 96>}, {pipeline_mode = #tpu.pipeline_mode<synchronous>, transform_indices = @transform_34, window_bounds = array<i64: 32, 1>}, {pipeline_mode = #tpu.pipeline_mode<synchronous>, transform_indices = @transform_35, window_bounds = array<i64: 32, 32>}, {pipeline_mode = #tpu.pipeline_mode<synchronous>, transform_indices = @transform_36, window_bounds = array<i64: 32, 1>}, {transform_indices = @transform_37, window_bounds = array<i64: 1, 32, 128>}]} {
    %c0 = arith.constant 0 : index
    %c0_0 = arith.constant 0 : index
    %c0_1 = arith.constant 0 : index
    %0 = vector.load %arg1[%c0, %c0_0, %c0_1] : memref<1x8x128xf32, #tpu.memory_space<vmem>>, vector<1x8x128xf32>
    %1 = vector.shape_cast %0 : vector<1x8x128xf32> to vector<8x128xf32>
    %c0_2 = arith.constant 0 : index
    %c0_3 = arith.constant 0 : index
    %2 = vector.load %arg2[%c0_2, %c0_3] : memref<32x24xf32, #tpu.memory_space<vmem>>, vector<32x24xf32>
    %c0_4 = arith.constant 0 : index
    %c0_5 = arith.constant 0 : index
    %3 = vector.load %arg3[%c0_4, %c0_5] : memref<32x1xf32, #tpu.memory_space<vmem>>, vector<32x1xf32>
    %4 = tpu.iota {dimensions = array<i32: 1>} : vector<8x128xi32>
    %c-1_i32 = arith.constant -1 : i32
    %5 = vector.broadcast %c-1_i32 : i32 to vector<8x128xi32>
    %6 = arith.addi %4, %5 : vector<8x128xi32>
    %c0_i32 = arith.constant 0 : i32
    %7 = vector.broadcast %c0_i32 : i32 to vector<8x128xi32>
    %8 = arith.cmpi sge, %6, %7 : vector<8x128xi32>
    %c128_i32 = arith.constant 128 : i32
    %9 = vector.broadcast %c128_i32 : i32 to vector<8x128xi32>
    %10 = arith.cmpi slt, %6, %9 : vector<8x128xi32>
    %11 = arith.andi %8, %10 : vector<8x128xi1>
    %cst = arith.constant 0.000000e+00 : f32
    %12 = vector.broadcast %cst : f32 to vector<8x128xf32>
    %c1_i32 = arith.constant 1 : i32
    %13 = tpu.dynamic_rotate %1 by %c1_i32 dim 1 : vector<8x128xf32>, i32 -> vector<8x128xf32>
    %c1_i32_6 = arith.constant 1 : i32
    %14 = tpu.dynamic_rotate %4 by %c1_i32_6 dim 1 : vector<8x128xi32>, i32 -> vector<8x128xi32>
    %15 = arith.cmpi eq, %14, %6 : vector<8x128xi32>
    %16 = arith.andi %11, %15 : vector<8x128xi1>
    %17 = arith.select %16, %13, %12 : vector<8x128xi1>, vector<8x128xf32>
    %c127_i32 = arith.constant 127 : i32
    %18 = tpu.dynamic_rotate %1 by %c127_i32 dim 1 : vector<8x128xf32>, i32 -> vector<8x128xf32>
    %c127_i32_7 = arith.constant 127 : i32
    %19 = tpu.dynamic_rotate %4 by %c127_i32_7 dim 1 : vector<8x128xi32>, i32 -> vector<8x128xi32>
    %20 = arith.cmpi eq, %19, %6 : vector<8x128xi32>
    %21 = arith.andi %11, %20 : vector<8x128xi1>
    %22 = arith.select %21, %18, %17 : vector<8x128xi1>, vector<8x128xf32>
    %c1_i32_8 = arith.constant 1 : i32
    %23 = vector.broadcast %c1_i32_8 : i32 to vector<8x128xi32>
    %24 = arith.addi %4, %23 : vector<8x128xi32>
    %c0_i32_9 = arith.constant 0 : i32
    %25 = vector.broadcast %c0_i32_9 : i32 to vector<8x128xi32>
    %26 = arith.cmpi sge, %24, %25 : vector<8x128xi32>
    %c128_i32_10 = arith.constant 128 : i32
    %27 = vector.broadcast %c128_i32_10 : i32 to vector<8x128xi32>
    %28 = arith.cmpi slt, %24, %27 : vector<8x128xi32>
    %29 = arith.andi %26, %28 : vector<8x128xi1>
    %cst_11 = arith.constant 0.000000e+00 : f32
    %30 = vector.broadcast %cst_11 : f32 to vector<8x128xf32>
    %c127_i32_12 = arith.constant 127 : i32
    %31 = tpu.dynamic_rotate %1 by %c127_i32_12 dim 1 : vector<8x128xf32>, i32 -> vector<8x128xf32>
    %c127_i32_13 = arith.constant 127 : i32
    %32 = tpu.dynamic_rotate %4 by %c127_i32_13 dim 1 : vector<8x128xi32>, i32 -> vector<8x128xi32>
    %33 = arith.cmpi eq, %32, %24 : vector<8x128xi32>
    %34 = arith.andi %29, %33 : vector<8x128xi1>
    %35 = arith.select %34, %31, %30 : vector<8x128xi1>, vector<8x128xf32>
    %c1_i32_14 = arith.constant 1 : i32
    %36 = tpu.dynamic_rotate %1 by %c1_i32_14 dim 1 : vector<8x128xf32>, i32 -> vector<8x128xf32>
    %c1_i32_15 = arith.constant 1 : i32
    %37 = tpu.dynamic_rotate %4 by %c1_i32_15 dim 1 : vector<8x128xi32>, i32 -> vector<8x128xi32>
    %38 = arith.cmpi eq, %37, %24 : vector<8x128xi32>
    %39 = arith.andi %29, %38 : vector<8x128xi1>
    %40 = arith.select %39, %36, %35 : vector<8x128xi1>, vector<8x128xf32>
    %41 = tpu.concatenate %22, %1, %40 in 0 : vector<8x128xf32>, vector<8x128xf32>, vector<8x128xf32> -> vector<24x128xf32>
    %cst_16 = arith.constant dense<0.000000e+00> : vector<32x128xf32>
    %42 = tpu.matmul %2, %41, %cst_16 {dimension_numbers = #tpu.dot_dimension_numbers<[1], [0], [0], [1], [0, 0, 1, 1], [], []>} : vector<32x24xf32>, vector<24x128xf32>, vector<32x128xf32> -> vector<32x128xf32>
    %43 = vector.broadcast %3 : vector<32x1xf32> to vector<32x128xf32>
    %44 = arith.addf %42, %43 : vector<32x128xf32>
    %cst_17 = arith.constant 0.000000e+00 : f32
    %45 = vector.broadcast %cst_17 : f32 to vector<32x128xf32>
    %46 = arith.maximumf %44, %45 : vector<32x128xf32>
    %c0_18 = arith.constant 0 : index
    %c0_19 = arith.constant 0 : index
    %47 = vector.load %arg4[%c0_18, %c0_19] : memref<32x32xf32, #tpu.memory_space<vmem>>, vector<32x32xf32>
    %c0_20 = arith.constant 0 : index
    %c0_21 = arith.constant 0 : index
    %48 = vector.load %arg5[%c0_20, %c0_21] : memref<32x1xf32, #tpu.memory_space<vmem>>, vector<32x1xf32>
    %cst_22 = arith.constant dense<0.000000e+00> : vector<32x128xf32>
    %49 = tpu.matmul %47, %46, %cst_22 {dimension_numbers = #tpu.dot_dimension_numbers<[1], [0], [0], [1], [0, 0, 1, 1], [], []>} : vector<32x32xf32>, vector<32x128xf32>, vector<32x128xf32> -> vector<32x128xf32>
    %50 = vector.broadcast %48 : vector<32x1xf32> to vector<32x128xf32>
    %51 = arith.addf %49, %50 : vector<32x128xf32>
    %c0_23 = arith.constant 0 : index
    %c0_24 = arith.constant 0 : index
    %52 = vector.load %arg6[%c0_23, %c0_24] : memref<32x96xf32, #tpu.memory_space<vmem>>, vector<32x96xf32>
    %c0_25 = arith.constant 0 : index
    %c0_26 = arith.constant 0 : index
    %53 = vector.load %arg7[%c0_25, %c0_26] : memref<32x1xf32, #tpu.memory_space<vmem>>, vector<32x1xf32>
    %54 = tpu.iota {dimensions = array<i32: 1>} : vector<32x128xi32>
    %c-1_i32_27 = arith.constant -1 : i32
    %55 = vector.broadcast %c-1_i32_27 : i32 to vector<32x128xi32>
    %56 = arith.addi %54, %55 : vector<32x128xi32>
    %c0_i32_28 = arith.constant 0 : i32
    %57 = vector.broadcast %c0_i32_28 : i32 to vector<32x128xi32>
    %58 = arith.cmpi sge, %56, %57 : vector<32x128xi32>
    %c128_i32_29 = arith.constant 128 : i32
    %59 = vector.broadcast %c128_i32_29 : i32 to vector<32x128xi32>
    %60 = arith.cmpi slt, %56, %59 : vector<32x128xi32>
    %61 = arith.andi %58, %60 : vector<32x128xi1>
    %cst_30 = arith.constant 0.000000e+00 : f32
    %62 = vector.broadcast %cst_30 : f32 to vector<32x128xf32>
    %c1_i32_31 = arith.constant 1 : i32
    %63 = tpu.dynamic_rotate %46 by %c1_i32_31 dim 1 : vector<32x128xf32>, i32 -> vector<32x128xf32>
    %c1_i32_32 = arith.constant 1 : i32
    %64 = tpu.dynamic_rotate %54 by %c1_i32_32 dim 1 : vector<32x128xi32>, i32 -> vector<32x128xi32>
    %65 = arith.cmpi eq, %64, %56 : vector<32x128xi32>
    %66 = arith.andi %61, %65 : vector<32x128xi1>
    %67 = arith.select %66, %63, %62 : vector<32x128xi1>, vector<32x128xf32>
    %c127_i32_33 = arith.constant 127 : i32
    %68 = tpu.dynamic_rotate %46 by %c127_i32_33 dim 1 : vector<32x128xf32>, i32 -> vector<32x128xf32>
    %c127_i32_34 = arith.constant 127 : i32
    %69 = tpu.dynamic_rotate %54 by %c127_i32_34 dim 1 : vector<32x128xi32>, i32 -> vector<32x128xi32>
    %70 = arith.cmpi eq, %69, %56 : vector<32x128xi32>
    %71 = arith.andi %61, %70 : vector<32x128xi1>
    %72 = arith.select %71, %68, %67 : vector<32x128xi1>, vector<32x128xf32>
    %c1_i32_35 = arith.constant 1 : i32
    %73 = vector.broadcast %c1_i32_35 : i32 to vector<32x128xi32>
    %74 = arith.addi %54, %73 : vector<32x128xi32>
    %c0_i32_36 = arith.constant 0 : i32
    %75 = vector.broadcast %c0_i32_36 : i32 to vector<32x128xi32>
    %76 = arith.cmpi sge, %74, %75 : vector<32x128xi32>
    %c128_i32_37 = arith.constant 128 : i32
    %77 = vector.broadcast %c128_i32_37 : i32 to vector<32x128xi32>
    %78 = arith.cmpi slt, %74, %77 : vector<32x128xi32>
    %79 = arith.andi %76, %78 : vector<32x128xi1>
    %cst_38 = arith.constant 0.000000e+00 : f32
    %80 = vector.broadcast %cst_38 : f32 to vector<32x128xf32>
    %c127_i32_39 = arith.constant 127 : i32
    %81 = tpu.dynamic_rotate %46 by %c127_i32_39 dim 1 : vector<32x128xf32>, i32 -> vector<32x128xf32>
    %c127_i32_40 = arith.constant 127 : i32
    %82 = tpu.dynamic_rotate %54 by %c127_i32_40 dim 1 : vector<32x128xi32>, i32 -> vector<32x128xi32>
    %83 = arith.cmpi eq, %82, %74 : vector<32x128xi32>
    %84 = arith.andi %79, %83 : vector<32x128xi1>
    %85 = arith.select %84, %81, %80 : vector<32x128xi1>, vector<32x128xf32>
    %c1_i32_41 = arith.constant 1 : i32
    %86 = tpu.dynamic_rotate %46 by %c1_i32_41 dim 1 : vector<32x128xf32>, i32 -> vector<32x128xf32>
    %c1_i32_42 = arith.constant 1 : i32
    %87 = tpu.dynamic_rotate %54 by %c1_i32_42 dim 1 : vector<32x128xi32>, i32 -> vector<32x128xi32>
    %88 = arith.cmpi eq, %87, %74 : vector<32x128xi32>
    %89 = arith.andi %79, %88 : vector<32x128xi1>
    %90 = arith.select %89, %86, %85 : vector<32x128xi1>, vector<32x128xf32>
    %91 = tpu.concatenate %72, %46, %90 in 0 : vector<32x128xf32>, vector<32x128xf32>, vector<32x128xf32> -> vector<96x128xf32>
    %cst_43 = arith.constant dense<0.000000e+00> : vector<32x128xf32>
    %92 = tpu.matmul %52, %91, %cst_43 {dimension_numbers = #tpu.dot_dimension_numbers<[1], [0], [0], [1], [0, 0, 1, 1], [], []>} : vector<32x96xf32>, vector<96x128xf32>, vector<32x128xf32> -> vector<32x128xf32>
    %93 = vector.broadcast %53 : vector<32x1xf32> to vector<32x128xf32>
    %94 = arith.addf %92, %93 : vector<32x128xf32>
    %cst_44 = arith.constant 0.000000e+00 : f32
    %95 = vector.broadcast %cst_44 : f32 to vector<32x128xf32>
    %96 = arith.maximumf %94, %95 : vector<32x128xf32>
    %c0_45 = arith.constant 0 : index
    %c0_46 = arith.constant 0 : index
    %97 = vector.load %arg8[%c0_45, %c0_46] : memref<32x96xf32, #tpu.memory_space<vmem>>, vector<32x96xf32>
    %c0_47 = arith.constant 0 : index
    %c0_48 = arith.constant 0 : index
    %98 = vector.load %arg9[%c0_47, %c0_48] : memref<32x1xf32, #tpu.memory_space<vmem>>, vector<32x1xf32>
    %99 = tpu.iota {dimensions = array<i32: 1>} : vector<32x128xi32>
    %c-1_i32_49 = arith.constant -1 : i32
    %100 = vector.broadcast %c-1_i32_49 : i32 to vector<32x128xi32>
    %101 = arith.addi %99, %100 : vector<32x128xi32>
    %c0_i32_50 = arith.constant 0 : i32
    %102 = vector.broadcast %c0_i32_50 : i32 to vector<32x128xi32>
    %103 = arith.cmpi sge, %101, %102 : vector<32x128xi32>
    %c128_i32_51 = arith.constant 128 : i32
    %104 = vector.broadcast %c128_i32_51 : i32 to vector<32x128xi32>
    %105 = arith.cmpi slt, %101, %104 : vector<32x128xi32>
    %106 = arith.andi %103, %105 : vector<32x128xi1>
    %cst_52 = arith.constant 0.000000e+00 : f32
    %107 = vector.broadcast %cst_52 : f32 to vector<32x128xf32>
    %c1_i32_53 = arith.constant 1 : i32
    %108 = tpu.dynamic_rotate %96 by %c1_i32_53 dim 1 : vector<32x128xf32>, i32 -> vector<32x128xf32>
    %c1_i32_54 = arith.constant 1 : i32
    %109 = tpu.dynamic_rotate %99 by %c1_i32_54 dim 1 : vector<32x128xi32>, i32 -> vector<32x128xi32>
    %110 = arith.cmpi eq, %109, %101 : vector<32x128xi32>
    %111 = arith.andi %106, %110 : vector<32x128xi1>
    %112 = arith.select %111, %108, %107 : vector<32x128xi1>, vector<32x128xf32>
    %c127_i32_55 = arith.constant 127 : i32
    %113 = tpu.dynamic_rotate %96 by %c127_i32_55 dim 1 : vector<32x128xf32>, i32 -> vector<32x128xf32>
    %c127_i32_56 = arith.constant 127 : i32
    %114 = tpu.dynamic_rotate %99 by %c127_i32_56 dim 1 : vector<32x128xi32>, i32 -> vector<32x128xi32>
    %115 = arith.cmpi eq, %114, %101 : vector<32x128xi32>
    %116 = arith.andi %106, %115 : vector<32x128xi1>
    %117 = arith.select %116, %113, %112 : vector<32x128xi1>, vector<32x128xf32>
    %c1_i32_57 = arith.constant 1 : i32
    %118 = vector.broadcast %c1_i32_57 : i32 to vector<32x128xi32>
    %119 = arith.addi %99, %118 : vector<32x128xi32>
    %c0_i32_58 = arith.constant 0 : i32
    %120 = vector.broadcast %c0_i32_58 : i32 to vector<32x128xi32>
    %121 = arith.cmpi sge, %119, %120 : vector<32x128xi32>
    %c128_i32_59 = arith.constant 128 : i32
    %122 = vector.broadcast %c128_i32_59 : i32 to vector<32x128xi32>
    %123 = arith.cmpi slt, %119, %122 : vector<32x128xi32>
    %124 = arith.andi %121, %123 : vector<32x128xi1>
    %cst_60 = arith.constant 0.000000e+00 : f32
    %125 = vector.broadcast %cst_60 : f32 to vector<32x128xf32>
    %c127_i32_61 = arith.constant 127 : i32
    %126 = tpu.dynamic_rotate %96 by %c127_i32_61 dim 1 : vector<32x128xf32>, i32 -> vector<32x128xf32>
    %c127_i32_62 = arith.constant 127 : i32
    %127 = tpu.dynamic_rotate %99 by %c127_i32_62 dim 1 : vector<32x128xi32>, i32 -> vector<32x128xi32>
    %128 = arith.cmpi eq, %127, %119 : vector<32x128xi32>
    %129 = arith.andi %124, %128 : vector<32x128xi1>
    %130 = arith.select %129, %126, %125 : vector<32x128xi1>, vector<32x128xf32>
    %c1_i32_63 = arith.constant 1 : i32
    %131 = tpu.dynamic_rotate %96 by %c1_i32_63 dim 1 : vector<32x128xf32>, i32 -> vector<32x128xf32>
    %c1_i32_64 = arith.constant 1 : i32
    %132 = tpu.dynamic_rotate %99 by %c1_i32_64 dim 1 : vector<32x128xi32>, i32 -> vector<32x128xi32>
    %133 = arith.cmpi eq, %132, %119 : vector<32x128xi32>
    %134 = arith.andi %124, %133 : vector<32x128xi1>
    %135 = arith.select %134, %131, %130 : vector<32x128xi1>, vector<32x128xf32>
    %136 = tpu.concatenate %117, %96, %135 in 0 : vector<32x128xf32>, vector<32x128xf32>, vector<32x128xf32> -> vector<96x128xf32>
    %cst_65 = arith.constant dense<0.000000e+00> : vector<32x128xf32>
    %137 = tpu.matmul %97, %136, %cst_65 {dimension_numbers = #tpu.dot_dimension_numbers<[1], [0], [0], [1], [0, 0, 1, 1], [], []>} : vector<32x96xf32>, vector<96x128xf32>, vector<32x128xf32> -> vector<32x128xf32>
    %138 = vector.broadcast %98 : vector<32x1xf32> to vector<32x128xf32>
    %139 = arith.addf %137, %138 : vector<32x128xf32>
    %140 = arith.addf %139, %51 : vector<32x128xf32>
    %cst_66 = arith.constant 0.000000e+00 : f32
    %141 = vector.broadcast %cst_66 : f32 to vector<32x128xf32>
    %142 = arith.maximumf %140, %141 : vector<32x128xf32>
    %c0_67 = arith.constant 0 : index
    %c0_68 = arith.constant 0 : index
    %143 = vector.load %arg10[%c0_67, %c0_68] : memref<32x32xf32, #tpu.memory_space<vmem>>, vector<32x32xf32>
    %c0_69 = arith.constant 0 : index
    %c0_70 = arith.constant 0 : index
    %144 = vector.load %arg11[%c0_69, %c0_70] : memref<32x1xf32, #tpu.memory_space<vmem>>, vector<32x1xf32>
    %cst_71 = arith.constant dense<0.000000e+00> : vector<32x128xf32>
    %145 = tpu.matmul %143, %142, %cst_71 {dimension_numbers = #tpu.dot_dimension_numbers<[1], [0], [0], [1], [0, 0, 1, 1], [], []>} : vector<32x32xf32>, vector<32x128xf32>, vector<32x128xf32> -> vector<32x128xf32>
    %146 = vector.broadcast %144 : vector<32x1xf32> to vector<32x128xf32>
    %147 = arith.addf %145, %146 : vector<32x128xf32>
    %c0_72 = arith.constant 0 : index
    %c0_73 = arith.constant 0 : index
    %148 = vector.load %arg12[%c0_72, %c0_73] : memref<32x96xf32, #tpu.memory_space<vmem>>, vector<32x96xf32>
    %c0_74 = arith.constant 0 : index
    %c0_75 = arith.constant 0 : index
    %149 = vector.load %arg13[%c0_74, %c0_75] : memref<32x1xf32, #tpu.memory_space<vmem>>, vector<32x1xf32>
    %150 = tpu.iota {dimensions = array<i32: 1>} : vector<32x128xi32>
    %c-1_i32_76 = arith.constant -1 : i32
    %151 = vector.broadcast %c-1_i32_76 : i32 to vector<32x128xi32>
    %152 = arith.addi %150, %151 : vector<32x128xi32>
    %c0_i32_77 = arith.constant 0 : i32
    %153 = vector.broadcast %c0_i32_77 : i32 to vector<32x128xi32>
    %154 = arith.cmpi sge, %152, %153 : vector<32x128xi32>
    %c128_i32_78 = arith.constant 128 : i32
    %155 = vector.broadcast %c128_i32_78 : i32 to vector<32x128xi32>
    %156 = arith.cmpi slt, %152, %155 : vector<32x128xi32>
    %157 = arith.andi %154, %156 : vector<32x128xi1>
    %cst_79 = arith.constant 0.000000e+00 : f32
    %158 = vector.broadcast %cst_79 : f32 to vector<32x128xf32>
    %c1_i32_80 = arith.constant 1 : i32
    %159 = tpu.dynamic_rotate %142 by %c1_i32_80 dim 1 : vector<32x128xf32>, i32 -> vector<32x128xf32>
    %c1_i32_81 = arith.constant 1 : i32
    %160 = tpu.dynamic_rotate %150 by %c1_i32_81 dim 1 : vector<32x128xi32>, i32 -> vector<32x128xi32>
    %161 = arith.cmpi eq, %160, %152 : vector<32x128xi32>
    %162 = arith.andi %157, %161 : vector<32x128xi1>
    %163 = arith.select %162, %159, %158 : vector<32x128xi1>, vector<32x128xf32>
    %c127_i32_82 = arith.constant 127 : i32
    %164 = tpu.dynamic_rotate %142 by %c127_i32_82 dim 1 : vector<32x128xf32>, i32 -> vector<32x128xf32>
    %c127_i32_83 = arith.constant 127 : i32
    %165 = tpu.dynamic_rotate %150 by %c127_i32_83 dim 1 : vector<32x128xi32>, i32 -> vector<32x128xi32>
    %166 = arith.cmpi eq, %165, %152 : vector<32x128xi32>
    %167 = arith.andi %157, %166 : vector<32x128xi1>
    %168 = arith.select %167, %164, %163 : vector<32x128xi1>, vector<32x128xf32>
    %c1_i32_84 = arith.constant 1 : i32
    %169 = vector.broadcast %c1_i32_84 : i32 to vector<32x128xi32>
    %170 = arith.addi %150, %169 : vector<32x128xi32>
    %c0_i32_85 = arith.constant 0 : i32
    %171 = vector.broadcast %c0_i32_85 : i32 to vector<32x128xi32>
    %172 = arith.cmpi sge, %170, %171 : vector<32x128xi32>
    %c128_i32_86 = arith.constant 128 : i32
    %173 = vector.broadcast %c128_i32_86 : i32 to vector<32x128xi32>
    %174 = arith.cmpi slt, %170, %173 : vector<32x128xi32>
    %175 = arith.andi %172, %174 : vector<32x128xi1>
    %cst_87 = arith.constant 0.000000e+00 : f32
    %176 = vector.broadcast %cst_87 : f32 to vector<32x128xf32>
    %c127_i32_88 = arith.constant 127 : i32
    %177 = tpu.dynamic_rotate %142 by %c127_i32_88 dim 1 : vector<32x128xf32>, i32 -> vector<32x128xf32>
    %c127_i32_89 = arith.constant 127 : i32
    %178 = tpu.dynamic_rotate %150 by %c127_i32_89 dim 1 : vector<32x128xi32>, i32 -> vector<32x128xi32>
    %179 = arith.cmpi eq, %178, %170 : vector<32x128xi32>
    %180 = arith.andi %175, %179 : vector<32x128xi1>
    %181 = arith.select %180, %177, %176 : vector<32x128xi1>, vector<32x128xf32>
    %c1_i32_90 = arith.constant 1 : i32
    %182 = tpu.dynamic_rotate %142 by %c1_i32_90 dim 1 : vector<32x128xf32>, i32 -> vector<32x128xf32>
    %c1_i32_91 = arith.constant 1 : i32
    %183 = tpu.dynamic_rotate %150 by %c1_i32_91 dim 1 : vector<32x128xi32>, i32 -> vector<32x128xi32>
    %184 = arith.cmpi eq, %183, %170 : vector<32x128xi32>
    %185 = arith.andi %175, %184 : vector<32x128xi1>
    %186 = arith.select %185, %182, %181 : vector<32x128xi1>, vector<32x128xf32>
    %187 = tpu.concatenate %168, %142, %186 in 0 : vector<32x128xf32>, vector<32x128xf32>, vector<32x128xf32> -> vector<96x128xf32>
    %cst_92 = arith.constant dense<0.000000e+00> : vector<32x128xf32>
    %188 = tpu.matmul %148, %187, %cst_92 {dimension_numbers = #tpu.dot_dimension_numbers<[1], [0], [0], [1], [0, 0, 1, 1], [], []>} : vector<32x96xf32>, vector<96x128xf32>, vector<32x128xf32> -> vector<32x128xf32>
    %189 = vector.broadcast %149 : vector<32x1xf32> to vector<32x128xf32>
    %190 = arith.addf %188, %189 : vector<32x128xf32>
    %cst_93 = arith.constant 0.000000e+00 : f32
    %191 = vector.broadcast %cst_93 : f32 to vector<32x128xf32>
    %192 = arith.maximumf %190, %191 : vector<32x128xf32>
    %c0_94 = arith.constant 0 : index
    %c0_95 = arith.constant 0 : index
    %193 = vector.load %arg14[%c0_94, %c0_95] : memref<32x96xf32, #tpu.memory_space<vmem>>, vector<32x96xf32>
    %c0_96 = arith.constant 0 : index
    %c0_97 = arith.constant 0 : index
    %194 = vector.load %arg15[%c0_96, %c0_97] : memref<32x1xf32, #tpu.memory_space<vmem>>, vector<32x1xf32>
    %195 = tpu.iota {dimensions = array<i32: 1>} : vector<32x128xi32>
    %c-1_i32_98 = arith.constant -1 : i32
    %196 = vector.broadcast %c-1_i32_98 : i32 to vector<32x128xi32>
    %197 = arith.addi %195, %196 : vector<32x128xi32>
    %c0_i32_99 = arith.constant 0 : i32
    %198 = vector.broadcast %c0_i32_99 : i32 to vector<32x128xi32>
    %199 = arith.cmpi sge, %197, %198 : vector<32x128xi32>
    %c128_i32_100 = arith.constant 128 : i32
    %200 = vector.broadcast %c128_i32_100 : i32 to vector<32x128xi32>
    %201 = arith.cmpi slt, %197, %200 : vector<32x128xi32>
    %202 = arith.andi %199, %201 : vector<32x128xi1>
    %cst_101 = arith.constant 0.000000e+00 : f32
    %203 = vector.broadcast %cst_101 : f32 to vector<32x128xf32>
    %c1_i32_102 = arith.constant 1 : i32
    %204 = tpu.dynamic_rotate %192 by %c1_i32_102 dim 1 : vector<32x128xf32>, i32 -> vector<32x128xf32>
    %c1_i32_103 = arith.constant 1 : i32
    %205 = tpu.dynamic_rotate %195 by %c1_i32_103 dim 1 : vector<32x128xi32>, i32 -> vector<32x128xi32>
    %206 = arith.cmpi eq, %205, %197 : vector<32x128xi32>
    %207 = arith.andi %202, %206 : vector<32x128xi1>
    %208 = arith.select %207, %204, %203 : vector<32x128xi1>, vector<32x128xf32>
    %c127_i32_104 = arith.constant 127 : i32
    %209 = tpu.dynamic_rotate %192 by %c127_i32_104 dim 1 : vector<32x128xf32>, i32 -> vector<32x128xf32>
    %c127_i32_105 = arith.constant 127 : i32
    %210 = tpu.dynamic_rotate %195 by %c127_i32_105 dim 1 : vector<32x128xi32>, i32 -> vector<32x128xi32>
    %211 = arith.cmpi eq, %210, %197 : vector<32x128xi32>
    %212 = arith.andi %202, %211 : vector<32x128xi1>
    %213 = arith.select %212, %209, %208 : vector<32x128xi1>, vector<32x128xf32>
    %c1_i32_106 = arith.constant 1 : i32
    %214 = vector.broadcast %c1_i32_106 : i32 to vector<32x128xi32>
    %215 = arith.addi %195, %214 : vector<32x128xi32>
    %c0_i32_107 = arith.constant 0 : i32
    %216 = vector.broadcast %c0_i32_107 : i32 to vector<32x128xi32>
    %217 = arith.cmpi sge, %215, %216 : vector<32x128xi32>
    %c128_i32_108 = arith.constant 128 : i32
    %218 = vector.broadcast %c128_i32_108 : i32 to vector<32x128xi32>
    %219 = arith.cmpi slt, %215, %218 : vector<32x128xi32>
    %220 = arith.andi %217, %219 : vector<32x128xi1>
    %cst_109 = arith.constant 0.000000e+00 : f32
    %221 = vector.broadcast %cst_109 : f32 to vector<32x128xf32>
    %c127_i32_110 = arith.constant 127 : i32
    %222 = tpu.dynamic_rotate %192 by %c127_i32_110 dim 1 : vector<32x128xf32>, i32 -> vector<32x128xf32>
    %c127_i32_111 = arith.constant 127 : i32
    %223 = tpu.dynamic_rotate %195 by %c127_i32_111 dim 1 : vector<32x128xi32>, i32 -> vector<32x128xi32>
    %224 = arith.cmpi eq, %223, %215 : vector<32x128xi32>
    %225 = arith.andi %220, %224 : vector<32x128xi1>
    %226 = arith.select %225, %222, %221 : vector<32x128xi1>, vector<32x128xf32>
    %c1_i32_112 = arith.constant 1 : i32
    %227 = tpu.dynamic_rotate %192 by %c1_i32_112 dim 1 : vector<32x128xf32>, i32 -> vector<32x128xf32>
    %c1_i32_113 = arith.constant 1 : i32
    %228 = tpu.dynamic_rotate %195 by %c1_i32_113 dim 1 : vector<32x128xi32>, i32 -> vector<32x128xi32>
    %229 = arith.cmpi eq, %228, %215 : vector<32x128xi32>
    %230 = arith.andi %220, %229 : vector<32x128xi1>
    %231 = arith.select %230, %227, %226 : vector<32x128xi1>, vector<32x128xf32>
    %232 = tpu.concatenate %213, %192, %231 in 0 : vector<32x128xf32>, vector<32x128xf32>, vector<32x128xf32> -> vector<96x128xf32>
    %cst_114 = arith.constant dense<0.000000e+00> : vector<32x128xf32>
    %233 = tpu.matmul %193, %232, %cst_114 {dimension_numbers = #tpu.dot_dimension_numbers<[1], [0], [0], [1], [0, 0, 1, 1], [], []>} : vector<32x96xf32>, vector<96x128xf32>, vector<32x128xf32> -> vector<32x128xf32>
    %234 = vector.broadcast %194 : vector<32x1xf32> to vector<32x128xf32>
    %235 = arith.addf %233, %234 : vector<32x128xf32>
    %236 = arith.addf %235, %147 : vector<32x128xf32>
    %cst_115 = arith.constant 0.000000e+00 : f32
    %237 = vector.broadcast %cst_115 : f32 to vector<32x128xf32>
    %238 = arith.maximumf %236, %237 : vector<32x128xf32>
    %c0_116 = arith.constant 0 : index
    %c0_117 = arith.constant 0 : index
    %239 = vector.load %arg16[%c0_116, %c0_117] : memref<32x32xf32, #tpu.memory_space<vmem>>, vector<32x32xf32>
    %c0_118 = arith.constant 0 : index
    %c0_119 = arith.constant 0 : index
    %240 = vector.load %arg17[%c0_118, %c0_119] : memref<32x1xf32, #tpu.memory_space<vmem>>, vector<32x1xf32>
    %cst_120 = arith.constant dense<0.000000e+00> : vector<32x128xf32>
    %241 = tpu.matmul %239, %238, %cst_120 {dimension_numbers = #tpu.dot_dimension_numbers<[1], [0], [0], [1], [0, 0, 1, 1], [], []>} : vector<32x32xf32>, vector<32x128xf32>, vector<32x128xf32> -> vector<32x128xf32>
    %242 = vector.broadcast %240 : vector<32x1xf32> to vector<32x128xf32>
    %243 = arith.addf %241, %242 : vector<32x128xf32>
    %c0_121 = arith.constant 0 : index
    %c0_122 = arith.constant 0 : index
    %244 = vector.load %arg18[%c0_121, %c0_122] : memref<32x96xf32, #tpu.memory_space<vmem>>, vector<32x96xf32>
    %c0_123 = arith.constant 0 : index
    %c0_124 = arith.constant 0 : index
    %245 = vector.load %arg19[%c0_123, %c0_124] : memref<32x1xf32, #tpu.memory_space<vmem>>, vector<32x1xf32>
    %246 = tpu.iota {dimensions = array<i32: 1>} : vector<32x128xi32>
    %c-1_i32_125 = arith.constant -1 : i32
    %247 = vector.broadcast %c-1_i32_125 : i32 to vector<32x128xi32>
    %248 = arith.addi %246, %247 : vector<32x128xi32>
    %c0_i32_126 = arith.constant 0 : i32
    %249 = vector.broadcast %c0_i32_126 : i32 to vector<32x128xi32>
    %250 = arith.cmpi sge, %248, %249 : vector<32x128xi32>
    %c128_i32_127 = arith.constant 128 : i32
    %251 = vector.broadcast %c128_i32_127 : i32 to vector<32x128xi32>
    %252 = arith.cmpi slt, %248, %251 : vector<32x128xi32>
    %253 = arith.andi %250, %252 : vector<32x128xi1>
    %cst_128 = arith.constant 0.000000e+00 : f32
    %254 = vector.broadcast %cst_128 : f32 to vector<32x128xf32>
    %c1_i32_129 = arith.constant 1 : i32
    %255 = tpu.dynamic_rotate %238 by %c1_i32_129 dim 1 : vector<32x128xf32>, i32 -> vector<32x128xf32>
    %c1_i32_130 = arith.constant 1 : i32
    %256 = tpu.dynamic_rotate %246 by %c1_i32_130 dim 1 : vector<32x128xi32>, i32 -> vector<32x128xi32>
    %257 = arith.cmpi eq, %256, %248 : vector<32x128xi32>
    %258 = arith.andi %253, %257 : vector<32x128xi1>
    %259 = arith.select %258, %255, %254 : vector<32x128xi1>, vector<32x128xf32>
    %c127_i32_131 = arith.constant 127 : i32
    %260 = tpu.dynamic_rotate %238 by %c127_i32_131 dim 1 : vector<32x128xf32>, i32 -> vector<32x128xf32>
    %c127_i32_132 = arith.constant 127 : i32
    %261 = tpu.dynamic_rotate %246 by %c127_i32_132 dim 1 : vector<32x128xi32>, i32 -> vector<32x128xi32>
    %262 = arith.cmpi eq, %261, %248 : vector<32x128xi32>
    %263 = arith.andi %253, %262 : vector<32x128xi1>
    %264 = arith.select %263, %260, %259 : vector<32x128xi1>, vector<32x128xf32>
    %c1_i32_133 = arith.constant 1 : i32
    %265 = vector.broadcast %c1_i32_133 : i32 to vector<32x128xi32>
    %266 = arith.addi %246, %265 : vector<32x128xi32>
    %c0_i32_134 = arith.constant 0 : i32
    %267 = vector.broadcast %c0_i32_134 : i32 to vector<32x128xi32>
    %268 = arith.cmpi sge, %266, %267 : vector<32x128xi32>
    %c128_i32_135 = arith.constant 128 : i32
    %269 = vector.broadcast %c128_i32_135 : i32 to vector<32x128xi32>
    %270 = arith.cmpi slt, %266, %269 : vector<32x128xi32>
    %271 = arith.andi %268, %270 : vector<32x128xi1>
    %cst_136 = arith.constant 0.000000e+00 : f32
    %272 = vector.broadcast %cst_136 : f32 to vector<32x128xf32>
    %c127_i32_137 = arith.constant 127 : i32
    %273 = tpu.dynamic_rotate %238 by %c127_i32_137 dim 1 : vector<32x128xf32>, i32 -> vector<32x128xf32>
    %c127_i32_138 = arith.constant 127 : i32
    %274 = tpu.dynamic_rotate %246 by %c127_i32_138 dim 1 : vector<32x128xi32>, i32 -> vector<32x128xi32>
    %275 = arith.cmpi eq, %274, %266 : vector<32x128xi32>
    %276 = arith.andi %271, %275 : vector<32x128xi1>
    %277 = arith.select %276, %273, %272 : vector<32x128xi1>, vector<32x128xf32>
    %c1_i32_139 = arith.constant 1 : i32
    %278 = tpu.dynamic_rotate %238 by %c1_i32_139 dim 1 : vector<32x128xf32>, i32 -> vector<32x128xf32>
    %c1_i32_140 = arith.constant 1 : i32
    %279 = tpu.dynamic_rotate %246 by %c1_i32_140 dim 1 : vector<32x128xi32>, i32 -> vector<32x128xi32>
    %280 = arith.cmpi eq, %279, %266 : vector<32x128xi32>
    %281 = arith.andi %271, %280 : vector<32x128xi1>
    %282 = arith.select %281, %278, %277 : vector<32x128xi1>, vector<32x128xf32>
    %283 = tpu.concatenate %264, %238, %282 in 0 : vector<32x128xf32>, vector<32x128xf32>, vector<32x128xf32> -> vector<96x128xf32>
    %cst_141 = arith.constant dense<0.000000e+00> : vector<32x128xf32>
    %284 = tpu.matmul %244, %283, %cst_141 {dimension_numbers = #tpu.dot_dimension_numbers<[1], [0], [0], [1], [0, 0, 1, 1], [], []>} : vector<32x96xf32>, vector<96x128xf32>, vector<32x128xf32> -> vector<32x128xf32>
    %285 = vector.broadcast %245 : vector<32x1xf32> to vector<32x128xf32>
    %286 = arith.addf %284, %285 : vector<32x128xf32>
    %cst_142 = arith.constant 0.000000e+00 : f32
    %287 = vector.broadcast %cst_142 : f32 to vector<32x128xf32>
    %288 = arith.maximumf %286, %287 : vector<32x128xf32>
    %c0_143 = arith.constant 0 : index
    %c0_144 = arith.constant 0 : index
    %289 = vector.load %arg20[%c0_143, %c0_144] : memref<32x96xf32, #tpu.memory_space<vmem>>, vector<32x96xf32>
    %c0_145 = arith.constant 0 : index
    %c0_146 = arith.constant 0 : index
    %290 = vector.load %arg21[%c0_145, %c0_146] : memref<32x1xf32, #tpu.memory_space<vmem>>, vector<32x1xf32>
    %291 = tpu.iota {dimensions = array<i32: 1>} : vector<32x128xi32>
    %c-1_i32_147 = arith.constant -1 : i32
    %292 = vector.broadcast %c-1_i32_147 : i32 to vector<32x128xi32>
    %293 = arith.addi %291, %292 : vector<32x128xi32>
    %c0_i32_148 = arith.constant 0 : i32
    %294 = vector.broadcast %c0_i32_148 : i32 to vector<32x128xi32>
    %295 = arith.cmpi sge, %293, %294 : vector<32x128xi32>
    %c128_i32_149 = arith.constant 128 : i32
    %296 = vector.broadcast %c128_i32_149 : i32 to vector<32x128xi32>
    %297 = arith.cmpi slt, %293, %296 : vector<32x128xi32>
    %298 = arith.andi %295, %297 : vector<32x128xi1>
    %cst_150 = arith.constant 0.000000e+00 : f32
    %299 = vector.broadcast %cst_150 : f32 to vector<32x128xf32>
    %c1_i32_151 = arith.constant 1 : i32
    %300 = tpu.dynamic_rotate %288 by %c1_i32_151 dim 1 : vector<32x128xf32>, i32 -> vector<32x128xf32>
    %c1_i32_152 = arith.constant 1 : i32
    %301 = tpu.dynamic_rotate %291 by %c1_i32_152 dim 1 : vector<32x128xi32>, i32 -> vector<32x128xi32>
    %302 = arith.cmpi eq, %301, %293 : vector<32x128xi32>
    %303 = arith.andi %298, %302 : vector<32x128xi1>
    %304 = arith.select %303, %300, %299 : vector<32x128xi1>, vector<32x128xf32>
    %c127_i32_153 = arith.constant 127 : i32
    %305 = tpu.dynamic_rotate %288 by %c127_i32_153 dim 1 : vector<32x128xf32>, i32 -> vector<32x128xf32>
    %c127_i32_154 = arith.constant 127 : i32
    %306 = tpu.dynamic_rotate %291 by %c127_i32_154 dim 1 : vector<32x128xi32>, i32 -> vector<32x128xi32>
    %307 = arith.cmpi eq, %306, %293 : vector<32x128xi32>
    %308 = arith.andi %298, %307 : vector<32x128xi1>
    %309 = arith.select %308, %305, %304 : vector<32x128xi1>, vector<32x128xf32>
    %c1_i32_155 = arith.constant 1 : i32
    %310 = vector.broadcast %c1_i32_155 : i32 to vector<32x128xi32>
    %311 = arith.addi %291, %310 : vector<32x128xi32>
    %c0_i32_156 = arith.constant 0 : i32
    %312 = vector.broadcast %c0_i32_156 : i32 to vector<32x128xi32>
    %313 = arith.cmpi sge, %311, %312 : vector<32x128xi32>
    %c128_i32_157 = arith.constant 128 : i32
    %314 = vector.broadcast %c128_i32_157 : i32 to vector<32x128xi32>
    %315 = arith.cmpi slt, %311, %314 : vector<32x128xi32>
    %316 = arith.andi %313, %315 : vector<32x128xi1>
    %cst_158 = arith.constant 0.000000e+00 : f32
    %317 = vector.broadcast %cst_158 : f32 to vector<32x128xf32>
    %c127_i32_159 = arith.constant 127 : i32
    %318 = tpu.dynamic_rotate %288 by %c127_i32_159 dim 1 : vector<32x128xf32>, i32 -> vector<32x128xf32>
    %c127_i32_160 = arith.constant 127 : i32
    %319 = tpu.dynamic_rotate %291 by %c127_i32_160 dim 1 : vector<32x128xi32>, i32 -> vector<32x128xi32>
    %320 = arith.cmpi eq, %319, %311 : vector<32x128xi32>
    %321 = arith.andi %316, %320 : vector<32x128xi1>
    %322 = arith.select %321, %318, %317 : vector<32x128xi1>, vector<32x128xf32>
    %c1_i32_161 = arith.constant 1 : i32
    %323 = tpu.dynamic_rotate %288 by %c1_i32_161 dim 1 : vector<32x128xf32>, i32 -> vector<32x128xf32>
    %c1_i32_162 = arith.constant 1 : i32
    %324 = tpu.dynamic_rotate %291 by %c1_i32_162 dim 1 : vector<32x128xi32>, i32 -> vector<32x128xi32>
    %325 = arith.cmpi eq, %324, %311 : vector<32x128xi32>
    %326 = arith.andi %316, %325 : vector<32x128xi1>
    %327 = arith.select %326, %323, %322 : vector<32x128xi1>, vector<32x128xf32>
    %328 = tpu.concatenate %309, %288, %327 in 0 : vector<32x128xf32>, vector<32x128xf32>, vector<32x128xf32> -> vector<96x128xf32>
    %cst_163 = arith.constant dense<0.000000e+00> : vector<32x128xf32>
    %329 = tpu.matmul %289, %328, %cst_163 {dimension_numbers = #tpu.dot_dimension_numbers<[1], [0], [0], [1], [0, 0, 1, 1], [], []>} : vector<32x96xf32>, vector<96x128xf32>, vector<32x128xf32> -> vector<32x128xf32>
    %330 = vector.broadcast %290 : vector<32x1xf32> to vector<32x128xf32>
    %331 = arith.addf %329, %330 : vector<32x128xf32>
    %332 = arith.addf %331, %243 : vector<32x128xf32>
    %cst_164 = arith.constant 0.000000e+00 : f32
    %333 = vector.broadcast %cst_164 : f32 to vector<32x128xf32>
    %334 = arith.maximumf %332, %333 : vector<32x128xf32>
    %c0_165 = arith.constant 0 : index
    %c0_166 = arith.constant 0 : index
    %335 = vector.load %arg22[%c0_165, %c0_166] : memref<32x32xf32, #tpu.memory_space<vmem>>, vector<32x32xf32>
    %c0_167 = arith.constant 0 : index
    %c0_168 = arith.constant 0 : index
    %336 = vector.load %arg23[%c0_167, %c0_168] : memref<32x1xf32, #tpu.memory_space<vmem>>, vector<32x1xf32>
    %cst_169 = arith.constant dense<0.000000e+00> : vector<32x128xf32>
    %337 = tpu.matmul %335, %334, %cst_169 {dimension_numbers = #tpu.dot_dimension_numbers<[1], [0], [0], [1], [0, 0, 1, 1], [], []>} : vector<32x32xf32>, vector<32x128xf32>, vector<32x128xf32> -> vector<32x128xf32>
    %338 = vector.broadcast %336 : vector<32x1xf32> to vector<32x128xf32>
    %339 = arith.addf %337, %338 : vector<32x128xf32>
    %c0_170 = arith.constant 0 : index
    %c0_171 = arith.constant 0 : index
    %340 = vector.load %arg24[%c0_170, %c0_171] : memref<32x96xf32, #tpu.memory_space<vmem>>, vector<32x96xf32>
    %c0_172 = arith.constant 0 : index
    %c0_173 = arith.constant 0 : index
    %341 = vector.load %arg25[%c0_172, %c0_173] : memref<32x1xf32, #tpu.memory_space<vmem>>, vector<32x1xf32>
    %342 = tpu.iota {dimensions = array<i32: 1>} : vector<32x128xi32>
    %c-1_i32_174 = arith.constant -1 : i32
    %343 = vector.broadcast %c-1_i32_174 : i32 to vector<32x128xi32>
    %344 = arith.addi %342, %343 : vector<32x128xi32>
    %c0_i32_175 = arith.constant 0 : i32
    %345 = vector.broadcast %c0_i32_175 : i32 to vector<32x128xi32>
    %346 = arith.cmpi sge, %344, %345 : vector<32x128xi32>
    %c128_i32_176 = arith.constant 128 : i32
    %347 = vector.broadcast %c128_i32_176 : i32 to vector<32x128xi32>
    %348 = arith.cmpi slt, %344, %347 : vector<32x128xi32>
    %349 = arith.andi %346, %348 : vector<32x128xi1>
    %cst_177 = arith.constant 0.000000e+00 : f32
    %350 = vector.broadcast %cst_177 : f32 to vector<32x128xf32>
    %c1_i32_178 = arith.constant 1 : i32
    %351 = tpu.dynamic_rotate %334 by %c1_i32_178 dim 1 : vector<32x128xf32>, i32 -> vector<32x128xf32>
    %c1_i32_179 = arith.constant 1 : i32
    %352 = tpu.dynamic_rotate %342 by %c1_i32_179 dim 1 : vector<32x128xi32>, i32 -> vector<32x128xi32>
    %353 = arith.cmpi eq, %352, %344 : vector<32x128xi32>
    %354 = arith.andi %349, %353 : vector<32x128xi1>
    %355 = arith.select %354, %351, %350 : vector<32x128xi1>, vector<32x128xf32>
    %c127_i32_180 = arith.constant 127 : i32
    %356 = tpu.dynamic_rotate %334 by %c127_i32_180 dim 1 : vector<32x128xf32>, i32 -> vector<32x128xf32>
    %c127_i32_181 = arith.constant 127 : i32
    %357 = tpu.dynamic_rotate %342 by %c127_i32_181 dim 1 : vector<32x128xi32>, i32 -> vector<32x128xi32>
    %358 = arith.cmpi eq, %357, %344 : vector<32x128xi32>
    %359 = arith.andi %349, %358 : vector<32x128xi1>
    %360 = arith.select %359, %356, %355 : vector<32x128xi1>, vector<32x128xf32>
    %c1_i32_182 = arith.constant 1 : i32
    %361 = vector.broadcast %c1_i32_182 : i32 to vector<32x128xi32>
    %362 = arith.addi %342, %361 : vector<32x128xi32>
    %c0_i32_183 = arith.constant 0 : i32
    %363 = vector.broadcast %c0_i32_183 : i32 to vector<32x128xi32>
    %364 = arith.cmpi sge, %362, %363 : vector<32x128xi32>
    %c128_i32_184 = arith.constant 128 : i32
    %365 = vector.broadcast %c128_i32_184 : i32 to vector<32x128xi32>
    %366 = arith.cmpi slt, %362, %365 : vector<32x128xi32>
    %367 = arith.andi %364, %366 : vector<32x128xi1>
    %cst_185 = arith.constant 0.000000e+00 : f32
    %368 = vector.broadcast %cst_185 : f32 to vector<32x128xf32>
    %c127_i32_186 = arith.constant 127 : i32
    %369 = tpu.dynamic_rotate %334 by %c127_i32_186 dim 1 : vector<32x128xf32>, i32 -> vector<32x128xf32>
    %c127_i32_187 = arith.constant 127 : i32
    %370 = tpu.dynamic_rotate %342 by %c127_i32_187 dim 1 : vector<32x128xi32>, i32 -> vector<32x128xi32>
    %371 = arith.cmpi eq, %370, %362 : vector<32x128xi32>
    %372 = arith.andi %367, %371 : vector<32x128xi1>
    %373 = arith.select %372, %369, %368 : vector<32x128xi1>, vector<32x128xf32>
    %c1_i32_188 = arith.constant 1 : i32
    %374 = tpu.dynamic_rotate %334 by %c1_i32_188 dim 1 : vector<32x128xf32>, i32 -> vector<32x128xf32>
    %c1_i32_189 = arith.constant 1 : i32
    %375 = tpu.dynamic_rotate %342 by %c1_i32_189 dim 1 : vector<32x128xi32>, i32 -> vector<32x128xi32>
    %376 = arith.cmpi eq, %375, %362 : vector<32x128xi32>
    %377 = arith.andi %367, %376 : vector<32x128xi1>
    %378 = arith.select %377, %374, %373 : vector<32x128xi1>, vector<32x128xf32>
    %379 = tpu.concatenate %360, %334, %378 in 0 : vector<32x128xf32>, vector<32x128xf32>, vector<32x128xf32> -> vector<96x128xf32>
    %cst_190 = arith.constant dense<0.000000e+00> : vector<32x128xf32>
    %380 = tpu.matmul %340, %379, %cst_190 {dimension_numbers = #tpu.dot_dimension_numbers<[1], [0], [0], [1], [0, 0, 1, 1], [], []>} : vector<32x96xf32>, vector<96x128xf32>, vector<32x128xf32> -> vector<32x128xf32>
    %381 = vector.broadcast %341 : vector<32x1xf32> to vector<32x128xf32>
    %382 = arith.addf %380, %381 : vector<32x128xf32>
    %cst_191 = arith.constant 0.000000e+00 : f32
    %383 = vector.broadcast %cst_191 : f32 to vector<32x128xf32>
    %384 = arith.maximumf %382, %383 : vector<32x128xf32>
    %c0_192 = arith.constant 0 : index
    %c0_193 = arith.constant 0 : index
    %385 = vector.load %arg26[%c0_192, %c0_193] : memref<32x96xf32, #tpu.memory_space<vmem>>, vector<32x96xf32>
    %c0_194 = arith.constant 0 : index
    %c0_195 = arith.constant 0 : index
    %386 = vector.load %arg27[%c0_194, %c0_195] : memref<32x1xf32, #tpu.memory_space<vmem>>, vector<32x1xf32>
    %387 = tpu.iota {dimensions = array<i32: 1>} : vector<32x128xi32>
    %c-1_i32_196 = arith.constant -1 : i32
    %388 = vector.broadcast %c-1_i32_196 : i32 to vector<32x128xi32>
    %389 = arith.addi %387, %388 : vector<32x128xi32>
    %c0_i32_197 = arith.constant 0 : i32
    %390 = vector.broadcast %c0_i32_197 : i32 to vector<32x128xi32>
    %391 = arith.cmpi sge, %389, %390 : vector<32x128xi32>
    %c128_i32_198 = arith.constant 128 : i32
    %392 = vector.broadcast %c128_i32_198 : i32 to vector<32x128xi32>
    %393 = arith.cmpi slt, %389, %392 : vector<32x128xi32>
    %394 = arith.andi %391, %393 : vector<32x128xi1>
    %cst_199 = arith.constant 0.000000e+00 : f32
    %395 = vector.broadcast %cst_199 : f32 to vector<32x128xf32>
    %c1_i32_200 = arith.constant 1 : i32
    %396 = tpu.dynamic_rotate %384 by %c1_i32_200 dim 1 : vector<32x128xf32>, i32 -> vector<32x128xf32>
    %c1_i32_201 = arith.constant 1 : i32
    %397 = tpu.dynamic_rotate %387 by %c1_i32_201 dim 1 : vector<32x128xi32>, i32 -> vector<32x128xi32>
    %398 = arith.cmpi eq, %397, %389 : vector<32x128xi32>
    %399 = arith.andi %394, %398 : vector<32x128xi1>
    %400 = arith.select %399, %396, %395 : vector<32x128xi1>, vector<32x128xf32>
    %c127_i32_202 = arith.constant 127 : i32
    %401 = tpu.dynamic_rotate %384 by %c127_i32_202 dim 1 : vector<32x128xf32>, i32 -> vector<32x128xf32>
    %c127_i32_203 = arith.constant 127 : i32
    %402 = tpu.dynamic_rotate %387 by %c127_i32_203 dim 1 : vector<32x128xi32>, i32 -> vector<32x128xi32>
    %403 = arith.cmpi eq, %402, %389 : vector<32x128xi32>
    %404 = arith.andi %394, %403 : vector<32x128xi1>
    %405 = arith.select %404, %401, %400 : vector<32x128xi1>, vector<32x128xf32>
    %c1_i32_204 = arith.constant 1 : i32
    %406 = vector.broadcast %c1_i32_204 : i32 to vector<32x128xi32>
    %407 = arith.addi %387, %406 : vector<32x128xi32>
    %c0_i32_205 = arith.constant 0 : i32
    %408 = vector.broadcast %c0_i32_205 : i32 to vector<32x128xi32>
    %409 = arith.cmpi sge, %407, %408 : vector<32x128xi32>
    %c128_i32_206 = arith.constant 128 : i32
    %410 = vector.broadcast %c128_i32_206 : i32 to vector<32x128xi32>
    %411 = arith.cmpi slt, %407, %410 : vector<32x128xi32>
    %412 = arith.andi %409, %411 : vector<32x128xi1>
    %cst_207 = arith.constant 0.000000e+00 : f32
    %413 = vector.broadcast %cst_207 : f32 to vector<32x128xf32>
    %c127_i32_208 = arith.constant 127 : i32
    %414 = tpu.dynamic_rotate %384 by %c127_i32_208 dim 1 : vector<32x128xf32>, i32 -> vector<32x128xf32>
    %c127_i32_209 = arith.constant 127 : i32
    %415 = tpu.dynamic_rotate %387 by %c127_i32_209 dim 1 : vector<32x128xi32>, i32 -> vector<32x128xi32>
    %416 = arith.cmpi eq, %415, %407 : vector<32x128xi32>
    %417 = arith.andi %412, %416 : vector<32x128xi1>
    %418 = arith.select %417, %414, %413 : vector<32x128xi1>, vector<32x128xf32>
    %c1_i32_210 = arith.constant 1 : i32
    %419 = tpu.dynamic_rotate %384 by %c1_i32_210 dim 1 : vector<32x128xf32>, i32 -> vector<32x128xf32>
    %c1_i32_211 = arith.constant 1 : i32
    %420 = tpu.dynamic_rotate %387 by %c1_i32_211 dim 1 : vector<32x128xi32>, i32 -> vector<32x128xi32>
    %421 = arith.cmpi eq, %420, %407 : vector<32x128xi32>
    %422 = arith.andi %412, %421 : vector<32x128xi1>
    %423 = arith.select %422, %419, %418 : vector<32x128xi1>, vector<32x128xf32>
    %424 = tpu.concatenate %405, %384, %423 in 0 : vector<32x128xf32>, vector<32x128xf32>, vector<32x128xf32> -> vector<96x128xf32>
    %cst_212 = arith.constant dense<0.000000e+00> : vector<32x128xf32>
    %425 = tpu.matmul %385, %424, %cst_212 {dimension_numbers = #tpu.dot_dimension_numbers<[1], [0], [0], [1], [0, 0, 1, 1], [], []>} : vector<32x96xf32>, vector<96x128xf32>, vector<32x128xf32> -> vector<32x128xf32>
    %426 = vector.broadcast %386 : vector<32x1xf32> to vector<32x128xf32>
    %427 = arith.addf %425, %426 : vector<32x128xf32>
    %428 = arith.addf %427, %339 : vector<32x128xf32>
    %cst_213 = arith.constant 0.000000e+00 : f32
    %429 = vector.broadcast %cst_213 : f32 to vector<32x128xf32>
    %430 = arith.maximumf %428, %429 : vector<32x128xf32>
    %c0_214 = arith.constant 0 : index
    %c0_215 = arith.constant 0 : index
    %431 = vector.load %arg28[%c0_214, %c0_215] : memref<32x32xf32, #tpu.memory_space<vmem>>, vector<32x32xf32>
    %c0_216 = arith.constant 0 : index
    %c0_217 = arith.constant 0 : index
    %432 = vector.load %arg29[%c0_216, %c0_217] : memref<32x1xf32, #tpu.memory_space<vmem>>, vector<32x1xf32>
    %cst_218 = arith.constant dense<0.000000e+00> : vector<32x128xf32>
    %433 = tpu.matmul %431, %430, %cst_218 {dimension_numbers = #tpu.dot_dimension_numbers<[1], [0], [0], [1], [0, 0, 1, 1], [], []>} : vector<32x32xf32>, vector<32x128xf32>, vector<32x128xf32> -> vector<32x128xf32>
    %434 = vector.broadcast %432 : vector<32x1xf32> to vector<32x128xf32>
    %435 = arith.addf %433, %434 : vector<32x128xf32>
    %c0_219 = arith.constant 0 : index
    %c0_220 = arith.constant 0 : index
    %436 = vector.load %arg30[%c0_219, %c0_220] : memref<32x96xf32, #tpu.memory_space<vmem>>, vector<32x96xf32>
    %c0_221 = arith.constant 0 : index
    %c0_222 = arith.constant 0 : index
    %437 = vector.load %arg31[%c0_221, %c0_222] : memref<32x1xf32, #tpu.memory_space<vmem>>, vector<32x1xf32>
    %438 = tpu.iota {dimensions = array<i32: 1>} : vector<32x128xi32>
    %c-1_i32_223 = arith.constant -1 : i32
    %439 = vector.broadcast %c-1_i32_223 : i32 to vector<32x128xi32>
    %440 = arith.addi %438, %439 : vector<32x128xi32>
    %c0_i32_224 = arith.constant 0 : i32
    %441 = vector.broadcast %c0_i32_224 : i32 to vector<32x128xi32>
    %442 = arith.cmpi sge, %440, %441 : vector<32x128xi32>
    %c128_i32_225 = arith.constant 128 : i32
    %443 = vector.broadcast %c128_i32_225 : i32 to vector<32x128xi32>
    %444 = arith.cmpi slt, %440, %443 : vector<32x128xi32>
    %445 = arith.andi %442, %444 : vector<32x128xi1>
    %cst_226 = arith.constant 0.000000e+00 : f32
    %446 = vector.broadcast %cst_226 : f32 to vector<32x128xf32>
    %c1_i32_227 = arith.constant 1 : i32
    %447 = tpu.dynamic_rotate %430 by %c1_i32_227 dim 1 : vector<32x128xf32>, i32 -> vector<32x128xf32>
    %c1_i32_228 = arith.constant 1 : i32
    %448 = tpu.dynamic_rotate %438 by %c1_i32_228 dim 1 : vector<32x128xi32>, i32 -> vector<32x128xi32>
    %449 = arith.cmpi eq, %448, %440 : vector<32x128xi32>
    %450 = arith.andi %445, %449 : vector<32x128xi1>
    %451 = arith.select %450, %447, %446 : vector<32x128xi1>, vector<32x128xf32>
    %c127_i32_229 = arith.constant 127 : i32
    %452 = tpu.dynamic_rotate %430 by %c127_i32_229 dim 1 : vector<32x128xf32>, i32 -> vector<32x128xf32>
    %c127_i32_230 = arith.constant 127 : i32
    %453 = tpu.dynamic_rotate %438 by %c127_i32_230 dim 1 : vector<32x128xi32>, i32 -> vector<32x128xi32>
    %454 = arith.cmpi eq, %453, %440 : vector<32x128xi32>
    %455 = arith.andi %445, %454 : vector<32x128xi1>
    %456 = arith.select %455, %452, %451 : vector<32x128xi1>, vector<32x128xf32>
    %c1_i32_231 = arith.constant 1 : i32
    %457 = vector.broadcast %c1_i32_231 : i32 to vector<32x128xi32>
    %458 = arith.addi %438, %457 : vector<32x128xi32>
    %c0_i32_232 = arith.constant 0 : i32
    %459 = vector.broadcast %c0_i32_232 : i32 to vector<32x128xi32>
    %460 = arith.cmpi sge, %458, %459 : vector<32x128xi32>
    %c128_i32_233 = arith.constant 128 : i32
    %461 = vector.broadcast %c128_i32_233 : i32 to vector<32x128xi32>
    %462 = arith.cmpi slt, %458, %461 : vector<32x128xi32>
    %463 = arith.andi %460, %462 : vector<32x128xi1>
    %cst_234 = arith.constant 0.000000e+00 : f32
    %464 = vector.broadcast %cst_234 : f32 to vector<32x128xf32>
    %c127_i32_235 = arith.constant 127 : i32
    %465 = tpu.dynamic_rotate %430 by %c127_i32_235 dim 1 : vector<32x128xf32>, i32 -> vector<32x128xf32>
    %c127_i32_236 = arith.constant 127 : i32
    %466 = tpu.dynamic_rotate %438 by %c127_i32_236 dim 1 : vector<32x128xi32>, i32 -> vector<32x128xi32>
    %467 = arith.cmpi eq, %466, %458 : vector<32x128xi32>
    %468 = arith.andi %463, %467 : vector<32x128xi1>
    %469 = arith.select %468, %465, %464 : vector<32x128xi1>, vector<32x128xf32>
    %c1_i32_237 = arith.constant 1 : i32
    %470 = tpu.dynamic_rotate %430 by %c1_i32_237 dim 1 : vector<32x128xf32>, i32 -> vector<32x128xf32>
    %c1_i32_238 = arith.constant 1 : i32
    %471 = tpu.dynamic_rotate %438 by %c1_i32_238 dim 1 : vector<32x128xi32>, i32 -> vector<32x128xi32>
    %472 = arith.cmpi eq, %471, %458 : vector<32x128xi32>
    %473 = arith.andi %463, %472 : vector<32x128xi1>
    %474 = arith.select %473, %470, %469 : vector<32x128xi1>, vector<32x128xf32>
    %475 = tpu.concatenate %456, %430, %474 in 0 : vector<32x128xf32>, vector<32x128xf32>, vector<32x128xf32> -> vector<96x128xf32>
    %cst_239 = arith.constant dense<0.000000e+00> : vector<32x128xf32>
    %476 = tpu.matmul %436, %475, %cst_239 {dimension_numbers = #tpu.dot_dimension_numbers<[1], [0], [0], [1], [0, 0, 1, 1], [], []>} : vector<32x96xf32>, vector<96x128xf32>, vector<32x128xf32> -> vector<32x128xf32>
    %477 = vector.broadcast %437 : vector<32x1xf32> to vector<32x128xf32>
    %478 = arith.addf %476, %477 : vector<32x128xf32>
    %cst_240 = arith.constant 0.000000e+00 : f32
    %479 = vector.broadcast %cst_240 : f32 to vector<32x128xf32>
    %480 = arith.maximumf %478, %479 : vector<32x128xf32>
    %c0_241 = arith.constant 0 : index
    %c0_242 = arith.constant 0 : index
    %481 = vector.load %arg32[%c0_241, %c0_242] : memref<32x96xf32, #tpu.memory_space<vmem>>, vector<32x96xf32>
    %c0_243 = arith.constant 0 : index
    %c0_244 = arith.constant 0 : index
    %482 = vector.load %arg33[%c0_243, %c0_244] : memref<32x1xf32, #tpu.memory_space<vmem>>, vector<32x1xf32>
    %483 = tpu.iota {dimensions = array<i32: 1>} : vector<32x128xi32>
    %c-1_i32_245 = arith.constant -1 : i32
    %484 = vector.broadcast %c-1_i32_245 : i32 to vector<32x128xi32>
    %485 = arith.addi %483, %484 : vector<32x128xi32>
    %c0_i32_246 = arith.constant 0 : i32
    %486 = vector.broadcast %c0_i32_246 : i32 to vector<32x128xi32>
    %487 = arith.cmpi sge, %485, %486 : vector<32x128xi32>
    %c128_i32_247 = arith.constant 128 : i32
    %488 = vector.broadcast %c128_i32_247 : i32 to vector<32x128xi32>
    %489 = arith.cmpi slt, %485, %488 : vector<32x128xi32>
    %490 = arith.andi %487, %489 : vector<32x128xi1>
    %cst_248 = arith.constant 0.000000e+00 : f32
    %491 = vector.broadcast %cst_248 : f32 to vector<32x128xf32>
    %c1_i32_249 = arith.constant 1 : i32
    %492 = tpu.dynamic_rotate %480 by %c1_i32_249 dim 1 : vector<32x128xf32>, i32 -> vector<32x128xf32>
    %c1_i32_250 = arith.constant 1 : i32
    %493 = tpu.dynamic_rotate %483 by %c1_i32_250 dim 1 : vector<32x128xi32>, i32 -> vector<32x128xi32>
    %494 = arith.cmpi eq, %493, %485 : vector<32x128xi32>
    %495 = arith.andi %490, %494 : vector<32x128xi1>
    %496 = arith.select %495, %492, %491 : vector<32x128xi1>, vector<32x128xf32>
    %c127_i32_251 = arith.constant 127 : i32
    %497 = tpu.dynamic_rotate %480 by %c127_i32_251 dim 1 : vector<32x128xf32>, i32 -> vector<32x128xf32>
    %c127_i32_252 = arith.constant 127 : i32
    %498 = tpu.dynamic_rotate %483 by %c127_i32_252 dim 1 : vector<32x128xi32>, i32 -> vector<32x128xi32>
    %499 = arith.cmpi eq, %498, %485 : vector<32x128xi32>
    %500 = arith.andi %490, %499 : vector<32x128xi1>
    %501 = arith.select %500, %497, %496 : vector<32x128xi1>, vector<32x128xf32>
    %c1_i32_253 = arith.constant 1 : i32
    %502 = vector.broadcast %c1_i32_253 : i32 to vector<32x128xi32>
    %503 = arith.addi %483, %502 : vector<32x128xi32>
    %c0_i32_254 = arith.constant 0 : i32
    %504 = vector.broadcast %c0_i32_254 : i32 to vector<32x128xi32>
    %505 = arith.cmpi sge, %503, %504 : vector<32x128xi32>
    %c128_i32_255 = arith.constant 128 : i32
    %506 = vector.broadcast %c128_i32_255 : i32 to vector<32x128xi32>
    %507 = arith.cmpi slt, %503, %506 : vector<32x128xi32>
    %508 = arith.andi %505, %507 : vector<32x128xi1>
    %cst_256 = arith.constant 0.000000e+00 : f32
    %509 = vector.broadcast %cst_256 : f32 to vector<32x128xf32>
    %c127_i32_257 = arith.constant 127 : i32
    %510 = tpu.dynamic_rotate %480 by %c127_i32_257 dim 1 : vector<32x128xf32>, i32 -> vector<32x128xf32>
    %c127_i32_258 = arith.constant 127 : i32
    %511 = tpu.dynamic_rotate %483 by %c127_i32_258 dim 1 : vector<32x128xi32>, i32 -> vector<32x128xi32>
    %512 = arith.cmpi eq, %511, %503 : vector<32x128xi32>
    %513 = arith.andi %508, %512 : vector<32x128xi1>
    %514 = arith.select %513, %510, %509 : vector<32x128xi1>, vector<32x128xf32>
    %c1_i32_259 = arith.constant 1 : i32
    %515 = tpu.dynamic_rotate %480 by %c1_i32_259 dim 1 : vector<32x128xf32>, i32 -> vector<32x128xf32>
    %c1_i32_260 = arith.constant 1 : i32
    %516 = tpu.dynamic_rotate %483 by %c1_i32_260 dim 1 : vector<32x128xi32>, i32 -> vector<32x128xi32>
    %517 = arith.cmpi eq, %516, %503 : vector<32x128xi32>
    %518 = arith.andi %508, %517 : vector<32x128xi1>
    %519 = arith.select %518, %515, %514 : vector<32x128xi1>, vector<32x128xf32>
    %520 = tpu.concatenate %501, %480, %519 in 0 : vector<32x128xf32>, vector<32x128xf32>, vector<32x128xf32> -> vector<96x128xf32>
    %cst_261 = arith.constant dense<0.000000e+00> : vector<32x128xf32>
    %521 = tpu.matmul %481, %520, %cst_261 {dimension_numbers = #tpu.dot_dimension_numbers<[1], [0], [0], [1], [0, 0, 1, 1], [], []>} : vector<32x96xf32>, vector<96x128xf32>, vector<32x128xf32> -> vector<32x128xf32>
    %522 = vector.broadcast %482 : vector<32x1xf32> to vector<32x128xf32>
    %523 = arith.addf %521, %522 : vector<32x128xf32>
    %524 = arith.addf %523, %435 : vector<32x128xf32>
    %cst_262 = arith.constant 0.000000e+00 : f32
    %525 = vector.broadcast %cst_262 : f32 to vector<32x128xf32>
    %526 = arith.maximumf %524, %525 : vector<32x128xf32>
    %c0_263 = arith.constant 0 : index
    %c0_264 = arith.constant 0 : index
    %527 = vector.load %arg34[%c0_263, %c0_264] : memref<32x96xf32, #tpu.memory_space<vmem>>, vector<32x96xf32>
    %c0_265 = arith.constant 0 : index
    %c0_266 = arith.constant 0 : index
    %528 = vector.load %arg35[%c0_265, %c0_266] : memref<32x1xf32, #tpu.memory_space<vmem>>, vector<32x1xf32>
    %529 = tpu.iota {dimensions = array<i32: 1>} : vector<32x128xi32>
    %c-1_i32_267 = arith.constant -1 : i32
    %530 = vector.broadcast %c-1_i32_267 : i32 to vector<32x128xi32>
    %531 = arith.addi %529, %530 : vector<32x128xi32>
    %c0_i32_268 = arith.constant 0 : i32
    %532 = vector.broadcast %c0_i32_268 : i32 to vector<32x128xi32>
    %533 = arith.cmpi sge, %531, %532 : vector<32x128xi32>
    %c128_i32_269 = arith.constant 128 : i32
    %534 = vector.broadcast %c128_i32_269 : i32 to vector<32x128xi32>
    %535 = arith.cmpi slt, %531, %534 : vector<32x128xi32>
    %536 = arith.andi %533, %535 : vector<32x128xi1>
    %cst_270 = arith.constant 0.000000e+00 : f32
    %537 = vector.broadcast %cst_270 : f32 to vector<32x128xf32>
    %c1_i32_271 = arith.constant 1 : i32
    %538 = tpu.dynamic_rotate %526 by %c1_i32_271 dim 1 : vector<32x128xf32>, i32 -> vector<32x128xf32>
    %c1_i32_272 = arith.constant 1 : i32
    %539 = tpu.dynamic_rotate %529 by %c1_i32_272 dim 1 : vector<32x128xi32>, i32 -> vector<32x128xi32>
    %540 = arith.cmpi eq, %539, %531 : vector<32x128xi32>
    %541 = arith.andi %536, %540 : vector<32x128xi1>
    %542 = arith.select %541, %538, %537 : vector<32x128xi1>, vector<32x128xf32>
    %c127_i32_273 = arith.constant 127 : i32
    %543 = tpu.dynamic_rotate %526 by %c127_i32_273 dim 1 : vector<32x128xf32>, i32 -> vector<32x128xf32>
    %c127_i32_274 = arith.constant 127 : i32
    %544 = tpu.dynamic_rotate %529 by %c127_i32_274 dim 1 : vector<32x128xi32>, i32 -> vector<32x128xi32>
    %545 = arith.cmpi eq, %544, %531 : vector<32x128xi32>
    %546 = arith.andi %536, %545 : vector<32x128xi1>
    %547 = arith.select %546, %543, %542 : vector<32x128xi1>, vector<32x128xf32>
    %c1_i32_275 = arith.constant 1 : i32
    %548 = vector.broadcast %c1_i32_275 : i32 to vector<32x128xi32>
    %549 = arith.addi %529, %548 : vector<32x128xi32>
    %c0_i32_276 = arith.constant 0 : i32
    %550 = vector.broadcast %c0_i32_276 : i32 to vector<32x128xi32>
    %551 = arith.cmpi sge, %549, %550 : vector<32x128xi32>
    %c128_i32_277 = arith.constant 128 : i32
    %552 = vector.broadcast %c128_i32_277 : i32 to vector<32x128xi32>
    %553 = arith.cmpi slt, %549, %552 : vector<32x128xi32>
    %554 = arith.andi %551, %553 : vector<32x128xi1>
    %cst_278 = arith.constant 0.000000e+00 : f32
    %555 = vector.broadcast %cst_278 : f32 to vector<32x128xf32>
    %c127_i32_279 = arith.constant 127 : i32
    %556 = tpu.dynamic_rotate %526 by %c127_i32_279 dim 1 : vector<32x128xf32>, i32 -> vector<32x128xf32>
    %c127_i32_280 = arith.constant 127 : i32
    %557 = tpu.dynamic_rotate %529 by %c127_i32_280 dim 1 : vector<32x128xi32>, i32 -> vector<32x128xi32>
    %558 = arith.cmpi eq, %557, %549 : vector<32x128xi32>
    %559 = arith.andi %554, %558 : vector<32x128xi1>
    %560 = arith.select %559, %556, %555 : vector<32x128xi1>, vector<32x128xf32>
    %c1_i32_281 = arith.constant 1 : i32
    %561 = tpu.dynamic_rotate %526 by %c1_i32_281 dim 1 : vector<32x128xf32>, i32 -> vector<32x128xf32>
    %c1_i32_282 = arith.constant 1 : i32
    %562 = tpu.dynamic_rotate %529 by %c1_i32_282 dim 1 : vector<32x128xi32>, i32 -> vector<32x128xi32>
    %563 = arith.cmpi eq, %562, %549 : vector<32x128xi32>
    %564 = arith.andi %554, %563 : vector<32x128xi1>
    %565 = arith.select %564, %561, %560 : vector<32x128xi1>, vector<32x128xf32>
    %566 = tpu.concatenate %547, %526, %565 in 0 : vector<32x128xf32>, vector<32x128xf32>, vector<32x128xf32> -> vector<96x128xf32>
    %cst_283 = arith.constant dense<0.000000e+00> : vector<32x128xf32>
    %567 = tpu.matmul %527, %566, %cst_283 {dimension_numbers = #tpu.dot_dimension_numbers<[1], [0], [0], [1], [0, 0, 1, 1], [], []>} : vector<32x96xf32>, vector<96x128xf32>, vector<32x128xf32> -> vector<32x128xf32>
    %568 = vector.broadcast %528 : vector<32x1xf32> to vector<32x128xf32>
    %569 = arith.addf %567, %568 : vector<32x128xf32>
    %cst_284 = arith.constant 0.000000e+00 : f32
    %570 = vector.broadcast %cst_284 : f32 to vector<32x128xf32>
    %571 = arith.maximumf %569, %570 : vector<32x128xf32>
    %c0_285 = arith.constant 0 : index
    %c0_286 = arith.constant 0 : index
    %572 = vector.load %arg36[%c0_285, %c0_286] : memref<32x32xf32, #tpu.memory_space<vmem>>, vector<32x32xf32>
    %c0_287 = arith.constant 0 : index
    %c0_288 = arith.constant 0 : index
    %573 = vector.load %arg37[%c0_287, %c0_288] : memref<32x1xf32, #tpu.memory_space<vmem>>, vector<32x1xf32>
    %cst_289 = arith.constant dense<0.000000e+00> : vector<32x128xf32>
    %574 = tpu.matmul %572, %571, %cst_289 {dimension_numbers = #tpu.dot_dimension_numbers<[1], [0], [0], [1], [0, 0, 1, 1], [], []>} : vector<32x32xf32>, vector<32x128xf32>, vector<32x128xf32> -> vector<32x128xf32>
    %575 = vector.broadcast %573 : vector<32x1xf32> to vector<32x128xf32>
    %576 = arith.addf %574, %575 : vector<32x128xf32>
    %cst_290 = arith.constant 0.000000e+00 : f32
    %577 = vector.broadcast %cst_290 : f32 to vector<32x128xf32>
    %578 = arith.maximumf %576, %577 : vector<32x128xf32>
    %c0_291 = arith.constant 0 : index
    %c0_292 = arith.constant 0 : index
    %c0_293 = arith.constant 0 : index
    %579 = vector.load %arg38[%c0_291, %c0_292, %c0_293] : memref<1x32x128xf32, #tpu.memory_space<vmem>>, vector<1x32x128xf32>
    %580 = vector.shape_cast %579 : vector<1x32x128xf32> to vector<32x128xf32>
    %581 = vector.shape_cast %578 : vector<32x128xf32> to vector<1x32x128xf32>
    tpu.vector_store %arg38[%c0_291, %c0_292, %c0_293], %581 {strides = array<i32>} : memref<1x32x128xf32, #tpu.memory_space<vmem>>, vector<1x32x128xf32>,
    return
  }
  func.func @transform_0(%arg0: i32) -> (i32, i32, i32) {
    %c0_i32 = arith.constant 0 : i32
    %c0_i32_0 = arith.constant 0 : i32
    %c0_i32_1 = arith.constant 0 : i32
    return %arg0, %c0_i32, %c0_i32_0 : i32, i32, i32
  }
  func.func @transform_1(%arg0: i32) -> (i32, i32) {
    %c0_i32 = arith.constant 0 : i32
    %c0_i32_0 = arith.constant 0 : i32
    %c0_i32_1 = arith.constant 0 : i32
    return %c0_i32, %c0_i32_0 : i32, i32
  }
  func.func @transform_2(%arg0: i32) -> (i32, i32) {
    %c0_i32 = arith.constant 0 : i32
    %c0_i32_0 = arith.constant 0 : i32
    %c0_i32_1 = arith.constant 0 : i32
    return %c0_i32, %c0_i32_0 : i32, i32
  }
  func.func @transform_3(%arg0: i32) -> (i32, i32) {
    %c0_i32 = arith.constant 0 : i32
    %c0_i32_0 = arith.constant 0 : i32
    %c0_i32_1 = arith.constant 0 : i32
    return %c0_i32, %c0_i32_0 : i32, i32
  }
  func.func @transform_4(%arg0: i32) -> (i32, i32) {
    %c0_i32 = arith.constant 0 : i32
    %c0_i32_0 = arith.constant 0 : i32
    %c0_i32_1 = arith.constant 0 : i32
    return %c0_i32, %c0_i32_0 : i32, i32
  }
  func.func @transform_5(%arg0: i32) -> (i32, i32) {
    %c0_i32 = arith.constant 0 : i32
    %c0_i32_0 = arith.constant 0 : i32
    %c0_i32_1 = arith.constant 0 : i32
    return %c0_i32, %c0_i32_0 : i32, i32
  }
  func.func @transform_6(%arg0: i32) -> (i32, i32) {
    %c0_i32 = arith.constant 0 : i32
    %c0_i32_0 = arith.constant 0 : i32
    %c0_i32_1 = arith.constant 0 : i32
    return %c0_i32, %c0_i32_0 : i32, i32
  }
  func.func @transform_7(%arg0: i32) -> (i32, i32) {
    %c0_i32 = arith.constant 0 : i32
    %c0_i32_0 = arith.constant 0 : i32
    %c0_i32_1 = arith.constant 0 : i32
    return %c0_i32, %c0_i32_0 : i32, i32
  }
  func.func @transform_8(%arg0: i32) -> (i32, i32) {
    %c0_i32 = arith.constant 0 : i32
    %c0_i32_0 = arith.constant 0 : i32
    %c0_i32_1 = arith.constant 0 : i32
    return %c0_i32, %c0_i32_0 : i32, i32
  }
  func.func @transform_9(%arg0: i32) -> (i32, i32) {
    %c0_i32 = arith.constant 0 : i32
    %c0_i32_0 = arith.constant 0 : i32
    %c0_i32_1 = arith.constant 0 : i32
    return %c0_i32, %c0_i32_0 : i32, i32
  }
  func.func @transform_10(%arg0: i32) -> (i32, i32) {
    %c0_i32 = arith.constant 0 : i32
    %c0_i32_0 = arith.constant 0 : i32
    %c0_i32_1 = arith.constant 0 : i32
    return %c0_i32, %c0_i32_0 : i32, i32
  }
  func.func @transform_11(%arg0: i32) -> (i32, i32) {
    %c0_i32 = arith.constant 0 : i32
    %c0_i32_0 = arith.constant 0 : i32
    %c0_i32_1 = arith.constant 0 : i32
    return %c0_i32, %c0_i32_0 : i32, i32
  }
  func.func @transform_12(%arg0: i32) -> (i32, i32) {
    %c0_i32 = arith.constant 0 : i32
    %c0_i32_0 = arith.constant 0 : i32
    %c0_i32_1 = arith.constant 0 : i32
    return %c0_i32, %c0_i32_0 : i32, i32
  }
  func.func @transform_13(%arg0: i32) -> (i32, i32) {
    %c0_i32 = arith.constant 0 : i32
    %c0_i32_0 = arith.constant 0 : i32
    %c0_i32_1 = arith.constant 0 : i32
    return %c0_i32, %c0_i32_0 : i32, i32
  }
  func.func @transform_14(%arg0: i32) -> (i32, i32) {
    %c0_i32 = arith.constant 0 : i32
    %c0_i32_0 = arith.constant 0 : i32
    %c0_i32_1 = arith.constant 0 : i32
    return %c0_i32, %c0_i32_0 : i32, i32
  }
  func.func @transform_15(%arg0: i32) -> (i32, i32) {
    %c0_i32 = arith.constant 0 : i32
    %c0_i32_0 = arith.constant 0 : i32
    %c0_i32_1 = arith.constant 0 : i32
    return %c0_i32, %c0_i32_0 : i32, i32
  }
  func.func @transform_16(%arg0: i32) -> (i32, i32) {
    %c0_i32 = arith.constant 0 : i32
    %c0_i32_0 = arith.constant 0 : i32
    %c0_i32_1 = arith.constant 0 : i32
    return %c0_i32, %c0_i32_0 : i32, i32
  }
  func.func @transform_17(%arg0: i32) -> (i32, i32) {
    %c0_i32 = arith.constant 0 : i32
    %c0_i32_0 = arith.constant 0 : i32
    %c0_i32_1 = arith.constant 0 : i32
    return %c0_i32, %c0_i32_0 : i32, i32
  }
  func.func @transform_18(%arg0: i32) -> (i32, i32) {
    %c0_i32 = arith.constant 0 : i32
    %c0_i32_0 = arith.constant 0 : i32
    %c0_i32_1 = arith.constant 0 : i32
    return %c0_i32, %c0_i32_0 : i32, i32
  }
  func.func @transform_19(%arg0: i32) -> (i32, i32) {
    %c0_i32 = arith.constant 0 : i32
    %c0_i32_0 = arith.constant 0 : i32
    %c0_i32_1 = arith.constant 0 : i32
    return %c0_i32, %c0_i32_0 : i32, i32
  }
  func.func @transform_20(%arg0: i32) -> (i32, i32) {
    %c0_i32 = arith.constant 0 : i32
    %c0_i32_0 = arith.constant 0 : i32
    %c0_i32_1 = arith.constant 0 : i32
    return %c0_i32, %c0_i32_0 : i32, i32
  }
  func.func @transform_21(%arg0: i32) -> (i32, i32) {
    %c0_i32 = arith.constant 0 : i32
    %c0_i32_0 = arith.constant 0 : i32
    %c0_i32_1 = arith.constant 0 : i32
    return %c0_i32, %c0_i32_0 : i32, i32
  }
  func.func @transform_22(%arg0: i32) -> (i32, i32) {
    %c0_i32 = arith.constant 0 : i32
    %c0_i32_0 = arith.constant 0 : i32
    %c0_i32_1 = arith.constant 0 : i32
    return %c0_i32, %c0_i32_0 : i32, i32
  }
  func.func @transform_23(%arg0: i32) -> (i32, i32) {
    %c0_i32 = arith.constant 0 : i32
    %c0_i32_0 = arith.constant 0 : i32
    %c0_i32_1 = arith.constant 0 : i32
    return %c0_i32, %c0_i32_0 : i32, i32
  }
  func.func @transform_24(%arg0: i32) -> (i32, i32) {
    %c0_i32 = arith.constant 0 : i32
    %c0_i32_0 = arith.constant 0 : i32
    %c0_i32_1 = arith.constant 0 : i32
    return %c0_i32, %c0_i32_0 : i32, i32
  }
  func.func @transform_25(%arg0: i32) -> (i32, i32) {
    %c0_i32 = arith.constant 0 : i32
    %c0_i32_0 = arith.constant 0 : i32
    %c0_i32_1 = arith.constant 0 : i32
    return %c0_i32, %c0_i32_0 : i32, i32
  }
  func.func @transform_26(%arg0: i32) -> (i32, i32) {
    %c0_i32 = arith.constant 0 : i32
    %c0_i32_0 = arith.constant 0 : i32
    %c0_i32_1 = arith.constant 0 : i32
    return %c0_i32, %c0_i32_0 : i32, i32
  }
  func.func @transform_27(%arg0: i32) -> (i32, i32) {
    %c0_i32 = arith.constant 0 : i32
    %c0_i32_0 = arith.constant 0 : i32
    %c0_i32_1 = arith.constant 0 : i32
    return %c0_i32, %c0_i32_0 : i32, i32
  }
  func.func @transform_28(%arg0: i32) -> (i32, i32) {
    %c0_i32 = arith.constant 0 : i32
    %c0_i32_0 = arith.constant 0 : i32
    %c0_i32_1 = arith.constant 0 : i32
    return %c0_i32, %c0_i32_0 : i32, i32
  }
  func.func @transform_29(%arg0: i32) -> (i32, i32) {
    %c0_i32 = arith.constant 0 : i32
    %c0_i32_0 = arith.constant 0 : i32
    %c0_i32_1 = arith.constant 0 : i32
    return %c0_i32, %c0_i32_0 : i32, i32
  }
  func.func @transform_30(%arg0: i32) -> (i32, i32) {
    %c0_i32 = arith.constant 0 : i32
    %c0_i32_0 = arith.constant 0 : i32
    %c0_i32_1 = arith.constant 0 : i32
    return %c0_i32, %c0_i32_0 : i32, i32
  }
  func.func @transform_31(%arg0: i32) -> (i32, i32) {
    %c0_i32 = arith.constant 0 : i32
    %c0_i32_0 = arith.constant 0 : i32
    %c0_i32_1 = arith.constant 0 : i32
    return %c0_i32, %c0_i32_0 : i32, i32
  }
  func.func @transform_32(%arg0: i32) -> (i32, i32) {
    %c0_i32 = arith.constant 0 : i32
    %c0_i32_0 = arith.constant 0 : i32
    %c0_i32_1 = arith.constant 0 : i32
    return %c0_i32, %c0_i32_0 : i32, i32
  }
  func.func @transform_33(%arg0: i32) -> (i32, i32) {
    %c0_i32 = arith.constant 0 : i32
    %c0_i32_0 = arith.constant 0 : i32
    %c0_i32_1 = arith.constant 0 : i32
    return %c0_i32, %c0_i32_0 : i32, i32
  }
  func.func @transform_34(%arg0: i32) -> (i32, i32) {
    %c0_i32 = arith.constant 0 : i32
    %c0_i32_0 = arith.constant 0 : i32
    %c0_i32_1 = arith.constant 0 : i32
    return %c0_i32, %c0_i32_0 : i32, i32
  }
  func.func @transform_35(%arg0: i32) -> (i32, i32) {
    %c0_i32 = arith.constant 0 : i32
    %c0_i32_0 = arith.constant 0 : i32
    %c0_i32_1 = arith.constant 0 : i32
    return %c0_i32, %c0_i32_0 : i32, i32
  }
  func.func @transform_36(%arg0: i32) -> (i32, i32) {
    %c0_i32 = arith.constant 0 : i32
    %c0_i32_0 = arith.constant 0 : i32
    %c0_i32_1 = arith.constant 0 : i32
    return %c0_i32, %c0_i32_0 : i32, i32
  }
  func.func @transform_37(%arg0: i32) -> (i32, i32, i32) {
    %c0_i32 = arith.constant 0 : i32
    %c0_i32_0 = arith.constant 0 : i32
    %c0_i32_1 = arith.constant 0 : i32
    return %arg0, %c0_i32, %c0_i32_0 : i32, i32, i32
  }
}

</mosaic_0001>

<llo_original>
// kernel: tpu_custom_call.1
$region0: #{tpu_custom_call.1}
  #allocation0 [shape = 'u32[]', space=smem, size = 0x4, offset = 0x4, fixed_abs, tag = 'smem constant byte address 0x4 - core index']
  #allocation1 [shape = 'u32[144,128]{1,0:T(1,128)}', space=vmem, size = 0x12000, scoped, tag = 'internal scratch']
  %s0 = inlined_call_operand.smem [shape: u32[38], index: -1, kind: input, shape index: {}]
  %s1 = sld [smem:[%s0]]
  %s2 = scalar_lea.smem %s0, 1
  %s3 = sld [smem:[%s2]]
  %s4 = scalar_lea.smem %s0, 2
  %s5 = sld [smem:[%s4]]
  %s6 = scalar_lea.smem %s0, 3
  %s7 = sld [smem:[%s6]]
  %s8 = scalar_lea.smem %s0, 4
  %s9 = sld [smem:[%s8]]
  %s10 = scalar_lea.smem %s0, 5
  %s11 = sld [smem:[%s10]]
  %s12 = scalar_lea.smem %s0, 6
  %s13 = sld [smem:[%s12]]
  %s14 = scalar_lea.smem %s0, 7
  %s15 = sld [smem:[%s14]]
  %s16 = scalar_lea.smem %s0, 8
  %s17 = sld [smem:[%s16]]
  %s18 = scalar_lea.smem %s0, 9
  %s19 = sld [smem:[%s18]]
  %s20 = scalar_lea.smem %s0, 10
  %s21 = sld [smem:[%s20]]
  %s22 = scalar_lea.smem %s0, 11
  %s23 = sld [smem:[%s22]]
  %s24 = scalar_lea.smem %s0, 12
  %s25 = sld [smem:[%s24]]
  %s26 = scalar_lea.smem %s0, 13
  %s27 = sld [smem:[%s26]]
  %s28 = scalar_lea.smem %s0, 14
  %s29 = sld [smem:[%s28]]
  %s30 = scalar_lea.smem %s0, 15
  %s31 = sld [smem:[%s30]]
  %s32 = scalar_lea.smem %s0, 16
  %s33 = sld [smem:[%s32]]
  %s34 = scalar_lea.smem %s0, 17
  %s35 = sld [smem:[%s34]]
  %s36 = scalar_lea.smem %s0, 18
  %s37 = sld [smem:[%s36]]
  %s38 = scalar_lea.smem %s0, 19
  %s39 = sld [smem:[%s38]]
  %s40 = scalar_lea.smem %s0, 20
  %s41 = sld [smem:[%s40]]
  %s42 = scalar_lea.smem %s0, 21
  %s43 = sld [smem:[%s42]]
  %s44 = scalar_lea.smem %s0, 22
  %s45 = sld [smem:[%s44]]
  %s46 = scalar_lea.smem %s0, 23
  %s47 = sld [smem:[%s46]]
  %s48 = scalar_lea.smem %s0, 24
  %s49 = sld [smem:[%s48]]
  %s50 = scalar_lea.smem %s0, 25
  %s51 = sld [smem:[%s50]]
  %s52 = scalar_lea.smem %s0, 26
  %s53 = sld [smem:[%s52]]
  %s54 = scalar_lea.smem %s0, 27
  %s55 = sld [smem:[%s54]]
  %s56 = scalar_lea.smem %s0, 28
  %s57 = sld [smem:[%s56]]
  %s58 = scalar_lea.smem %s0, 29
  %s59 = sld [smem:[%s58]]
  %s60 = scalar_lea.smem %s0, 30
  %s61 = sld [smem:[%s60]]
  %s62 = scalar_lea.smem %s0, 31
  %s63 = sld [smem:[%s62]]
  %s64 = scalar_lea.smem %s0, 32
  %s65 = sld [smem:[%s64]]
  %s66 = scalar_lea.smem %s0, 33
  %s67 = sld [smem:[%s66]]
  %s68 = scalar_lea.smem %s0, 34
  %s69 = sld [smem:[%s68]]
  %s70 = scalar_lea.smem %s0, 35
  %s71 = sld [smem:[%s70]]
  %s72 = scalar_lea.smem %s0, 36
  %s73 = sld [smem:[%s72]]
  %s74 = scalar_lea.smem %s0, 37
  %s75 = sld [smem:[%s74]]
  %s76 = sld [smem:[#allocation0]]
  $region181: #{tpu_custom_call.1} parent=0
    _
  %s78 = ssub.s32 1, %s76
  %s79 = scalar_select 0, %s78, %s76
  $region1: #{tpu_custom_call.1} parent=0
    #allocation2 [shape = 'u8[32768]{0}', space=vmem, size = 0x8000, scoped, tag = 'output window, operand 0']
    #allocation3 [shape = 's32[2]{0}', space=sflag, size = 0x8, scoped, tag = 'scoped memory for tpu_custom_call.1']
    %80 = vsyncpa [#allocation3], 0
    %s81 = scalar_lea.sflag [#allocation3], 1
    %82 = vsyncpa %s81, 0
    loop: start=0, step=1, limit=4
    $region2: #{tpu_custom_call.1} parent=1 // loop_pre_header
      _
    $region3: #{tpu_custom_call.1} parent=1 // loop_header
      %s84 = sphi 0, %s88
      %p85 = scmp.ge.s32.totalorder %s84, 4
      %s94 = sphi 0, %s96
      %s97 = sphi 0, %s94
      %s98 = sphi 0, %s97
      %s114 = sphi 0, %s98
      %s118 = sphi 0, %s118
      %s120 = sphi 0, %s118
      %s121 = sphi 0, %s120
      %s135 = sphi 0, %s121
      %s139 = sphi 0, %s139
      %s141 = sphi 0, %s139
      %s142 = sphi 0, %s141
      %s156 = sphi 0, %s142
      %s160 = sphi 0, %s160
      %s162 = sphi 0, %s160
      %s163 = sphi 0, %s162
      %s177 = sphi 0, %s163
      %s181 = sphi 0, %s181
      %s183 = sphi 0, %s181
      %s184 = sphi 0, %s183
      %s198 = sphi 0, %s184
      %s202 = sphi 0, %s202
      %s204 = sphi 0, %s202
      %s205 = sphi 0, %s204
      %s219 = sphi 0, %s205
      %s223 = sphi 0, %s223
      %s225 = sphi 0, %s223
      %s226 = sphi 0, %s225
      %s240 = sphi 0, %s226
      %s244 = sphi 0, %s244
      %s246 = sphi 0, %s244
      %s247 = sphi 0, %s246
      %s261 = sphi 0, %s247
      %s265 = sphi 0, %s265
      %s267 = sphi 0, %s265
      %s268 = sphi 0, %s267
      %s282 = sphi 0, %s268
      %s286 = sphi 0, %s286
      %s288 = sphi 0, %s286
      %s289 = sphi 0, %s288
      %s303 = sphi 0, %s289
      %s307 = sphi 0, %s307
      %s309 = sphi 0, %s307
      %s310 = sphi 0, %s309
      %s324 = sphi 0, %s310
      %s328 = sphi 0, %s328
      %s330 = sphi 0, %s328
      %s331 = sphi 0, %s330
      %s345 = sphi 0, %s331
      %s349 = sphi 0, %s349
      %s351 = sphi 0, %s349
      %s352 = sphi 0, %s351
      %s366 = sphi 0, %s352
      %s370 = sphi 0, %s370
      %s372 = sphi 0, %s370
      %s373 = sphi 0, %s372
      %s387 = sphi 0, %s373
      %s391 = sphi 0, %s391
      %s393 = sphi 0, %s391
      %s394 = sphi 0, %s393
      %s408 = sphi 0, %s394
      %s412 = sphi 0, %s412
      %s414 = sphi 0, %s412
      %s415 = sphi 0, %s414
      %s429 = sphi 0, %s415
      %s433 = sphi 0, %s433
      %s435 = sphi 0, %s433
      %s436 = sphi 0, %s435
      %s450 = sphi 0, %s436
      %s454 = sphi 0, %s454
      %s456 = sphi 0, %s454
      %s457 = sphi 0, %s456
      %s471 = sphi 0, %s457
      %s475 = sphi 0, %s475
      %s477 = sphi 0, %s475
      %s478 = sphi 0, %s477
      %s492 = sphi 0, %s478
      %s496 = sphi 0, %s496
      %s498 = sphi 0, %s496
      %s499 = sphi 0, %s498
      %s513 = sphi 0, %s499
      %s517 = sphi 0, %s517
      %s519 = sphi 0, %s517
      %s520 = sphi 0, %s519
      %s534 = sphi 0, %s520
      %s538 = sphi 0, %s538
      %s540 = sphi 0, %s538
      %s541 = sphi 0, %s540
      %s555 = sphi 0, %s541
      %s559 = sphi 0, %s559
      %s561 = sphi 0, %s559
      %s562 = sphi 0, %s561
      %s576 = sphi 0, %s562
      %s580 = sphi 0, %s580
      %s582 = sphi 0, %s580
      %s583 = sphi 0, %s582
      %s597 = sphi 0, %s583
      %s601 = sphi 0, %s601
      %s603 = sphi 0, %s601
      %s604 = sphi 0, %s603
      %s618 = sphi 0, %s604
      %s622 = sphi 0, %s622
      %s624 = sphi 0, %s622
      %s625 = sphi 0, %s624
      %s639 = sphi 0, %s625
      %s643 = sphi 0, %s643
      %s645 = sphi 0, %s643
      %s646 = sphi 0, %s645
      %s660 = sphi 0, %s646
      %s664 = sphi 0, %s664
      %s666 = sphi 0, %s664
      %s667 = sphi 0, %s666
      %s681 = sphi 0, %s667
      %s685 = sphi 0, %s685
      %s687 = sphi 0, %s685
      %s688 = sphi 0, %s687
      %s702 = sphi 0, %s688
      %s706 = sphi 0, %s706
      %s708 = sphi 0, %s706
      %s709 = sphi 0, %s708
      %s723 = sphi 0, %s709
      %s727 = sphi 0, %s727
      %s729 = sphi 0, %s727
      %s730 = sphi 0, %s729
      %s744 = sphi 0, %s730
      %s748 = sphi 0, %s748
      %s750 = sphi 0, %s748
      %s751 = sphi 0, %s750
      %s765 = sphi 0, %s751
      %s769 = sphi 0, %s769
      %s771 = sphi 0, %s769
      %s772 = sphi 0, %s771
      %s786 = sphi 0, %s772
      %s790 = sphi 0, %s790
      %s792 = sphi 0, %s790
      %s793 = sphi 0, %s792
      %s807 = sphi 0, %s793
      %s811 = sphi 0, %s811
      %s813 = sphi 0, %s811
      %s814 = sphi 0, %s813
      %s828 = sphi 0, %s814
      %s832 = sphi 0, %s832
      %s834 = sphi 0, %s832
      %s835 = sphi 0, %s834
      %s849 = sphi 0, %s835
      %s853 = sphi 0, %s853
      %s855 = sphi 0, %s853
      %s856 = sphi 0, %s855
      %s870 = sphi 0, %s856
      %s876 = sphi 0, %s878
      %s879 = sphi 0, %s876
      %s880 = sphi 0, %s879
      %s896 = sphi 0, %s880
    $region4: #{tpu_custom_call.1} parent=1 // loop_header_branch
      %87 = sbr.rel (%p85) target = $region8
    $region5: #{tpu_custom_call.1} parent=1 // loop_body
      %s89 = ssub.s32 %s84, 1
      %s90 = ssub.s32 %s84, 2
      %s91 = sadd.s32 %s84, 1
      %s92 = ssub.s32 %s84, %s91
      %p93 = scmp.eq.s32.totalorder %s92, 0
      %s95 = sadd.s32 %s94, 1
      %s96 = scalar_select %p93, %s94, %s95
      %p99 = pneg %p93
      %p100 = scmp.eq.s32.totalorder %s84, 1
      %p101 = por %p99, %p100
      %p102 = scmp.ne.s32.totalorder %s94, %s97
      %p103 = scmp.eq.s32.totalorder %s84, 0
      %p104 = por %p102, %p103
      %p105 = scmp.ne.s32.totalorder %s94, %s97
      %p106 = scmp.eq.s32.totalorder %s89, 1
      %p107 = por %p105, %p106
      %p108 = scmp.ne.s32.totalorder %s97, %s98
      %p109 = scmp.eq.s32.totalorder %s89, 0
      %p110 = por %p108, %p109
      %p111 = scmp.ne.s32.totalorder %s97, %s98
      %p112 = scmp.eq.s32.totalorder %s90, 1
      %p113 = por %p111, %p112
      %p115 = scmp.ne.s32.totalorder %s98, %s114
      %p116 = scmp.eq.s32.totalorder %s90, 0
      %p117 = por %p115, %p116
      %s119 = sadd.s32 %s118, 1
      %p122 = scmp.eq.s32.totalorder %s84, 1
      %p123 = scmp.ne.s32.totalorder %s118, %s120
      %p124 = scmp.eq.s32.totalorder %s84, 0
      %p125 = por %p123, %p124
      %p126 = scmp.ne.s32.totalorder %s118, %s120
      %p127 = scmp.eq.s32.totalorder %s89, 1
      %p128 = por %p126, %p127
      %p129 = scmp.ne.s32.totalorder %s120, %s121
      %p130 = scmp.eq.s32.totalorder %s89, 0
      %p131 = por %p129, %p130
      %p132 = scmp.ne.s32.totalorder %s120, %s121
      %p133 = scmp.eq.s32.totalorder %s90, 1
      %p134 = por %p132, %p133
      %p136 = scmp.ne.s32.totalorder %s121, %s135
      %p137 = scmp.eq.s32.totalorder %s90, 0
      %p138 = por %p136, %p137
      %s140 = sadd.s32 %s139, 1
      %p143 = scmp.eq.s32.totalorder %s84, 1
      %p144 = scmp.ne.s32.totalorder %s139, %s141
      %p145 = scmp.eq.s32.totalorder %s84, 0
      %p146 = por %p144, %p145
      %p147 = scmp.ne.s32.totalorder %s139, %s141
      %p148 = scmp.eq.s32.totalorder %s89, 1
      %p149 = por %p147, %p148
      %p150 = scmp.ne.s32.totalorder %s141, %s142
      %p151 = scmp.eq.s32.totalorder %s89, 0
      %p152 = por %p150, %p151
      %p153 = scmp.ne.s32.totalorder %s141, %s142
      %p154 = scmp.eq.s32.totalorder %s90, 1
      %p155 = por %p153, %p154
      %p157 = scmp.ne.s32.totalorder %s142, %s156
      %p158 = scmp.eq.s32.totalorder %s90, 0
      %p159 = por %p157, %p158
      %s161 = sadd.s32 %s160, 1
      %p164 = scmp.eq.s32.totalorder %s84, 1
      %p165 = scmp.ne.s32.totalorder %s160, %s162
      %p166 = scmp.eq.s32.totalorder %s84, 0
      %p167 = por %p165, %p166
      %p168 = scmp.ne.s32.totalorder %s160, %s162
      %p169 = scmp.eq.s32.totalorder %s89, 1
      %p170 = por %p168, %p169
      %p171 = scmp.ne.s32.totalorder %s162, %s163
      %p172 = scmp.eq.s32.totalorder %s89, 0
      %p173 = por %p171, %p172
      %p174 = scmp.ne.s32.totalorder %s162, %s163
      %p175 = scmp.eq.s32.totalorder %s90, 1
      %p176 = por %p174, %p175
      %p178 = scmp.ne.s32.totalorder %s163, %s177
      %p179 = scmp.eq.s32.totalorder %s90, 0
      %p180 = por %p178, %p179
      %s182 = sadd.s32 %s181, 1
      %p185 = scmp.eq.s32.totalorder %s84, 1
      %p186 = scmp.ne.s32.totalorder %s181, %s183
      %p187 = scmp.eq.s32.totalorder %s84, 0
      %p188 = por %p186, %p187
      %p189 = scmp.ne.s32.totalorder %s181, %s183
      %p190 = scmp.eq.s32.totalorder %s89, 1
      %p191 = por %p189, %p190
      %p192 = scmp.ne.s32.totalorder %s183, %s184
      %p193 = scmp.eq.s32.totalorder %s89, 0
      %p194 = por %p192, %p193
      %p195 = scmp.ne.s32.totalorder %s183, %s184
      %p196 = scmp.eq.s32.totalorder %s90, 1
      %p197 = por %p195, %p196
      %p199 = scmp.ne.s32.totalorder %s184, %s198
      %p200 = scmp.eq.s32.totalorder %s90, 0
      %p201 = por %p199, %p200
      %s203 = sadd.s32 %s202, 1
      %p206 = scmp.eq.s32.totalorder %s84, 1
      %p207 = scmp.ne.s32.totalorder %s202, %s204
      %p208 = scmp.eq.s32.totalorder %s84, 0
      %p209 = por %p207, %p208
      %p210 = scmp.ne.s32.totalorder %s202, %s204
      %p211 = scmp.eq.s32.totalorder %s89, 1
      %p212 = por %p210, %p211
      %p213 = scmp.ne.s32.totalorder %s204, %s205
      %p214 = scmp.eq.s32.totalorder %s89, 0
      %p215 = por %p213, %p214
      %p216 = scmp.ne.s32.totalorder %s204, %s205
      %p217 = scmp.eq.s32.totalorder %s90, 1
      %p218 = por %p216, %p217
      %p220 = scmp.ne.s32.totalorder %s205, %s219
      %p221 = scmp.eq.s32.totalorder %s90, 0
      %p222 = por %p220, %p221
      %s224 = sadd.s32 %s223, 1
      %p227 = scmp.eq.s32.totalorder %s84, 1
      %p228 = scmp.ne.s32.totalorder %s223, %s225
      %p229 = scmp.eq.s32.totalorder %s84, 0
      %p230 = por %p228, %p229
      %p231 = scmp.ne.s32.totalorder %s223, %s225
      %p232 = scmp.eq.s32.totalorder %s89, 1
      %p233 = por %p231, %p232
      %p234 = scmp.ne.s32.totalorder %s225, %s226
      %p235 = scmp.eq.s32.totalorder %s89, 0
      %p236 = por %p234, %p235
      %p237 = scmp.ne.s32.totalorder %s225, %s226
      %p238 = scmp.eq.s32.totalorder %s90, 1
      %p239 = por %p237, %p238
      %p241 = scmp.ne.s32.totalorder %s226, %s240
      %p242 = scmp.eq.s32.totalorder %s90, 0
      %p243 = por %p241, %p242
      %s245 = sadd.s32 %s244, 1
      %p248 = scmp.eq.s32.totalorder %s84, 1
      %p249 = scmp.ne.s32.totalorder %s244, %s246
      %p250 = scmp.eq.s32.totalorder %s84, 0
      %p251 = por %p249, %p250
      %p252 = scmp.ne.s32.totalorder %s244, %s246
      %p253 = scmp.eq.s32.totalorder %s89, 1
      %p254 = por %p252, %p253
      %p255 = scmp.ne.s32.totalorder %s246, %s247
      %p256 = scmp.eq.s32.totalorder %s89, 0
      %p257 = por %p255, %p256
      %p258 = scmp.ne.s32.totalorder %s246, %s247
      %p259 = scmp.eq.s32.totalorder %s90, 1
      %p260 = por %p258, %p259
      %p262 = scmp.ne.s32.totalorder %s247, %s261
      %p263 = scmp.eq.s32.totalorder %s90, 0
      %p264 = por %p262, %p263
      %s266 = sadd.s32 %s265, 1
      %p269 = scmp.eq.s32.totalorder %s84, 1
      %p270 = scmp.ne.s32.totalorder %s265, %s267
      %p271 = scmp.eq.s32.totalorder %s84, 0
      %p272 = por %p270, %p271
      %p273 = scmp.ne.s32.totalorder %s265, %s267
      %p274 = scmp.eq.s32.totalorder %s89, 1
      %p275 = por %p273, %p274
      %p276 = scmp.ne.s32.totalorder %s267, %s268
      %p277 = scmp.eq.s32.totalorder %s89, 0
      %p278 = por %p276, %p277
      %p279 = scmp.ne.s32.totalorder %s267, %s268
      %p280 = scmp.eq.s32.totalorder %s90, 1
      %p281 = por %p279, %p280
      %p283 = scmp.ne.s32.totalorder %s268, %s282
      %p284 = scmp.eq.s32.totalorder %s90, 0
      %p285 = por %p283, %p284
      %s287 = sadd.s32 %s286, 1
      %p290 = scmp.eq.s32.totalorder %s84, 1
      %p291 = scmp.ne.s32.totalorder %s286, %s288
      %p292 = scmp.eq.s32.totalorder %s84, 0
      %p293 = por %p291, %p292
      %p294 = scmp.ne.s32.totalorder %s286, %s288
      %p295 = scmp.eq.s32.totalorder %s89, 1
      %p296 = por %p294, %p295
      %p297 = scmp.ne.s32.totalorder %s288, %s289
      %p298 = scmp.eq.s32.totalorder %s89, 0
      %p299 = por %p297, %p298
      %p300 = scmp.ne.s32.totalorder %s288, %s289
      %p301 = scmp.eq.s32.totalorder %s90, 1
      %p302 = por %p300, %p301
      %p304 = scmp.ne.s32.totalorder %s289, %s303
      %p305 = scmp.eq.s32.totalorder %s90, 0
      %p306 = por %p304, %p305
      %s308 = sadd.s32 %s307, 1
      %p311 = scmp.eq.s32.totalorder %s84, 1
      %p312 = scmp.ne.s32.totalorder %s307, %s309
      %p313 = scmp.eq.s32.totalorder %s84, 0
      %p314 = por %p312, %p313
      %p315 = scmp.ne.s32.totalorder %s307, %s309
      %p316 = scmp.eq.s32.totalorder %s89, 1
      %p317 = por %p315, %p316
      %p318 = scmp.ne.s32.totalorder %s309, %s310
      %p319 = scmp.eq.s32.totalorder %s89, 0
      %p320 = por %p318, %p319
      %p321 = scmp.ne.s32.totalorder %s309, %s310
      %p322 = scmp.eq.s32.totalorder %s90, 1
      %p323 = por %p321, %p322
      %p325 = scmp.ne.s32.totalorder %s310, %s324
      %p326 = scmp.eq.s32.totalorder %s90, 0
      %p327 = por %p325, %p326
      %s329 = sadd.s32 %s328, 1
      %p332 = scmp.eq.s32.totalorder %s84, 1
      %p333 = scmp.ne.s32.totalorder %s328, %s330
      %p334 = scmp.eq.s32.totalorder %s84, 0
      %p335 = por %p333, %p334
      %p336 = scmp.ne.s32.totalorder %s328, %s330
      %p337 = scmp.eq.s32.totalorder %s89, 1
      %p338 = por %p336, %p337
      %p339 = scmp.ne.s32.totalorder %s330, %s331
      %p340 = scmp.eq.s32.totalorder %s89, 0
      %p341 = por %p339, %p340
      %p342 = scmp.ne.s32.totalorder %s330, %s331
      %p343 = scmp.eq.s32.totalorder %s90, 1
      %p344 = por %p342, %p343
      %p346 = scmp.ne.s32.totalorder %s331, %s345
      %p347 = scmp.eq.s32.totalorder %s90, 0
      %p348 = por %p346, %p347
      %s350 = sadd.s32 %s349, 1
      %p353 = scmp.eq.s32.totalorder %s84, 1
      %p354 = scmp.ne.s32.totalorder %s349, %s351
      %p355 = scmp.eq.s32.totalorder %s84, 0
      %p356 = por %p354, %p355
      %p357 = scmp.ne.s32.totalorder %s349, %s351
      %p358 = scmp.eq.s32.totalorder %s89, 1
      %p359 = por %p357, %p358
      %p360 = scmp.ne.s32.totalorder %s351, %s352
      %p361 = scmp.eq.s32.totalorder %s89, 0
      %p362 = por %p360, %p361
      %p363 = scmp.ne.s32.totalorder %s351, %s352
      %p364 = scmp.eq.s32.totalorder %s90, 1
      %p365 = por %p363, %p364
      %p367 = scmp.ne.s32.totalorder %s352, %s366
      %p368 = scmp.eq.s32.totalorder %s90, 0
      %p369 = por %p367, %p368
      %s371 = sadd.s32 %s370, 1
      %p374 = scmp.eq.s32.totalorder %s84, 1
      %p375 = scmp.ne.s32.totalorder %s370, %s372
      %p376 = scmp.eq.s32.totalorder %s84, 0
      %p377 = por %p375, %p376
      %p378 = scmp.ne.s32.totalorder %s370, %s372
      %p379 = scmp.eq.s32.totalorder %s89, 1
      %p380 = por %p378, %p379
      %p381 = scmp.ne.s32.totalorder %s372, %s373
      %p382 = scmp.eq.s32.totalorder %s89, 0
      %p383 = por %p381, %p382
      %p384 = scmp.ne.s32.totalorder %s372, %s373
      %p385 = scmp.eq.s32.totalorder %s90, 1
      %p386 = por %p384, %p385
      %p388 = scmp.ne.s32.totalorder %s373, %s387
      %p389 = scmp.eq.s32.totalorder %s90, 0
      %p390 = por %p388, %p389
      %s392 = sadd.s32 %s391, 1
      %p395 = scmp.eq.s32.totalorder %s84, 1
      %p396 = scmp.ne.s32.totalorder %s391, %s393
      %p397 = scmp.eq.s32.totalorder %s84, 0
      %p398 = por %p396, %p397
      %p399 = scmp.ne.s32.totalorder %s391, %s393
      %p400 = scmp.eq.s32.totalorder %s89, 1
      %p401 = por %p399, %p400
      %p402 = scmp.ne.s32.totalorder %s393, %s394
      %p403 = scmp.eq.s32.totalorder %s89, 0
      %p404 = por %p402, %p403
      %p405 = scmp.ne.s32.totalorder %s393, %s394
      %p406 = scmp.eq.s32.totalorder %s90, 1
      %p407 = por %p405, %p406
      %p409 = scmp.ne.s32.totalorder %s394, %s408
      %p410 = scmp.eq.s32.totalorder %s90, 0
      %p411 = por %p409, %p410
      %s413 = sadd.s32 %s412, 1
      %p416 = scmp.eq.s32.totalorder %s84, 1
      %p417 = scmp.ne.s32.totalorder %s412, %s414
      %p418 = scmp.eq.s32.totalorder %s84, 0
      %p419 = por %p417, %p418
      %p420 = scmp.ne.s32.totalorder %s412, %s414
      %p421 = scmp.eq.s32.totalorder %s89, 1
      %p422 = por %p420, %p421
      %p423 = scmp.ne.s32.totalorder %s414, %s415
      %p424 = scmp.eq.s32.totalorder %s89, 0
      %p425 = por %p423, %p424
      %p426 = scmp.ne.s32.totalorder %s414, %s415
      %p427 = scmp.eq.s32.totalorder %s90, 1
      %p428 = por %p426, %p427
      %p430 = scmp.ne.s32.totalorder %s415, %s429
      %p431 = scmp.eq.s32.totalorder %s90, 0
      %p432 = por %p430, %p431
      %s434 = sadd.s32 %s433, 1
      %p437 = scmp.eq.s32.totalorder %s84, 1
      %p438 = scmp.ne.s32.totalorder %s433, %s435
      %p439 = scmp.eq.s32.totalorder %s84, 0
      %p440 = por %p438, %p439
      %p441 = scmp.ne.s32.totalorder %s433, %s435
      %p442 = scmp.eq.s32.totalorder %s89, 1
      %p443 = por %p441, %p442
      %p444 = scmp.ne.s32.totalorder %s435, %s436
      %p445 = scmp.eq.s32.totalorder %s89, 0
      %p446 = por %p444, %p445
      %p447 = scmp.ne.s32.totalorder %s435, %s436
      %p448 = scmp.eq.s32.totalorder %s90, 1
      %p449 = por %p447, %p448
      %p451 = scmp.ne.s32.totalorder %s436, %s450
      %p452 = scmp.eq.s32.totalorder %s90, 0
      %p453 = por %p451, %p452
      %s455 = sadd.s32 %s454, 1
      %p458 = scmp.eq.s32.totalorder %s84, 1
      %p459 = scmp.ne.s32.totalorder %s454, %s456
      %p460 = scmp.eq.s32.totalorder %s84, 0
      %p461 = por %p459, %p460
      %p462 = scmp.ne.s32.totalorder %s454, %s456
      %p463 = scmp.eq.s32.totalorder %s89, 1
      %p464 = por %p462, %p463
      %p465 = scmp.ne.s32.totalorder %s456, %s457
      %p466 = scmp.eq.s32.totalorder %s89, 0
      %p467 = por %p465, %p466
      %p468 = scmp.ne.s32.totalorder %s456, %s457
      %p469 = scmp.eq.s32.totalorder %s90, 1
      %p470 = por %p468, %p469
      %p472 = scmp.ne.s32.totalorder %s457, %s471
      %p473 = scmp.eq.s32.totalorder %s90, 0
      %p474 = por %p472, %p473
      %s476 = sadd.s32 %s475, 1
      %p479 = scmp.eq.s32.totalorder %s84, 1
      %p480 = scmp.ne.s32.totalorder %s475, %s477
      %p481 = scmp.eq.s32.totalorder %s84, 0
      %p482 = por %p480, %p481
      %p483 = scmp.ne.s32.totalorder %s475, %s477
      %p484 = scmp.eq.s32.totalorder %s89, 1
      %p485 = por %p483, %p484
      %p486 = scmp.ne.s32.totalorder %s477, %s478
      %p487 = scmp.eq.s32.totalorder %s89, 0
      %p488 = por %p486, %p487
      %p489 = scmp.ne.s32.totalorder %s477, %s478
      %p490 = scmp.eq.s32.totalorder %s90, 1
      %p491 = por %p489, %p490
      %p493 = scmp.ne.s32.totalorder %s478, %s492
      %p494 = scmp.eq.s32.totalorder %s90, 0
      %p495 = por %p493, %p494
      %s497 = sadd.s32 %s496, 1
      %p500 = scmp.eq.s32.totalorder %s84, 1
      %p501 = scmp.ne.s32.totalorder %s496, %s498
      %p502 = scmp.eq.s32.totalorder %s84, 0
      %p503 = por %p501, %p502
      %p504 = scmp.ne.s32.totalorder %s496, %s498
      %p505 = scmp.eq.s32.totalorder %s89, 1
      %p506 = por %p504, %p505
      %p507 = scmp.ne.s32.totalorder %s498, %s499
      %p508 = scmp.eq.s32.totalorder %s89, 0
      %p509 = por %p507, %p508
      %p510 = scmp.ne.s32.totalorder %s498, %s499
      %p511 = scmp.eq.s32.totalorder %s90, 1
      %p512 = por %p510, %p511
      %p514 = scmp.ne.s32.totalorder %s499, %s513
      %p515 = scmp.eq.s32.totalorder %s90, 0
      %p516 = por %p514, %p515
      %s518 = sadd.s32 %s517, 1
      %p521 = scmp.eq.s32.totalorder %s84, 1
      %p522 = scmp.ne.s32.totalorder %s517, %s519
      %p523 = scmp.eq.s32.totalorder %s84, 0
      %p524 = por %p522, %p523
      %p525 = scmp.ne.s32.totalorder %s517, %s519
      %p526 = scmp.eq.s32.totalorder %s89, 1
      %p527 = por %p525, %p526
      %p528 = scmp.ne.s32.totalorder %s519, %s520
      %p529 = scmp.eq.s32.totalorder %s89, 0
      %p530 = por %p528, %p529
      %p531 = scmp.ne.s32.totalorder %s519, %s520
      %p532 = scmp.eq.s32.totalorder %s90, 1
      %p533 = por %p531, %p532
      %p535 = scmp.ne.s32.totalorder %s520, %s534
      %p536 = scmp.eq.s32.totalorder %s90, 0
      %p537 = por %p535, %p536
      %s539 = sadd.s32 %s538, 1
      %p542 = scmp.eq.s32.totalorder %s84, 1
      %p543 = scmp.ne.s32.totalorder %s538, %s540
      %p544 = scmp.eq.s32.totalorder %s84, 0
      %p545 = por %p543, %p544
      %p546 = scmp.ne.s32.totalorder %s538, %s540
      %p547 = scmp.eq.s32.totalorder %s89, 1
      %p548 = por %p546, %p547
      %p549 = scmp.ne.s32.totalorder %s540, %s541
      %p550 = scmp.eq.s32.totalorder %s89, 0
      %p551 = por %p549, %p550
      %p552 = scmp.ne.s32.totalorder %s540, %s541
      %p553 = scmp.eq.s32.totalorder %s90, 1
      %p554 = por %p552, %p553
      %p556 = scmp.ne.s32.totalorder %s541, %s555
      %p557 = scmp.eq.s32.totalorder %s90, 0
      %p558 = por %p556, %p557
      %s560 = sadd.s32 %s559, 1
      %p563 = scmp.eq.s32.totalorder %s84, 1
      %p564 = scmp.ne.s32.totalorder %s559, %s561
      %p565 = scmp.eq.s32.totalorder %s84, 0
      %p566 = por %p564, %p565
      %p567 = scmp.ne.s32.totalorder %s559, %s561
      %p568 = scmp.eq.s32.totalorder %s89, 1
      %p569 = por %p567, %p568
      %p570 = scmp.ne.s32.totalorder %s561, %s562
      %p571 = scmp.eq.s32.totalorder %s89, 0
      %p572 = por %p570, %p571
      %p573 = scmp.ne.s32.totalorder %s561, %s562
      %p574 = scmp.eq.s32.totalorder %s90, 1
      %p575 = por %p573, %p574
      %p577 = scmp.ne.s32.totalorder %s562, %s576
      %p578 = scmp.eq.s32.totalorder %s90, 0
      %p579 = por %p577, %p578
      %s581 = sadd.s32 %s580, 1
      %p584 = scmp.eq.s32.totalorder %s84, 1
      %p585 = scmp.ne.s32.totalorder %s580, %s582
      %p586 = scmp.eq.s32.totalorder %s84, 0
      %p587 = por %p585, %p586
      %p588 = scmp.ne.s32.totalorder %s580, %s582
      %p589 = scmp.eq.s32.totalorder %s89, 1
      %p590 = por %p588, %p589
      %p591 = scmp.ne.s32.totalorder %s582, %s583
      %p592 = scmp.eq.s32.totalorder %s89, 0
      %p593 = por %p591, %p592
      %p594 = scmp.ne.s32.totalorder %s582, %s583
      %p595 = scmp.eq.s32.totalorder %s90, 1
      %p596 = por %p594, %p595
      %p598 = scmp.ne.s32.totalorder %s583, %s597
      %p599 = scmp.eq.s32.totalorder %s90, 0
      %p600 = por %p598, %p599
      %s602 = sadd.s32 %s601, 1
      %p605 = scmp.eq.s32.totalorder %s84, 1
      %p606 = scmp.ne.s32.totalorder %s601, %s603
      %p607 = scmp.eq.s32.totalorder %s84, 0
      %p608 = por %p606, %p607
      %p609 = scmp.ne.s32.totalorder %s601, %s603
      %p610 = scmp.eq.s32.totalorder %s89, 1
      %p611 = por %p609, %p610
      %p612 = scmp.ne.s32.totalorder %s603, %s604
      %p613 = scmp.eq.s32.totalorder %s89, 0
      %p614 = por %p612, %p613
      %p615 = scmp.ne.s32.totalorder %s603, %s604
      %p616 = scmp.eq.s32.totalorder %s90, 1
      %p617 = por %p615, %p616
      %p619 = scmp.ne.s32.totalorder %s604, %s618
      %p620 = scmp.eq.s32.totalorder %s90, 0
      %p621 = por %p619, %p620
      %s623 = sadd.s32 %s622, 1
      %p626 = scmp.eq.s32.totalorder %s84, 1
      %p627 = scmp.ne.s32.totalorder %s622, %s624
      %p628 = scmp.eq.s32.totalorder %s84, 0
      %p629 = por %p627, %p628
      %p630 = scmp.ne.s32.totalorder %s622, %s624
      %p631 = scmp.eq.s32.totalorder %s89, 1
      %p632 = por %p630, %p631
      %p633 = scmp.ne.s32.totalorder %s624, %s625
      %p634 = scmp.eq.s32.totalorder %s89, 0
      %p635 = por %p633, %p634
      %p636 = scmp.ne.s32.totalorder %s624, %s625
      %p637 = scmp.eq.s32.totalorder %s90, 1
      %p638 = por %p636, %p637
      %p640 = scmp.ne.s32.totalorder %s625, %s639
      %p641 = scmp.eq.s32.totalorder %s90, 0
      %p642 = por %p640, %p641
      %s644 = sadd.s32 %s643, 1
      %p647 = scmp.eq.s32.totalorder %s84, 1
      %p648 = scmp.ne.s32.totalorder %s643, %s645
      %p649 = scmp.eq.s32.totalorder %s84, 0
      %p650 = por %p648, %p649
      %p651 = scmp.ne.s32.totalorder %s643, %s645
      %p652 = scmp.eq.s32.totalorder %s89, 1
      %p653 = por %p651, %p652
      %p654 = scmp.ne.s32.totalorder %s645, %s646
      %p655 = scmp.eq.s32.totalorder %s89, 0
      %p656 = por %p654, %p655
      %p657 = scmp.ne.s32.totalorder %s645, %s646
      %p658 = scmp.eq.s32.totalorder %s90, 1
      %p659 = por %p657, %p658
      %p661 = scmp.ne.s32.totalorder %s646, %s660
      %p662 = scmp.eq.s32.totalorder %s90, 0
      %p663 = por %p661, %p662
      %s665 = sadd.s32 %s664, 1
      %p668 = scmp.eq.s32.totalorder %s84, 1
      %p669 = scmp.ne.s32.totalorder %s664, %s666
      %p670 = scmp.eq.s32.totalorder %s84, 0
      %p671 = por %p669, %p670
      %p672 = scmp.ne.s32.totalorder %s664, %s666
      %p673 = scmp.eq.s32.totalorder %s89, 1
      %p674 = por %p672, %p673
      %p675 = scmp.ne.s32.totalorder %s666, %s667
      %p676 = scmp.eq.s32.totalorder %s89, 0
      %p677 = por %p675, %p676
      %p678 = scmp.ne.s32.totalorder %s666, %s667
      %p679 = scmp.eq.s32.totalorder %s90, 1
      %p680 = por %p678, %p679
      %p682 = scmp.ne.s32.totalorder %s667, %s681
      %p683 = scmp.eq.s32.totalorder %s90, 0
      %p684 = por %p682, %p683
      %s686 = sadd.s32 %s685, 1
      %p689 = scmp.eq.s32.totalorder %s84, 1
      %p690 = scmp.ne.s32.totalorder %s685, %s687
      %p691 = scmp.eq.s32.totalorder %s84, 0
      %p692 = por %p690, %p691
      %p693 = scmp.ne.s32.totalorder %s685, %s687
      %p694 = scmp.eq.s32.totalorder %s89, 1
      %p695 = por %p693, %p694
      %p696 = scmp.ne.s32.totalorder %s687, %s688
      %p697 = scmp.eq.s32.totalorder %s89, 0
      %p698 = por %p696, %p697
      %p699 = scmp.ne.s32.totalorder %s687, %s688
      %p700 = scmp.eq.s32.totalorder %s90, 1
      %p701 = por %p699, %p700
      %p703 = scmp.ne.s32.totalorder %s688, %s702
      %p704 = scmp.eq.s32.totalorder %s90, 0
      %p705 = por %p703, %p704
      %s707 = sadd.s32 %s706, 1
      %p710 = scmp.eq.s32.totalorder %s84, 1
      %p711 = scmp.ne.s32.totalorder %s706, %s708
      %p712 = scmp.eq.s32.totalorder %s84, 0
      %p713 = por %p711, %p712
      %p714 = scmp.ne.s32.totalorder %s706, %s708
      %p715 = scmp.eq.s32.totalorder %s89, 1
      %p716 = por %p714, %p715
      %p717 = scmp.ne.s32.totalorder %s708, %s709
      %p718 = scmp.eq.s32.totalorder %s89, 0
      %p719 = por %p717, %p718
      %p720 = scmp.ne.s32.totalorder %s708, %s709
      %p721 = scmp.eq.s32.totalorder %s90, 1
      %p722 = por %p720, %p721
      %p724 = scmp.ne.s32.totalorder %s709, %s723
      %p725 = scmp.eq.s32.totalorder %s90, 0
      %p726 = por %p724, %p725
      %s728 = sadd.s32 %s727, 1
      %p731 = scmp.eq.s32.totalorder %s84, 1
      %p732 = scmp.ne.s32.totalorder %s727, %s729
      %p733 = scmp.eq.s32.totalorder %s84, 0
      %p734 = por %p732, %p733
      %p735 = scmp.ne.s32.totalorder %s727, %s729
      %p736 = scmp.eq.s32.totalorder %s89, 1
      %p737 = por %p735, %p736
      %p738 = scmp.ne.s32.totalorder %s729, %s730
      %p739 = scmp.eq.s32.totalorder %s89, 0
      %p740 = por %p738, %p739
      %p741 = scmp.ne.s32.totalorder %s729, %s730
      %p742 = scmp.eq.s32.totalorder %s90, 1
      %p743 = por %p741, %p742
      %p745 = scmp.ne.s32.totalorder %s730, %s744
      %p746 = scmp.eq.s32.totalorder %s90, 0
      %p747 = por %p745, %p746
      %s749 = sadd.s32 %s748, 1
      %p752 = scmp.eq.s32.totalorder %s84, 1
      %p753 = scmp.ne.s32.totalorder %s748, %s750
      %p754 = scmp.eq.s32.totalorder %s84, 0
      %p755 = por %p753, %p754
      %p756 = scmp.ne.s32.totalorder %s748, %s750
      %p757 = scmp.eq.s32.totalorder %s89, 1
      %p758 = por %p756, %p757
      %p759 = scmp.ne.s32.totalorder %s750, %s751
      %p760 = scmp.eq.s32.totalorder %s89, 0
      %p761 = por %p759, %p760
      %p762 = scmp.ne.s32.totalorder %s750, %s751
      %p763 = scmp.eq.s32.totalorder %s90, 1
      %p764 = por %p762, %p763
      %p766 = scmp.ne.s32.totalorder %s751, %s765
      %p767 = scmp.eq.s32.totalorder %s90, 0
      %p768 = por %p766, %p767
      %s770 = sadd.s32 %s769, 1
      %p773 = scmp.eq.s32.totalorder %s84, 1
      %p774 = scmp.ne.s32.totalorder %s769, %s771
      %p775 = scmp.eq.s32.totalorder %s84, 0
      %p776 = por %p774, %p775
      %p777 = scmp.ne.s32.totalorder %s769, %s771
      %p778 = scmp.eq.s32.totalorder %s89, 1
      %p779 = por %p777, %p778
      %p780 = scmp.ne.s32.totalorder %s771, %s772
      %p781 = scmp.eq.s32.totalorder %s89, 0
      %p782 = por %p780, %p781
      %p783 = scmp.ne.s32.totalorder %s771, %s772
      %p784 = scmp.eq.s32.totalorder %s90, 1
      %p785 = por %p783, %p784
      %p787 = scmp.ne.s32.totalorder %s772, %s786
      %p788 = scmp.eq.s32.totalorder %s90, 0
      %p789 = por %p787, %p788
      %s791 = sadd.s32 %s790, 1
      %p794 = scmp.eq.s32.totalorder %s84, 1
      %p795 = scmp.ne.s32.totalorder %s790, %s792
      %p796 = scmp.eq.s32.totalorder %s84, 0
      %p797 = por %p795, %p796
      %p798 = scmp.ne.s32.totalorder %s790, %s792
      %p799 = scmp.eq.s32.totalorder %s89, 1
      %p800 = por %p798, %p799
      %p801 = scmp.ne.s32.totalorder %s792, %s793
      %p802 = scmp.eq.s32.totalorder %s89, 0
      %p803 = por %p801, %p802
      %p804 = scmp.ne.s32.totalorder %s792, %s793
      %p805 = scmp.eq.s32.totalorder %s90, 1
      %p806 = por %p804, %p805
      %p808 = scmp.ne.s32.totalorder %s793, %s807
      %p809 = scmp.eq.s32.totalorder %s90, 0
      %p810 = por %p808, %p809
      %s812 = sadd.s32 %s811, 1
      %p815 = scmp.eq.s32.totalorder %s84, 1
      %p816 = scmp.ne.s32.totalorder %s811, %s813
      %p817 = scmp.eq.s32.totalorder %s84, 0
      %p818 = por %p816, %p817
      %p819 = scmp.ne.s32.totalorder %s811, %s813
      %p820 = scmp.eq.s32.totalorder %s89, 1
      %p821 = por %p819, %p820
      %p822 = scmp.ne.s32.totalorder %s813, %s814
      %p823 = scmp.eq.s32.totalorder %s89, 0
      %p824 = por %p822, %p823
      %p825 = scmp.ne.s32.totalorder %s813, %s814
      %p826 = scmp.eq.s32.totalorder %s90, 1
      %p827 = por %p825, %p826
      %p829 = scmp.ne.s32.totalorder %s814, %s828
      %p830 = scmp.eq.s32.totalorder %s90, 0
      %p831 = por %p829, %p830
      %s833 = sadd.s32 %s832, 1
      %p836 = scmp.eq.s32.totalorder %s84, 1
      %p837 = scmp.ne.s32.totalorder %s832, %s834
      %p838 = scmp.eq.s32.totalorder %s84, 0
      %p839 = por %p837, %p838
      %p840 = scmp.ne.s32.totalorder %s832, %s834
      %p841 = scmp.eq.s32.totalorder %s89, 1
      %p842 = por %p840, %p841
      %p843 = scmp.ne.s32.totalorder %s834, %s835
      %p844 = scmp.eq.s32.totalorder %s89, 0
      %p845 = por %p843, %p844
      %p846 = scmp.ne.s32.totalorder %s834, %s835
      %p847 = scmp.eq.s32.totalorder %s90, 1
      %p848 = por %p846, %p847
      %p850 = scmp.ne.s32.totalorder %s835, %s849
      %p851 = scmp.eq.s32.totalorder %s90, 0
      %p852 = por %p850, %p851
      %s854 = sadd.s32 %s853, 1
      %p857 = scmp.eq.s32.totalorder %s84, 1
      %p858 = scmp.ne.s32.totalorder %s853, %s855
      %p859 = scmp.eq.s32.totalorder %s84, 0
      %p860 = por %p858, %p859
      %p861 = scmp.ne.s32.totalorder %s853, %s855
      %p862 = scmp.eq.s32.totalorder %s89, 1
      %p863 = por %p861, %p862
      %p864 = scmp.ne.s32.totalorder %s855, %s856
      %p865 = scmp.eq.s32.totalorder %s89, 0
      %p866 = por %p864, %p865
      %p867 = scmp.ne.s32.totalorder %s855, %s856
      %p868 = scmp.eq.s32.totalorder %s90, 1
      %p869 = por %p867, %p868
      %p871 = scmp.ne.s32.totalorder %s856, %s870
      %p872 = scmp.eq.s32.totalorder %s90, 0
      %p873 = por %p871, %p872
      %s874 = ssub.s32 %s84, %s91
      %p875 = scmp.eq.s32.totalorder %s874, 0
      %s877 = sadd.s32 %s876, 1
      %s878 = scalar_select %p875, %s876, %s877
      %p881 = pneg %p875
      %p882 = scmp.eq.s32.totalorder %s84, 1
      %p883 = por %p881, %p882
      %p884 = scmp.ne.s32.totalorder %s876, %s879
      %p885 = scmp.eq.s32.totalorder %s84, 0
      %p886 = por %p884, %p885
      %p887 = scmp.ne.s32.totalorder %s876, %s879
      %p888 = scmp.eq.s32.totalorder %s89, 1
      %p889 = por %p887, %p888
      %p890 = scmp.ne.s32.totalorder %s879, %s880
      %p891 = scmp.eq.s32.totalorder %s89, 0
      %p892 = por %p890, %p891
      %p893 = scmp.ne.s32.totalorder %s879, %s880
      %p894 = scmp.eq.s32.totalorder %s90, 1
      %p895 = por %p893, %p894
      %p897 = scmp.ne.s32.totalorder %s880, %s896
      %p898 = scmp.eq.s32.totalorder %s90, 0
      %p899 = por %p897, %p898
      %p900 = scmp.le.s32.totalorder 1, %s84
      %p901 = scmp.lt.s32.totalorder %s84, 3
      %p902 = pnand %p900, %p901
      %p903 = pneg %p902
      // Predicated region
      $region9: #{tpu_custom_call.1} parent=5 // pred_check
        _
      $region10: #{tpu_custom_call.1} parent=5 // pred_check_branch
        %905 = sbr.rel (%p902) target = $region12
      $region11: #{tpu_custom_call.1} parent=5 // pred_region
        %s906 = ssub.s32 %s84, 1
        // Predicated region
        $region13: #{tpu_custom_call.1} parent=11 // pred_check
          %p907 = pneg %p131
        $region14: #{tpu_custom_call.1} parent=11 // pred_check_branch
          %909 = sbr.rel (%p907) target = $region16
        $region15: #{tpu_custom_call.1} parent=11 // pred_region
          _
        $region16: #{tpu_custom_call.1} parent=11 // pred_fallthru
          _
        // Predicated region
        $region17: #{tpu_custom_call.1} parent=11 // pred_check
          %p910 = pneg %p152
        $region18: #{tpu_custom_call.1} parent=11 // pred_check_branch
          %912 = sbr.rel (%p910) target = $region20
        $region19: #{tpu_custom_call.1} parent=11 // pred_region
          _
        $region20: #{tpu_custom_call.1} parent=11 // pred_fallthru
          _
        // Predicated region
        $region21: #{tpu_custom_call.1} parent=11 // pred_check
          %p913 = pneg %p173
        $region22: #{tpu_custom_call.1} parent=11 // pred_check_branch
          %915 = sbr.rel (%p913) target = $region24
        $region23: #{tpu_custom_call.1} parent=11 // pred_region
          _
        $region24: #{tpu_custom_call.1} parent=11 // pred_fallthru
          _
        // Predicated region
        $region25: #{tpu_custom_call.1} parent=11 // pred_check
          %p916 = pneg %p194
        $region26: #{tpu_custom_call.1} parent=11 // pred_check_branch
          %918 = sbr.rel (%p916) target = $region28
        $region27: #{tpu_custom_call.1} parent=11 // pred_region
          _
        $region28: #{tpu_custom_call.1} parent=11 // pred_fallthru
          _
        // Predicated region
        $region29: #{tpu_custom_call.1} parent=11 // pred_check
          %p919 = pneg %p215
        $region30: #{tpu_custom_call.1} parent=11 // pred_check_branch
          %921 = sbr.rel (%p919) target = $region32
        $region31: #{tpu_custom_call.1} parent=11 // pred_region
          _
        $region32: #{tpu_custom_call.1} parent=11 // pred_fallthru
          _
        // Predicated region
        $region33: #{tpu_custom_call.1} parent=11 // pred_check
          %p922 = pneg %p236
        $region34: #{tpu_custom_call.1} parent=11 // pred_check_branch
          %924 = sbr.rel (%p922) target = $region36
        $region35: #{tpu_custom_call.1} parent=11 // pred_region
          _
        $region36: #{tpu_custom_call.1} parent=11 // pred_fallthru
          _
        // Predicated region
        $region37: #{tpu_custom_call.1} parent=11 // pred_check
          %p925 = pneg %p257
        $region38: #{tpu_custom_call.1} parent=11 // pred_check_branch
          %927 = sbr.rel (%p925) target = $region40
        $region39: #{tpu_custom_call.1} parent=11 // pred_region
          _
        $region40: #{tpu_custom_call.1} parent=11 // pred_fallthru
          _
        // Predicated region
        $region41: #{tpu_custom_call.1} parent=11 // pred_check
          %p928 = pneg %p278
        $region42: #{tpu_custom_call.1} parent=11 // pred_check_branch
          %930 = sbr.rel (%p928) target = $region44
        $region43: #{tpu_custom_call.1} parent=11 // pred_region
          _
        $region44: #{tpu_custom_call.1} parent=11 // pred_fallthru
          _
        // Predicated region
        $region45: #{tpu_custom_call.1} parent=11 // pred_check
          %p931 = pneg %p299
        $region46: #{tpu_custom_call.1} parent=11 // pred_check_branch
          %933 = sbr.rel (%p931) target = $region48
        $region47: #{tpu_custom_call.1} parent=11 // pred_region
          _
        $region48: #{tpu_custom_call.1} parent=11 // pred_fallthru
          _
        // Predicated region
        $region49: #{tpu_custom_call.1} parent=11 // pred_check
          %p934 = pneg %p320
        $region50: #{tpu_custom_call.1} parent=11 // pred_check_branch
          %936 = sbr.rel (%p934) target = $region52
        $region51: #{tpu_custom_call.1} parent=11 // pred_region
          _
        $region52: #{tpu_custom_call.1} parent=11 // pred_fallthru
          _
        // Predicated region
        $region53: #{tpu_custom_call.1} parent=11 // pred_check
          %p937 = pneg %p341
        $region54: #{tpu_custom_call.1} parent=11 // pred_check_branch
          %939 = sbr.rel (%p937) target = $region56
        $region55: #{tpu_custom_call.1} parent=11 // pred_region
          _
        $region56: #{tpu_custom_call.1} parent=11 // pred_fallthru
          _
        // Predicated region
        $region57: #{tpu_custom_call.1} parent=11 // pred_check
          %p940 = pneg %p362
        $region58: #{tpu_custom_call.1} parent=11 // pred_check_branch
          %942 = sbr.rel (%p940) target = $region60
        $region59: #{tpu_custom_call.1} parent=11 // pred_region
          _
        $region60: #{tpu_custom_call.1} parent=11 // pred_fallthru
          _
        // Predicated region
        $region61: #{tpu_custom_call.1} parent=11 // pred_check
          %p943 = pneg %p383
        $region62: #{tpu_custom_call.1} parent=11 // pred_check_branch
          %945 = sbr.rel (%p943) target = $region64
        $region63: #{tpu_custom_call.1} parent=11 // pred_region
          _
        $region64: #{tpu_custom_call.1} parent=11 // pred_fallthru
          _
        // Predicated region
        $region65: #{tpu_custom_call.1} parent=11 // pred_check
          %p946 = pneg %p404
        $region66: #{tpu_custom_call.1} parent=11 // pred_check_branch
          %948 = sbr.rel (%p946) target = $region68
        $region67: #{tpu_custom_call.1} parent=11 // pred_region
          _
        $region68: #{tpu_custom_call.1} parent=11 // pred_fallthru
          _
        // Predicated region
        $region69: #{tpu_custom_call.1} parent=11 // pred_check
          %p949 = pneg %p425
        $region70: #{tpu_custom_call.1} parent=11 // pred_check_branch
          %951 = sbr.rel (%p949) target = $region72
        $region71: #{tpu_custom_call.1} parent=11 // pred_region
          _
        $region72: #{tpu_custom_call.1} parent=11 // pred_fallthru
          _
        // Predicated region
        $region73: #{tpu_custom_call.1} parent=11 // pred_check
          %p952 = pneg %p446
        $region74: #{tpu_custom_call.1} parent=11 // pred_check_branch
          %954 = sbr.rel (%p952) target = $region76
        $region75: #{tpu_custom_call.1} parent=11 // pred_region
          _
        $region76: #{tpu_custom_call.1} parent=11 // pred_fallthru
          _
        // Predicated region
        $region77: #{tpu_custom_call.1} parent=11 // pred_check
          %p955 = pneg %p467
        $region78: #{tpu_custom_call.1} parent=11 // pred_check_branch
          %957 = sbr.rel (%p955) target = $region80
        $region79: #{tpu_custom_call.1} parent=11 // pred_region
          _
        $region80: #{tpu_custom_call.1} parent=11 // pred_fallthru
          _
        // Predicated region
        $region81: #{tpu_custom_call.1} parent=11 // pred_check
          %p958 = pneg %p488
        $region82: #{tpu_custom_call.1} parent=11 // pred_check_branch
          %960 = sbr.rel (%p958) target = $region84
        $region83: #{tpu_custom_call.1} parent=11 // pred_region
          _
        $region84: #{tpu_custom_call.1} parent=11 // pred_fallthru
          _
        // Predicated region
        $region85: #{tpu_custom_call.1} parent=11 // pred_check
          %p961 = pneg %p509
        $region86: #{tpu_custom_call.1} parent=11 // pred_check_branch
          %963 = sbr.rel (%p961) target = $region88
        $region87: #{tpu_custom_call.1} parent=11 // pred_region
          _
        $region88: #{tpu_custom_call.1} parent=11 // pred_fallthru
          _
        // Predicated region
        $region89: #{tpu_custom_call.1} parent=11 // pred_check
          %p964 = pneg %p530
        $region90: #{tpu_custom_call.1} parent=11 // pred_check_branch
          %966 = sbr.rel (%p964) target = $region92
        $region91: #{tpu_custom_call.1} parent=11 // pred_region
          _
        $region92: #{tpu_custom_call.1} parent=11 // pred_fallthru
          _
        // Predicated region
        $region93: #{tpu_custom_call.1} parent=11 // pred_check
          %p967 = pneg %p551
        $region94: #{tpu_custom_call.1} parent=11 // pred_check_branch
          %969 = sbr.rel (%p967) target = $region96
        $region95: #{tpu_custom_call.1} parent=11 // pred_region
          _
        $region96: #{tpu_custom_call.1} parent=11 // pred_fallthru
          _
        // Predicated region
        $region97: #{tpu_custom_call.1} parent=11 // pred_check
          %p970 = pneg %p572
        $region98: #{tpu_custom_call.1} parent=11 // pred_check_branch
          %972 = sbr.rel (%p970) target = $region100
        $region99: #{tpu_custom_call.1} parent=11 // pred_region
          _
        $region100: #{tpu_custom_call.1} parent=11 // pred_fallthru
          _
        // Predicated region
        $region101: #{tpu_custom_call.1} parent=11 // pred_check
          %p973 = pneg %p593
        $region102: #{tpu_custom_call.1} parent=11 // pred_check_branch
          %975 = sbr.rel (%p973) target = $region104
        $region103: #{tpu_custom_call.1} parent=11 // pred_region
          _
        $region104: #{tpu_custom_call.1} parent=11 // pred_fallthru
          _
        // Predicated region
        $region105: #{tpu_custom_call.1} parent=11 // pred_check
          %p976 = pneg %p614
        $region106: #{tpu_custom_call.1} parent=11 // pred_check_branch
          %978 = sbr.rel (%p976) target = $region108
        $region107: #{tpu_custom_call.1} parent=11 // pred_region
          _
        $region108: #{tpu_custom_call.1} parent=11 // pred_fallthru
          _
        // Predicated region
        $region109: #{tpu_custom_call.1} parent=11 // pred_check
          %p979 = pneg %p635
        $region110: #{tpu_custom_call.1} parent=11 // pred_check_branch
          %981 = sbr.rel (%p979) target = $region112
        $region111: #{tpu_custom_call.1} parent=11 // pred_region
          _
        $region112: #{tpu_custom_call.1} parent=11 // pred_fallthru
          _
        // Predicated region
        $region113: #{tpu_custom_call.1} parent=11 // pred_check
          %p982 = pneg %p656
        $region114: #{tpu_custom_call.1} parent=11 // pred_check_branch
          %984 = sbr.rel (%p982) target = $region116
        $region115: #{tpu_custom_call.1} parent=11 // pred_region
          _
        $region116: #{tpu_custom_call.1} parent=11 // pred_fallthru
          _
        // Predicated region
        $region117: #{tpu_custom_call.1} parent=11 // pred_check
          %p985 = pneg %p677
        $region118: #{tpu_custom_call.1} parent=11 // pred_check_branch
          %987 = sbr.rel (%p985) target = $region120
        $region119: #{tpu_custom_call.1} parent=11 // pred_region
          _
        $region120: #{tpu_custom_call.1} parent=11 // pred_fallthru
          _
        // Predicated region
        $region121: #{tpu_custom_call.1} parent=11 // pred_check
          %p988 = pneg %p698
        $region122: #{tpu_custom_call.1} parent=11 // pred_check_branch
          %990 = sbr.rel (%p988) target = $region124
        $region123: #{tpu_custom_call.1} parent=11 // pred_region
          _
        $region124: #{tpu_custom_call.1} parent=11 // pred_fallthru
          _
        // Predicated region
        $region125: #{tpu_custom_call.1} parent=11 // pred_check
          %p991 = pneg %p719
        $region126: #{tpu_custom_call.1} parent=11 // pred_check_branch
          %993 = sbr.rel (%p991) target = $region128
        $region127: #{tpu_custom_call.1} parent=11 // pred_region
          _
        $region128: #{tpu_custom_call.1} parent=11 // pred_fallthru
          _
        // Predicated region
        $region129: #{tpu_custom_call.1} parent=11 // pred_check
          %p994 = pneg %p740
        $region130: #{tpu_custom_call.1} parent=11 // pred_check_branch
          %996 = sbr.rel (%p994) target = $region132
        $region131: #{tpu_custom_call.1} parent=11 // pred_region
          _
        $region132: #{tpu_custom_call.1} parent=11 // pred_fallthru
          _
        // Predicated region
        $region133: #{tpu_custom_call.1} parent=11 // pred_check
          %p997 = pneg %p761
        $region134: #{tpu_custom_call.1} parent=11 // pred_check_branch
          %999 = sbr.rel (%p997) target = $region136
        $region135: #{tpu_custom_call.1} parent=11 // pred_region
          _
        $region136: #{tpu_custom_call.1} parent=11 // pred_fallthru
          _
        // Predicated region
        $region137: #{tpu_custom_call.1} parent=11 // pred_check
          %p1000 = pneg %p782
        $region138: #{tpu_custom_call.1} parent=11 // pred_check_branch
          %1002 = sbr.rel (%p1000) target = $region140
        $region139: #{tpu_custom_call.1} parent=11 // pred_region
          _
        $region140: #{tpu_custom_call.1} parent=11 // pred_fallthru
          _
        // Predicated region
        $region141: #{tpu_custom_call.1} parent=11 // pred_check
          %p1003 = pneg %p803
        $region142: #{tpu_custom_call.1} parent=11 // pred_check_branch
          %1005 = sbr.rel (%p1003) target = $region144
        $region143: #{tpu_custom_call.1} parent=11 // pred_region
          _
        $region144: #{tpu_custom_call.1} parent=11 // pred_fallthru
          _
        // Predicated region
        $region145: #{tpu_custom_call.1} parent=11 // pred_check
          %p1006 = pneg %p824
        $region146: #{tpu_custom_call.1} parent=11 // pred_check_branch
          %1008 = sbr.rel (%p1006) target = $region148
        $region147: #{tpu_custom_call.1} parent=11 // pred_region
          _
        $region148: #{tpu_custom_call.1} parent=11 // pred_fallthru
          _
        // Predicated region
        $region149: #{tpu_custom_call.1} parent=11 // pred_check
          %p1009 = pneg %p845
        $region150: #{tpu_custom_call.1} parent=11 // pred_check_branch
          %1011 = sbr.rel (%p1009) target = $region152
        $region151: #{tpu_custom_call.1} parent=11 // pred_region
          _
        $region152: #{tpu_custom_call.1} parent=11 // pred_fallthru
          _
        // Predicated region
        $region153: #{tpu_custom_call.1} parent=11 // pred_check
          %p1012 = pneg %p866
        $region154: #{tpu_custom_call.1} parent=11 // pred_check_branch
          %1014 = sbr.rel (%p1012) target = $region156
        $region155: #{tpu_custom_call.1} parent=11 // pred_region
          _
        $region156: #{tpu_custom_call.1} parent=11 // pred_fallthru
          _
      $region12: #{tpu_custom_call.1} parent=5 // pred_fallthru
        _
      %p1015 = scmp.lt.s32.totalorder %s84, 2
      // Predicated region
      $region157: #{tpu_custom_call.1} parent=5 // pred_check
        %p1016 = pneg %p1015
      $region158: #{tpu_custom_call.1} parent=5 // pred_check_branch
        %1018 = sbr.rel (%p1016) target = $region160
      $region159: #{tpu_custom_call.1} parent=5 // pred_region
        // Predicated region
        $region161: #{tpu_custom_call.1} parent=159 // pred_check
          %p1019 = pneg %p104
        $region162: #{tpu_custom_call.1} parent=159 // pred_check_branch
          %1021 = sbr.rel (%p1019) target = $region164
        $region163: #{tpu_custom_call.1} parent=159 // pred_region
          %p1022 = scmp.lt.s32.totalorder %s84, 1
          %s1023 = scalar_select %p1022, %s84, 1
          %s1024 = smul.addr %s1023, 8
          %s1025 = scalar_lea.vmem %s1, %s1024
        $region164: #{tpu_custom_call.1} parent=159 // pred_fallthru
          _
      $region160: #{tpu_custom_call.1} parent=5 // pred_fallthru
        _
      %p1026 = scmp.le.s32.totalorder 1, %s84
      %p1027 = scmp.lt.s32.totalorder %s84, 3
      %p1028 = pnand %p1026, %p1027
      %p1029 = pneg %p1028
      // Predicated region
      $region165: #{tpu_custom_call.1} parent=5 // pred_check
        _
      $region166: #{tpu_custom_call.1} parent=5 // pred_check_branch
        %1031 = sbr.rel (%p1028) target = $region168
      $region167: #{tpu_custom_call.1} parent=5 // pred_region
        %s1032 = ssub.s32 %s84, 1
        %p1033 = scmp.lt.s32.totalorder %s89, 1
        %s1034 = scalar_select %p1033, %s89, 1
        %s1035 = smul.addr %s1034, 8
        %s1036 = scalar_lea.vmem %s1, %s1035
        %p1037 = pneg %p110
        %p1038 = pneg %p107
        %p1039 = pneg %p131
        %p1040 = pneg %p128
        %p1041 = pneg %p152
        %p1042 = pneg %p149
        %p1043 = pneg %p173
        %p1044 = pneg %p170
        %p1045 = pneg %p194
        %p1046 = pneg %p191
        %p1047 = pneg %p215
        %p1048 = pneg %p212
        %p1049 = pneg %p236
        %p1050 = pneg %p233
        %p1051 = pneg %p257
        %p1052 = pneg %p254
        %p1053 = pneg %p278
        %p1054 = pneg %p275
        %p1055 = pneg %p299
        %p1056 = pneg %p296
        %p1057 = pneg %p320
        %p1058 = pneg %p317
        %p1059 = pneg %p341
        %p1060 = pneg %p338
        %p1061 = pneg %p362
        %p1062 = pneg %p359
        %p1063 = pneg %p383
        %p1064 = pneg %p380
        %p1065 = pneg %p404
        %p1066 = pneg %p401
        %p1067 = pneg %p425
        %p1068 = pneg %p422
        %p1069 = pneg %p446
        %p1070 = pneg %p443
        %p1071 = pneg %p467
        %p1072 = pneg %p464
        %p1073 = pneg %p488
        %p1074 = pneg %p485
        %p1075 = pneg %p509
        %p1076 = pneg %p506
        %p1077 = pneg %p530
        %p1078 = pneg %p527
        %p1079 = pneg %p551
        %p1080 = pneg %p548
        %p1081 = pneg %p572
        %p1082 = pneg %p569
        %p1083 = pneg %p593
        %p1084 = pneg %p590
        %p1085 = pneg %p614
        %p1086 = pneg %p611
        %p1087 = pneg %p635
        %p1088 = pneg %p632
        %p1089 = pneg %p656
        %p1090 = pneg %p653
        %p1091 = pneg %p677
        %p1092 = pneg %p674
        %p1093 = pneg %p698
        %p1094 = pneg %p695
        %p1095 = pneg %p719
        %p1096 = pneg %p716
        %p1097 = pneg %p740
        %p1098 = pneg %p737
        %p1099 = pneg %p761
        %p1100 = pneg %p758
        %p1101 = pneg %p782
        %p1102 = pneg %p779
        %p1103 = pneg %p803
        %p1104 = pneg %p800
        %p1105 = pneg %p824
        %p1106 = pneg %p821
        %p1107 = pneg %p845
        %p1108 = pneg %p842
        %p1109 = pneg %p866
        %p1110 = pneg %p863
        %p1111 = pneg %p892
        %p1112 = pneg %p889
        %s1113 = sand.u32 %s879, 1
        %s1114 = scalar_lea.sflag [#allocation3], %s1113
        %s1115 = sand.u32 %s879, 1
        %s1116 = smul.addr %s1115, 32
        %s1117 = scalar_lea.vmem [#allocation2], %s1116
        %p1118 = scmp.lt.s32.totalorder %s89, 1
        %s1119 = scalar_select %p1118, %s89, 1
        %s1120 = smul.addr %s1119, 8
        %s1121 = scalar_lea.vmem %s1, %s1120
        %v1122 = vld [vmem:[%s1121] sm:$0xff]
        %v1123 = vld [vmem:[%s3] sm:$0xff]
        %v1124 = vld [vmem:[%s3 + $0x8] sm:$0xff]
        %v1125 = vld [vmem:[%s3 + $0x10] sm:$0xff]
        %v1126 = vld [vmem:[%s3 + $0x18] sm:$0xff]
        %v1127 = vld [vmem:[%s5] sm:$0xff]
        %v1128 = vld [vmem:[%s5 + $0x8] sm:$0xff]
        %v1129 = vld [vmem:[%s5 + $0x10] sm:$0xff]
        %v1130 = vld [vmem:[%s5 + $0x18] sm:$0xff]
        %v1131 = vlaneseq
        %v1132 = vand.u32 %v1131, 127
        %v1133 = vadd.s32 %v1132, 4294967295
        %vm1134 = vcmp.ge.s32.totalorder %v1133, 0
        %vm1135 = vcmp.lt.s32.totalorder %v1133, 128
        %vm1136 = vmand %vm1134, %vm1135
        %1137 = vrot.lane.b32.xlu0 %v1122, 1
        %v1138 = vpop.permute.xlu0 %1137
        %1139 = vrot.lane.b32.xlu0 %v1132, 1
        %v1140 = vpop.permute.xlu0 %1139
        %vm1141 = vcmp.eq.s32.totalorder %v1140, %v1133
        %vm1142 = vmand %vm1136, %vm1141
        %v1143 = vsel %vm1142, %v1138, 0.0
        %1144 = vrot.lane.b32.xlu0 %v1122, 127
        %v1145 = vpop.permute.xlu0 %1144
        %1146 = vrot.lane.b32.xlu0 %v1132, 127
        %v1147 = vpop.permute.xlu0 %1146
        %vm1148 = vcmp.eq.s32.totalorder %v1147, %v1133
        %vm1149 = vmand %vm1136, %vm1148
        %v1150 = vsel %vm1149, %v1145, %v1143
        %v1151 = vadd.s32 %v1132, 1
        %vm1152 = vcmp.ge.s32.totalorder %v1151, 0
        %vm1153 = vcmp.lt.s32.totalorder %v1151, 128
        %vm1154 = vmand %vm1152, %vm1153
        %vm1155 = vcmp.eq.s32.totalorder %v1147, %v1151
        %vm1156 = vmand %vm1154, %vm1155
        %v1157 = vsel %vm1156, %v1145, 0.0
        %vm1158 = vcmp.eq.s32.totalorder %v1140, %v1151
        %vm1159 = vmand %vm1154, %vm1158
        %v1160 = vsel %vm1159, %v1138, %v1157
        %1162 = vset.pattern.permute.xlu0 0
        %1163 = vperm.xlu0 %1162, %v1127
        %v1164 = vpop.permute.xlu0 %1163
        %1167 = vset.pattern.permute.xlu0 0
        %1168 = vperm.xlu0 %1167, %v1128
        %v1169 = vpop.permute.xlu0 %1168
        %1172 = vset.pattern.permute.xlu0 0
        %1173 = vperm.xlu0 %1172, %v1129
        %v1174 = vpop.permute.xlu0 %1173
        %1177 = vset.pattern.permute.xlu0 0
        %1178 = vperm.xlu0 %1177, %v1130
        %v1179 = vpop.permute.xlu0 %1178
        %vm1181 = vcmask 195584
        %v1183 = vsel %vm1181, %v1123, 0
        %v1186 = vsel %vm1181, %v1124, 0
        %v1189 = vsel %vm1181, %v1125, 0
        %v1192 = vsel %vm1181, %v1126, 0
        %1194 = vmatprep.subr.mxu0 0.0
        %1195 = vmatpush1.msra.mxu0 %v1150
        %1196 = vmatprep.subr.mxu0 0.0
        %1197 = vmatpush1.msra.mxu0 %v1122
        %1198 = vmatprep.subr.mxu0 0.0
        %1199 = vmatpush1.msra.mxu0 %v1160
        %1200 = vmatprep.subr.mxu0 0.0
        %1201 = vmatpush1.msra.mxu0 0.0
        %1202 = vmatprep.subr.mxu0 0.0
        %1203 = vmatpush1.msra.mxu0 0.0
        %1204 = vmatprep.subr.mxu0 0.0
        %1205 = vmatpush1.msra.mxu0 0.0
        %1206 = vmatprep.subr.mxu0 0.0
        %1207 = vmatpush1.msra.mxu0 0.0
        %1208 = vmatprep.subr.mxu0 0.0
        %1209 = vmatpush1.msra.mxu0 0.0
        %1210 = vmatprep.subr.mxu0 0.0
        %1211 = vmatpush1.msra.mxu0 0.0
        %1212 = vmatprep.subr.mxu0 0.0
        %1213 = vmatpush1.msra.mxu0 0.0
        %1214 = vmatprep.subr.mxu0 0.0
        %1215 = vmatpush1.msra.mxu0 0.0
        %1216 = vmatprep.subr.mxu0 0.0
        %1217 = vmatpush1.msra.mxu0 0.0
        %1218 = vmatprep.subr.mxu0 0.0
        %1219 = vmatpush1.msra.mxu0 0.0
        %1220 = vmatprep.subr.mxu0 0.0
        %1221 = vmatpush1.msra.mxu0 0.0
        %1222 = vmatprep.subr.mxu0 0.0
        %1223 = vmatpush1.msra.mxu0 0.0
        %1224 = vmatprep.subr.mxu0 0.0
        %1225 = vmatpush1.msra.mxu0 0.0
        %1226 = vmatprep.subr.mxu0 0.0
        %1227 = vmatpush1.msra.mxu0 0.0
        %1228 = vmatprep.subr.mxu0 0.0
        %1229 = vmatpush1.msra.mxu0 0.0
        %1230 = vmatprep.subr.mxu0 0.0
        %1231 = vmatpush1.msra.mxu0 0.0
        %1232 = vmatprep.subr.mxu0 0.0
        %1233 = vmatpush1.msra.mxu0 0.0
        %1234 = vmatprep.subr.mxu0 0.0
        %1235 = vmatpush1.msra.mxu0 0.0
        %1236 = vmatprep.subr.mxu0 0.0
        %1237 = vmatpush1.msra.mxu0 0.0
        %1238 = vmatprep.subr.mxu0 0.0
        %1239 = vmatpush1.msra.mxu0 0.0
        %1240 = vmatprep.subr.mxu0 0.0
        %1241 = vmatpush1.msra.mxu0 0.0
        %1242 = vmatprep.subr.mxu0 0.0
        %1243 = vmatpush1.msra.mxu0 0.0
        %1244 = vmatprep.subr.mxu0 0.0
        %1245 = vmatpush1.msra.mxu0 0.0
        %1246 = vmatprep.subr.mxu0 0.0
        %1247 = vmatpush1.msra.mxu0 0.0
        %1248 = vmatprep.subr.mxu0 0.0
        %1249 = vmatpush1.msra.mxu0 0.0
        %1250 = vmatprep.subr.mxu0 0.0
        %1251 = vmatpush1.msra.mxu0 0.0
        %1252 = vmatprep.subr.mxu0 0.0
        %1253 = vmatpush1.msra.mxu0 0.0
        %1254 = vmatprep.subr.mxu0 0.0
        %1255 = vmatpush1.msra.mxu0 0.0
        %1256 = vmatprep.subr.mxu0 0.0
        %1257 = vmatpush1.msra.mxu0 0.0
        %1258 = vmatprep.mubr.f32.mxu0 0.0
        %1259 = vmatmul.mubr.f32.gmra.mrb[0].mxu0 %v1183
        %v1260 = vpop.f32.mrb[0].mxu0
        %v1261 = vadd.f32 %v1164, %v1260
        %v1262 = vpop.f32.mrb[0].mxu0
        %1263 = vmatprep.mubr.f32.mxu0 0.0
        %1264 = vmatmul.mubr.f32.gmra.mrb[0].mxu0 %v1186
        %v1265 = vpop.f32.mrb[0].mxu0
        %v1266 = vadd.f32 %v1169, %v1265
        %v1267 = vpop.f32.mrb[0].mxu0
        %1268 = vmatprep.mubr.f32.mxu0 0.0
        %1269 = vmatmul.mubr.f32.gmra.mrb[0].mxu0 %v1189
        %v1270 = vpop.f32.mrb[0].mxu0
        %v1271 = vadd.f32 %v1174, %v1270
        %v1272 = vpop.f32.mrb[0].mxu0
        %1273 = vmatprep.mubr.f32.mxu0 0.0
        %1274 = vmatmul.mubr.f32.gmra.mrb[0].mxu0 %v1192
        %v1275 = vpop.f32.mrb[0].mxu0
        %v1276 = vadd.f32 %v1179, %v1275
        %v1277 = vpop.f32.mrb[0].mxu0
        %1278 = vdwg.mxu0
        %v1279 = vmax.f32 %v1261, 0.0
        %v1280 = vmax.f32 %v1266, 0.0
        %v1281 = vmax.f32 %v1271, 0.0
        %v1282 = vmax.f32 %v1276, 0.0
        %v1283 = vld [vmem:[%s7] sm:$0xff]
        %v1284 = vld [vmem:[%s7 + $0x8] sm:$0xff]
        %v1285 = vld [vmem:[%s7 + $0x10] sm:$0xff]
        %v1286 = vld [vmem:[%s7 + $0x18] sm:$0xff]
        %v1287 = vld [vmem:[%s9] sm:$0xff]
        %v1288 = vld [vmem:[%s9 + $0x8] sm:$0xff]
        %v1289 = vld [vmem:[%s9 + $0x10] sm:$0xff]
        %v1290 = vld [vmem:[%s9 + $0x18] sm:$0xff]
        %1292 = vset.pattern.permute.xlu0 0
        %1293 = vperm.xlu0 %1292, %v1287
        %v1294 = vpop.permute.xlu0 %1293
        %1297 = vset.pattern.permute.xlu0 0
        %1298 = vperm.xlu0 %1297, %v1288
        %v1299 = vpop.permute.xlu0 %1298
        %1302 = vset.pattern.permute.xlu0 0
        %1303 = vperm.xlu0 %1302, %v1289
        %v1304 = vpop.permute.xlu0 %1303
        %1307 = vset.pattern.permute.xlu0 0
        %1308 = vperm.xlu0 %1307, %v1290
        %v1309 = vpop.permute.xlu0 %1308
        %vm1311 = vcmask 261120
        %v1313 = vsel %vm1311, %v1283, 0
        %v1316 = vsel %vm1311, %v1284, 0
        %v1319 = vsel %vm1311, %v1285, 0
        %v1322 = vsel %vm1311, %v1286, 0
        %1324 = vmatprep.subr.mxu0 0.0
        %1325 = vmatpush1.msra.mxu0 %v1279
        %1326 = vmatprep.subr.mxu0 0.0
        %1327 = vmatpush1.msra.mxu0 %v1280
        %1328 = vmatprep.subr.mxu0 0.0
        %1329 = vmatpush1.msra.mxu0 %v1281
        %1330 = vmatprep.subr.mxu0 0.0
        %1331 = vmatpush1.msra.mxu0 %v1282
        %1332 = vmatprep.subr.mxu0 0.0
        %1333 = vmatpush1.msra.mxu0 0.0
        %1334 = vmatprep.subr.mxu0 0.0
        %1335 = vmatpush1.msra.mxu0 0.0
        %1336 = vmatprep.subr.mxu0 0.0
        %1337 = vmatpush1.msra.mxu0 0.0
        %1338 = vmatprep.subr.mxu0 0.0
        %1339 = vmatpush1.msra.mxu0 0.0
        %1340 = vmatprep.subr.mxu0 0.0
        %1341 = vmatpush1.msra.mxu0 0.0
        %1342 = vmatprep.subr.mxu0 0.0
        %1343 = vmatpush1.msra.mxu0 0.0
        %1344 = vmatprep.subr.mxu0 0.0
        %1345 = vmatpush1.msra.mxu0 0.0
        %1346 = vmatprep.subr.mxu0 0.0
        %1347 = vmatpush1.msra.mxu0 0.0
        %1348 = vmatprep.subr.mxu0 0.0
        %1349 = vmatpush1.msra.mxu0 0.0
        %1350 = vmatprep.subr.mxu0 0.0
        %1351 = vmatpush1.msra.mxu0 0.0
        %1352 = vmatprep.subr.mxu0 0.0
        %1353 = vmatpush1.msra.mxu0 0.0
        %1354 = vmatprep.subr.mxu0 0.0
        %1355 = vmatpush1.msra.mxu0 0.0
        %1356 = vmatprep.subr.mxu0 0.0
        %1357 = vmatpush1.msra.mxu0 0.0
        %1358 = vmatprep.subr.mxu0 0.0
        %1359 = vmatpush1.msra.mxu0 0.0
        %1360 = vmatprep.subr.mxu0 0.0
        %1361 = vmatpush1.msra.mxu0 0.0
        %1362 = vmatprep.subr.mxu0 0.0
        %1363 = vmatpush1.msra.mxu0 0.0
        %1364 = vmatprep.subr.mxu0 0.0
        %1365 = vmatpush1.msra.mxu0 0.0
        %1366 = vmatprep.subr.mxu0 0.0
        %1367 = vmatpush1.msra.mxu0 0.0
        %1368 = vmatprep.subr.mxu0 0.0
        %1369 = vmatpush1.msra.mxu0 0.0
        %1370 = vmatprep.subr.mxu0 0.0
        %1371 = vmatpush1.msra.mxu0 0.0
        %1372 = vmatprep.subr.mxu0 0.0
        %1373 = vmatpush1.msra.mxu0 0.0
        %1374 = vmatprep.subr.mxu0 0.0
        %1375 = vmatpush1.msra.mxu0 0.0
        %1376 = vmatprep.subr.mxu0 0.0
        %1377 = vmatpush1.msra.mxu0 0.0
        %1378 = vmatprep.subr.mxu0 0.0
        %1379 = vmatpush1.msra.mxu0 0.0
        %1380 = vmatprep.subr.mxu0 0.0
        %1381 = vmatpush1.msra.mxu0 0.0
        %1382 = vmatprep.subr.mxu0 0.0
        %1383 = vmatpush1.msra.mxu0 0.0
        %1384 = vmatprep.subr.mxu0 0.0
        %1385 = vmatpush1.msra.mxu0 0.0
        %1386 = vmatprep.subr.mxu0 0.0
        %1387 = vmatpush1.msra.mxu0 0.0
        %1388 = vmatprep.mubr.f32.mxu0 0.0
        %1389 = vmatmul.mubr.f32.gmra.mrb[0].mxu0 %v1313
        %v1390 = vpop.f32.mrb[0].mxu0
        %v1391 = vadd.f32 %v1294, %v1390
        %v1392 = vpop.f32.mrb[0].mxu0
        %1393 = vmatprep.mubr.f32.mxu0 0.0
        %1394 = vmatmul.mubr.f32.gmra.mrb[0].mxu0 %v1316
        %v1395 = vpop.f32.mrb[0].mxu0
        %v1396 = vadd.f32 %v1299, %v1395
        %v1397 = vpop.f32.mrb[0].mxu0
        %1398 = vmatprep.mubr.f32.mxu0 0.0
        %1399 = vmatmul.mubr.f32.gmra.mrb[0].mxu0 %v1319
        %v1400 = vpop.f32.mrb[0].mxu0
        %v1401 = vadd.f32 %v1304, %v1400
        %v1402 = vpop.f32.mrb[0].mxu0
        %1403 = vmatprep.mubr.f32.mxu0 0.0
        %1404 = vmatmul.mubr.f32.gmra.mrb[0].mxu0 %v1322
        %v1405 = vpop.f32.mrb[0].mxu0
        %v1406 = vadd.f32 %v1309, %v1405
        %v1407 = vpop.f32.mrb[0].mxu0
        %1408 = vdwg.mxu0
        %v1409 = vld [vmem:[%s11] sm:$0xff]
        %v1410 = vld [vmem:[%s11 + $0x8] sm:$0xff]
        %v1411 = vld [vmem:[%s11 + $0x10] sm:$0xff]
        %v1412 = vld [vmem:[%s11 + $0x18] sm:$0xff]
        %v1413 = vld [vmem:[%s13] sm:$0xff]
        %v1414 = vld [vmem:[%s13 + $0x8] sm:$0xff]
        %v1415 = vld [vmem:[%s13 + $0x10] sm:$0xff]
        %v1416 = vld [vmem:[%s13 + $0x18] sm:$0xff]
        %1417 = vrot.lane.b32.xlu0 %v1279, 1
        %v1418 = vpop.permute.xlu0 %1417
        %1419 = vrot.lane.b32.xlu0 %v1280, 1
        %v1420 = vpop.permute.xlu0 %1419
        %1421 = vrot.lane.b32.xlu0 %v1281, 1
        %v1422 = vpop.permute.xlu0 %1421
        %1423 = vrot.lane.b32.xlu0 %v1282, 1
        %v1424 = vpop.permute.xlu0 %1423
        %v1425 = vsel %vm1142, %v1418, 0.0
        %v1426 = vsel %vm1142, %v1420, 0.0
        %v1427 = vsel %vm1142, %v1422, 0.0
        %v1428 = vsel %vm1142, %v1424, 0.0
        %1429 = vrot.lane.b32.xlu0 %v1279, 127
        %v1430 = vpop.permute.xlu0 %1429
        %1431 = vrot.lane.b32.xlu0 %v1280, 127
        %v1432 = vpop.permute.xlu0 %1431
        %1433 = vrot.lane.b32.xlu0 %v1281, 127
        %v1434 = vpop.permute.xlu0 %1433
        %1435 = vrot.lane.b32.xlu0 %v1282, 127
        %v1436 = vpop.permute.xlu0 %1435
        %v1437 = vsel %vm1149, %v1430, %v1425
        %v1438 = vsel %vm1149, %v1432, %v1426
        %v1439 = vsel %vm1149, %v1434, %v1427
        %v1440 = vsel %vm1149, %v1436, %v1428
        %v1441 = vsel %vm1156, %v1430, 0.0
        %v1442 = vsel %vm1156, %v1432, 0.0
        %v1443 = vsel %vm1156, %v1434, 0.0
        %v1444 = vsel %vm1156, %v1436, 0.0
        %v1445 = vsel %vm1159, %v1418, %v1441
        %v1446 = vsel %vm1159, %v1420, %v1442
        %v1447 = vsel %vm1159, %v1422, %v1443
        %v1448 = vsel %vm1159, %v1424, %v1444
        %1450 = vset.pattern.permute.xlu0 0
        %1451 = vperm.xlu0 %1450, %v1413
        %v1452 = vpop.permute.xlu0 %1451
        %1455 = vset.pattern.permute.xlu0 0
        %1456 = vperm.xlu0 %1455, %v1414
        %v1457 = vpop.permute.xlu0 %1456
        %1460 = vset.pattern.permute.xlu0 0
        %1461 = vperm.xlu0 %1460, %v1415
        %v1462 = vpop.permute.xlu0 %1461
        %1465 = vset.pattern.permute.xlu0 0
        %1466 = vperm.xlu0 %1465, %v1416
        %v1467 = vpop.permute.xlu0 %1466
        %vm1469 = vcmask 785408
        %v1471 = vsel %vm1469, %v1409, 0
        %v1474 = vsel %vm1469, %v1410, 0
        %v1477 = vsel %vm1469, %v1411, 0
        %v1480 = vsel %vm1469, %v1412, 0
        %1482 = vmatprep.subr.mxu0 0.0
        %1483 = vmatpush1.msra.mxu0 %v1437
        %1484 = vmatprep.subr.mxu0 0.0
        %1485 = vmatpush1.msra.mxu0 %v1438
        %1486 = vmatprep.subr.mxu0 0.0
        %1487 = vmatpush1.msra.mxu0 %v1439
        %1488 = vmatprep.subr.mxu0 0.0
        %1489 = vmatpush1.msra.mxu0 %v1440
        %1490 = vmatprep.subr.mxu0 0.0
        %1491 = vmatpush1.msra.mxu0 %v1279
        %1492 = vmatprep.subr.mxu0 0.0
        %1493 = vmatpush1.msra.mxu0 %v1280
        %1494 = vmatprep.subr.mxu0 0.0
        %1495 = vmatpush1.msra.mxu0 %v1281
        %1496 = vmatprep.subr.mxu0 0.0
        %1497 = vmatpush1.msra.mxu0 %v1282
        %1498 = vmatprep.subr.mxu0 0.0
        %1499 = vmatpush1.msra.mxu0 %v1445
        %1500 = vmatprep.subr.mxu0 0.0
        %1501 = vmatpush1.msra.mxu0 %v1446
        %1502 = vmatprep.subr.mxu0 0.0
        %1503 = vmatpush1.msra.mxu0 %v1447
        %1504 = vmatprep.subr.mxu0 0.0
        %1505 = vmatpush1.msra.mxu0 %v1448
        %1506 = vmatprep.subr.mxu0 0.0
        %1507 = vmatpush1.msra.mxu0 0.0
        %1508 = vmatprep.subr.mxu0 0.0
        %1509 = vmatpush1.msra.mxu0 0.0
        %1510 = vmatprep.subr.mxu0 0.0
        %1511 = vmatpush1.msra.mxu0 0.0
        %1512 = vmatprep.subr.mxu0 0.0
        %1513 = vmatpush1.msra.mxu0 0.0
        %1514 = vmatprep.subr.mxu0 0.0
        %1515 = vmatpush1.msra.mxu0 0.0
        %1516 = vmatprep.subr.mxu0 0.0
        %1517 = vmatpush1.msra.mxu0 0.0
        %1518 = vmatprep.subr.mxu0 0.0
        %1519 = vmatpush1.msra.mxu0 0.0
        %1520 = vmatprep.subr.mxu0 0.0
        %1521 = vmatpush1.msra.mxu0 0.0
        %1522 = vmatprep.subr.mxu0 0.0
        %1523 = vmatpush1.msra.mxu0 0.0
        %1524 = vmatprep.subr.mxu0 0.0
        %1525 = vmatpush1.msra.mxu0 0.0
        %1526 = vmatprep.subr.mxu0 0.0
        %1527 = vmatpush1.msra.mxu0 0.0
        %1528 = vmatprep.subr.mxu0 0.0
        %1529 = vmatpush1.msra.mxu0 0.0
        %1530 = vmatprep.subr.mxu0 0.0
        %1531 = vmatpush1.msra.mxu0 0.0
        %1532 = vmatprep.subr.mxu0 0.0
        %1533 = vmatpush1.msra.mxu0 0.0
        %1534 = vmatprep.subr.mxu0 0.0
        %1535 = vmatpush1.msra.mxu0 0.0
        %1536 = vmatprep.subr.mxu0 0.0
        %1537 = vmatpush1.msra.mxu0 0.0
        %1538 = vmatprep.subr.mxu0 0.0
        %1539 = vmatpush1.msra.mxu0 0.0
        %1540 = vmatprep.subr.mxu0 0.0
        %1541 = vmatpush1.msra.mxu0 0.0
        %1542 = vmatprep.subr.mxu0 0.0
        %1543 = vmatpush1.msra.mxu0 0.0
        %1544 = vmatprep.subr.mxu0 0.0
        %1545 = vmatpush1.msra.mxu0 0.0
        %1546 = vmatprep.mubr.f32.mxu0 0.0
        %1547 = vmatmul.mubr.f32.gmra.mrb[0].mxu0 %v1471
        %v1548 = vpop.f32.mrb[0].mxu0
        %v1549 = vadd.f32 %v1452, %v1548
        %v1550 = vpop.f32.mrb[0].mxu0
        %1551 = vmatprep.mubr.f32.mxu0 0.0
        %1552 = vmatmul.mubr.f32.gmra.mrb[0].mxu0 %v1474
        %v1553 = vpop.f32.mrb[0].mxu0
        %v1554 = vadd.f32 %v1457, %v1553
        %v1555 = vpop.f32.mrb[0].mxu0
        %1556 = vmatprep.mubr.f32.mxu0 0.0
        %1557 = vmatmul.mubr.f32.gmra.mrb[0].mxu0 %v1477
        %v1558 = vpop.f32.mrb[0].mxu0
        %v1559 = vadd.f32 %v1462, %v1558
        %v1560 = vpop.f32.mrb[0].mxu0
        %1561 = vmatprep.mubr.f32.mxu0 0.0
        %1562 = vmatmul.mubr.f32.gmra.mrb[0].mxu0 %v1480
        %v1563 = vpop.f32.mrb[0].mxu0
        %v1564 = vadd.f32 %v1467, %v1563
        %v1565 = vpop.f32.mrb[0].mxu0
        %1566 = vdwg.mxu0
        %v1567 = vmax.f32 %v1549, 0.0
        %v1568 = vmax.f32 %v1554, 0.0
        %v1569 = vmax.f32 %v1559, 0.0
        %v1570 = vmax.f32 %v1564, 0.0
        %v1571 = vld [vmem:[%s15] sm:$0xff]
        %v1572 = vld [vmem:[%s15 + $0x8] sm:$0xff]
        %v1573 = vld [vmem:[%s15 + $0x10] sm:$0xff]
        %v1574 = vld [vmem:[%s15 + $0x18] sm:$0xff]
        %v1575 = vld [vmem:[%s17] sm:$0xff]
        %v1576 = vld [vmem:[%s17 + $0x8] sm:$0xff]
        %v1577 = vld [vmem:[%s17 + $0x10] sm:$0xff]
        %v1578 = vld [vmem:[%s17 + $0x18] sm:$0xff]
        %1579 = vrot.lane.b32.xlu0 %v1567, 1
        %v1580 = vpop.permute.xlu0 %1579
        %1581 = vrot.lane.b32.xlu0 %v1568, 1
        %v1582 = vpop.permute.xlu0 %1581
        %1583 = vrot.lane.b32.xlu0 %v1569, 1
        %v1584 = vpop.permute.xlu0 %1583
        %1585 = vrot.lane.b32.xlu0 %v1570, 1
        %v1586 = vpop.permute.xlu0 %1585
        %v1587 = vsel %vm1142, %v1580, 0.0
        %v1588 = vsel %vm1142, %v1582, 0.0
        %v1589 = vsel %vm1142, %v1584, 0.0
        %v1590 = vsel %vm1142, %v1586, 0.0
        %1591 = vrot.lane.b32.xlu0 %v1567, 127
        %v1592 = vpop.permute.xlu0 %1591
        %1593 = vrot.lane.b32.xlu0 %v1568, 127
        %v1594 = vpop.permute.xlu0 %1593
        %1595 = vrot.lane.b32.xlu0 %v1569, 127
        %v1596 = vpop.permute.xlu0 %1595
        %1597 = vrot.lane.b32.xlu0 %v1570, 127
        %v1598 = vpop.permute.xlu0 %1597
        %v1599 = vsel %vm1149, %v1592, %v1587
        %v1600 = vsel %vm1149, %v1594, %v1588
        %v1601 = vsel %vm1149, %v1596, %v1589
        %v1602 = vsel %vm1149, %v1598, %v1590
        %v1603 = vsel %vm1156, %v1592, 0.0
        %v1604 = vsel %vm1156, %v1594, 0.0
        %v1605 = vsel %vm1156, %v1596, 0.0
        %v1606 = vsel %vm1156, %v1598, 0.0
        %v1607 = vsel %vm1159, %v1580, %v1603
        %v1608 = vsel %vm1159, %v1582, %v1604
        %v1609 = vsel %vm1159, %v1584, %v1605
        %v1610 = vsel %vm1159, %v1586, %v1606
        %1612 = vset.pattern.permute.xlu0 0
        %1613 = vperm.xlu0 %1612, %v1575
        %v1614 = vpop.permute.xlu0 %1613
        %1617 = vset.pattern.permute.xlu0 0
        %1618 = vperm.xlu0 %1617, %v1576
        %v1619 = vpop.permute.xlu0 %1618
        %1622 = vset.pattern.permute.xlu0 0
        %1623 = vperm.xlu0 %1622, %v1577
        %v1624 = vpop.permute.xlu0 %1623
        %1627 = vset.pattern.permute.xlu0 0
        %1628 = vperm.xlu0 %1627, %v1578
        %v1629 = vpop.permute.xlu0 %1628
        %v1632 = vsel %vm1469, %v1571, 0
        %v1635 = vsel %vm1469, %v1572, 0
        %v1638 = vsel %vm1469, %v1573, 0
        %v1641 = vsel %vm1469, %v1574, 0
        %1643 = vmatprep.subr.mxu0 0.0
        %1644 = vmatpush1.msra.mxu0 %v1599
        %1645 = vmatprep.subr.mxu0 0.0
        %1646 = vmatpush1.msra.mxu0 %v1600
        %1647 = vmatprep.subr.mxu0 0.0
        %1648 = vmatpush1.msra.mxu0 %v1601
        %1649 = vmatprep.subr.mxu0 0.0
        %1650 = vmatpush1.msra.mxu0 %v1602
        %1651 = vmatprep.subr.mxu0 0.0
        %1652 = vmatpush1.msra.mxu0 %v1567
        %1653 = vmatprep.subr.mxu0 0.0
        %1654 = vmatpush1.msra.mxu0 %v1568
        %1655 = vmatprep.subr.mxu0 0.0
        %1656 = vmatpush1.msra.mxu0 %v1569
        %1657 = vmatprep.subr.mxu0 0.0
        %1658 = vmatpush1.msra.mxu0 %v1570
        %1659 = vmatprep.subr.mxu0 0.0
        %1660 = vmatpush1.msra.mxu0 %v1607
        %1661 = vmatprep.subr.mxu0 0.0
        %1662 = vmatpush1.msra.mxu0 %v1608
        %1663 = vmatprep.subr.mxu0 0.0
        %1664 = vmatpush1.msra.mxu0 %v1609
        %1665 = vmatprep.subr.mxu0 0.0
        %1666 = vmatpush1.msra.mxu0 %v1610
        %1667 = vmatprep.subr.mxu0 0.0
        %1668 = vmatpush1.msra.mxu0 0.0
        %1669 = vmatprep.subr.mxu0 0.0
        %1670 = vmatpush1.msra.mxu0 0.0
        %1671 = vmatprep.subr.mxu0 0.0
        %1672 = vmatpush1.msra.mxu0 0.0
        %1673 = vmatprep.subr.mxu0 0.0
        %1674 = vmatpush1.msra.mxu0 0.0
        %1675 = vmatprep.subr.mxu0 0.0
        %1676 = vmatpush1.msra.mxu0 0.0
        %1677 = vmatprep.subr.mxu0 0.0
        %1678 = vmatpush1.msra.mxu0 0.0
        %1679 = vmatprep.subr.mxu0 0.0
        %1680 = vmatpush1.msra.mxu0 0.0
        %1681 = vmatprep.subr.mxu0 0.0
        %1682 = vmatpush1.msra.mxu0 0.0
        %1683 = vmatprep.subr.mxu0 0.0
        %1684 = vmatpush1.msra.mxu0 0.0
        %1685 = vmatprep.subr.mxu0 0.0
        %1686 = vmatpush1.msra.mxu0 0.0
        %1687 = vmatprep.subr.mxu0 0.0
        %1688 = vmatpush1.msra.mxu0 0.0
        %1689 = vmatprep.subr.mxu0 0.0
        %1690 = vmatpush1.msra.mxu0 0.0
        %1691 = vmatprep.subr.mxu0 0.0
        %1692 = vmatpush1.msra.mxu0 0.0
        %1693 = vmatprep.subr.mxu0 0.0
        %1694 = vmatpush1.msra.mxu0 0.0
        %1695 = vmatprep.subr.mxu0 0.0
        %1696 = vmatpush1.msra.mxu0 0.0
        %1697 = vmatprep.subr.mxu0 0.0
        %1698 = vmatpush1.msra.mxu0 0.0
        %1699 = vmatprep.subr.mxu0 0.0
        %1700 = vmatpush1.msra.mxu0 0.0
        %1701 = vmatprep.subr.mxu0 0.0
        %1702 = vmatpush1.msra.mxu0 0.0
        %1703 = vmatprep.subr.mxu0 0.0
        %1704 = vmatpush1.msra.mxu0 0.0
        %1705 = vmatprep.subr.mxu0 0.0
        %1706 = vmatpush1.msra.mxu0 0.0
        %1707 = vmatprep.mubr.f32.mxu0 0.0
        %1708 = vmatmul.mubr.f32.gmra.mrb[0].mxu0 %v1632
        %v1709 = vpop.f32.mrb[0].mxu0
        %v1710 = vadd.f32 %v1614, %v1709
        %v1711 = vpop.f32.mrb[0].mxu0
        %1712 = vmatprep.mubr.f32.mxu0 0.0
        %1713 = vmatmul.mubr.f32.gmra.mrb[0].mxu0 %v1635
        %v1714 = vpop.f32.mrb[0].mxu0
        %v1715 = vadd.f32 %v1619, %v1714
        %v1716 = vpop.f32.mrb[0].mxu0
        %1717 = vmatprep.mubr.f32.mxu0 0.0
        %1718 = vmatmul.mubr.f32.gmra.mrb[0].mxu0 %v1638
        %v1719 = vpop.f32.mrb[0].mxu0
        %v1720 = vadd.f32 %v1624, %v1719
        %v1721 = vpop.f32.mrb[0].mxu0
        %1722 = vmatprep.mubr.f32.mxu0 0.0
        %1723 = vmatmul.mubr.f32.gmra.mrb[0].mxu0 %v1641
        %v1724 = vpop.f32.mrb[0].mxu0
        %v1725 = vadd.f32 %v1629, %v1724
        %v1726 = vpop.f32.mrb[0].mxu0
        %1727 = vdwg.mxu0
        %v1728 = vadd.f32 %v1710, %v1391
        %v1729 = vadd.f32 %v1715, %v1396
        %v1730 = vadd.f32 %v1720, %v1401
        %v1731 = vadd.f32 %v1725, %v1406
        %v1732 = vmax.f32 %v1728, 0.0
        %v1733 = vmax.f32 %v1729, 0.0
        %v1734 = vmax.f32 %v1730, 0.0
        %v1735 = vmax.f32 %v1731, 0.0
        %v1736 = vld [vmem:[%s19] sm:$0xff]
        %v1737 = vld [vmem:[%s19 + $0x8] sm:$0xff]
        %v1738 = vld [vmem:[%s19 + $0x10] sm:$0xff]
        %v1739 = vld [vmem:[%s19 + $0x18] sm:$0xff]
        %v1740 = vld [vmem:[%s21] sm:$0xff]
        %v1741 = vld [vmem:[%s21 + $0x8] sm:$0xff]
        %v1742 = vld [vmem:[%s21 + $0x10] sm:$0xff]
        %v1743 = vld [vmem:[%s21 + $0x18] sm:$0xff]
        %1745 = vset.pattern.permute.xlu0 0
        %1746 = vperm.xlu0 %1745, %v1740
        %v1747 = vpop.permute.xlu0 %1746
        %1750 = vset.pattern.permute.xlu0 0
        %1751 = vperm.xlu0 %1750, %v1741
        %v1752 = vpop.permute.xlu0 %1751
        %1755 = vset.pattern.permute.xlu0 0
        %1756 = vperm.xlu0 %1755, %v1742
        %v1757 = vpop.permute.xlu0 %1756
        %1760 = vset.pattern.permute.xlu0 0
        %1761 = vperm.xlu0 %1760, %v1743
        %v1762 = vpop.permute.xlu0 %1761
        %v1765 = vsel %vm1311, %v1736, 0
        %v1768 = vsel %vm1311, %v1737, 0
        %v1771 = vsel %vm1311, %v1738, 0
        %v1774 = vsel %vm1311, %v1739, 0
        %1776 = vmatprep.subr.mxu0 0.0
        %1777 = vmatpush1.msra.mxu0 %v1732
        %1778 = vmatprep.subr.mxu0 0.0
        %1779 = vmatpush1.msra.mxu0 %v1733
        %1780 = vmatprep.subr.mxu0 0.0
        %1781 = vmatpush1.msra.mxu0 %v1734
        %1782 = vmatprep.subr.mxu0 0.0
        %1783 = vmatpush1.msra.mxu0 %v1735
        %1784 = vmatprep.subr.mxu0 0.0
        %1785 = vmatpush1.msra.mxu0 0.0
        %1786 = vmatprep.subr.mxu0 0.0
        %1787 = vmatpush1.msra.mxu0 0.0
        %1788 = vmatprep.subr.mxu0 0.0
        %1789 = vmatpush1.msra.mxu0 0.0
        %1790 = vmatprep.subr.mxu0 0.0
        %1791 = vmatpush1.msra.mxu0 0.0
        %1792 = vmatprep.subr.mxu0 0.0
        %1793 = vmatpush1.msra.mxu0 0.0
        %1794 = vmatprep.subr.mxu0 0.0
        %1795 = vmatpush1.msra.mxu0 0.0
        %1796 = vmatprep.subr.mxu0 0.0
        %1797 = vmatpush1.msra.mxu0 0.0
        %1798 = vmatprep.subr.mxu0 0.0
        %1799 = vmatpush1.msra.mxu0 0.0
        %1800 = vmatprep.subr.mxu0 0.0
        %1801 = vmatpush1.msra.mxu0 0.0
        %1802 = vmatprep.subr.mxu0 0.0
        %1803 = vmatpush1.msra.mxu0 0.0
        %1804 = vmatprep.subr.mxu0 0.0
        %1805 = vmatpush1.msra.mxu0 0.0
        %1806 = vmatprep.subr.mxu0 0.0
        %1807 = vmatpush1.msra.mxu0 0.0
        %1808 = vmatprep.subr.mxu0 0.0
        %1809 = vmatpush1.msra.mxu0 0.0
        %1810 = vmatprep.subr.mxu0 0.0
        %1811 = vmatpush1.msra.mxu0 0.0
        %1812 = vmatprep.subr.mxu0 0.0
        %1813 = vmatpush1.msra.mxu0 0.0
        %1814 = vmatprep.subr.mxu0 0.0
        %1815 = vmatpush1.msra.mxu0 0.0
        %1816 = vmatprep.subr.mxu0 0.0
        %1817 = vmatpush1.msra.mxu0 0.0
        %1818 = vmatprep.subr.mxu0 0.0
        %1819 = vmatpush1.msra.mxu0 0.0
        %1820 = vmatprep.subr.mxu0 0.0
        %1821 = vmatpush1.msra.mxu0 0.0
        %1822 = vmatprep.subr.mxu0 0.0
        %1823 = vmatpush1.msra.mxu0 0.0
        %1824 = vmatprep.subr.mxu0 0.0
        %1825 = vmatpush1.msra.mxu0 0.0
        %1826 = vmatprep.subr.mxu0 0.0
        %1827 = vmatpush1.msra.mxu0 0.0
        %1828 = vmatprep.subr.mxu0 0.0
        %1829 = vmatpush1.msra.mxu0 0.0
        %1830 = vmatprep.subr.mxu0 0.0
        %1831 = vmatpush1.msra.mxu0 0.0
        %1832 = vmatprep.subr.mxu0 0.0
        %1833 = vmatpush1.msra.mxu0 0.0
        %1834 = vmatprep.subr.mxu0 0.0
        %1835 = vmatpush1.msra.mxu0 0.0
        %1836 = vmatprep.subr.mxu0 0.0
        %1837 = vmatpush1.msra.mxu0 0.0
        %1838 = vmatprep.subr.mxu0 0.0
        %1839 = vmatpush1.msra.mxu0 0.0
        %1840 = vmatprep.mubr.f32.mxu0 0.0
        %1841 = vmatmul.mubr.f32.gmra.mrb[0].mxu0 %v1765
        %v1842 = vpop.f32.mrb[0].mxu0
        %v1843 = vadd.f32 %v1747, %v1842
        %v1844 = vpop.f32.mrb[0].mxu0
        %1845 = vmatprep.mubr.f32.mxu0 0.0
        %1846 = vmatmul.mubr.f32.gmra.mrb[0].mxu0 %v1768
        %v1847 = vpop.f32.mrb[0].mxu0
        %v1848 = vadd.f32 %v1752, %v1847
        %v1849 = vpop.f32.mrb[0].mxu0
        %1850 = vmatprep.mubr.f32.mxu0 0.0
        %1851 = vmatmul.mubr.f32.gmra.mrb[0].mxu0 %v1771
        %v1852 = vpop.f32.mrb[0].mxu0
        %v1853 = vadd.f32 %v1757, %v1852
        %v1854 = vpop.f32.mrb[0].mxu0
        %1855 = vmatprep.mubr.f32.mxu0 0.0
        %1856 = vmatmul.mubr.f32.gmra.mrb[0].mxu0 %v1774
        %v1857 = vpop.f32.mrb[0].mxu0
        %v1858 = vadd.f32 %v1762, %v1857
        %v1859 = vpop.f32.mrb[0].mxu0
        %1860 = vdwg.mxu0
        %v1861 = vld [vmem:[%s23] sm:$0xff]
        %v1862 = vld [vmem:[%s23 + $0x8] sm:$0xff]
        %v1863 = vld [vmem:[%s23 + $0x10] sm:$0xff]
        %v1864 = vld [vmem:[%s23 + $0x18] sm:$0xff]
        %v1865 = vld [vmem:[%s25] sm:$0xff]
        %v1866 = vld [vmem:[%s25 + $0x8] sm:$0xff]
        %v1867 = vld [vmem:[%s25 + $0x10] sm:$0xff]
        %v1868 = vld [vmem:[%s25 + $0x18] sm:$0xff]
        %1869 = vrot.lane.b32.xlu0 %v1732, 1
        %v1870 = vpop.permute.xlu0 %1869
        %1871 = vrot.lane.b32.xlu0 %v1733, 1
        %v1872 = vpop.permute.xlu0 %1871
        %1873 = vrot.lane.b32.xlu0 %v1734, 1
        %v1874 = vpop.permute.xlu0 %1873
        %1875 = vrot.lane.b32.xlu0 %v1735, 1
        %v1876 = vpop.permute.xlu0 %1875
        %v1877 = vsel %vm1142, %v1870, 0.0
        %v1878 = vsel %vm1142, %v1872, 0.0
        %v1879 = vsel %vm1142, %v1874, 0.0
        %v1880 = vsel %vm1142, %v1876, 0.0
        %1881 = vrot.lane.b32.xlu0 %v1732, 127
        %v1882 = vpop.permute.xlu0 %1881
        %1883 = vrot.lane.b32.xlu0 %v1733, 127
        %v1884 = vpop.permute.xlu0 %1883
        %1885 = vrot.lane.b32.xlu0 %v1734, 127
        %v1886 = vpop.permute.xlu0 %1885
        %1887 = vrot.lane.b32.xlu0 %v1735, 127
        %v1888 = vpop.permute.xlu0 %1887
        %v1889 = vsel %vm1149, %v1882, %v1877
        %v1890 = vsel %vm1149, %v1884, %v1878
        %v1891 = vsel %vm1149, %v1886, %v1879
        %v1892 = vsel %vm1149, %v1888, %v1880
        %v1893 = vsel %vm1156, %v1882, 0.0
        %v1894 = vsel %vm1156, %v1884, 0.0
        %v1895 = vsel %vm1156, %v1886, 0.0
        %v1896 = vsel %vm1156, %v1888, 0.0
        %v1897 = vsel %vm1159, %v1870, %v1893
        %v1898 = vsel %vm1159, %v1872, %v1894
        %v1899 = vsel %vm1159, %v1874, %v1895
        %v1900 = vsel %vm1159, %v1876, %v1896
        %1902 = vset.pattern.permute.xlu0 0
        %1903 = vperm.xlu0 %1902, %v1865
        %v1904 = vpop.permute.xlu0 %1903
        %1907 = vset.pattern.permute.xlu0 0
        %1908 = vperm.xlu0 %1907, %v1866
        %v1909 = vpop.permute.xlu0 %1908
        %1912 = vset.pattern.permute.xlu0 0
        %1913 = vperm.xlu0 %1912, %v1867
        %v1914 = vpop.permute.xlu0 %1913
        %1917 = vset.pattern.permute.xlu0 0
        %1918 = vperm.xlu0 %1917, %v1868
        %v1919 = vpop.permute.xlu0 %1918
        %v1922 = vsel %vm1469, %v1861, 0
        %v1925 = vsel %vm1469, %v1862, 0
        %v1928 = vsel %vm1469, %v1863, 0
        %v1931 = vsel %vm1469, %v1864, 0
        %1933 = vmatprep.subr.mxu0 0.0
        %1934 = vmatpush1.msra.mxu0 %v1889
        %1935 = vmatprep.subr.mxu0 0.0
        %1936 = vmatpush1.msra.mxu0 %v1890
        %1937 = vmatprep.subr.mxu0 0.0
        %1938 = vmatpush1.msra.mxu0 %v1891
        %1939 = vmatprep.subr.mxu0 0.0
        %1940 = vmatpush1.msra.mxu0 %v1892
        %1941 = vmatprep.subr.mxu0 0.0
        %1942 = vmatpush1.msra.mxu0 %v1732
        %1943 = vmatprep.subr.mxu0 0.0
        %1944 = vmatpush1.msra.mxu0 %v1733
        %1945 = vmatprep.subr.mxu0 0.0
        %1946 = vmatpush1.msra.mxu0 %v1734
        %1947 = vmatprep.subr.mxu0 0.0
        %1948 = vmatpush1.msra.mxu0 %v1735
        %1949 = vmatprep.subr.mxu0 0.0
        %1950 = vmatpush1.msra.mxu0 %v1897
        %1951 = vmatprep.subr.mxu0 0.0
        %1952 = vmatpush1.msra.mxu0 %v1898
        %1953 = vmatprep.subr.mxu0 0.0
        %1954 = vmatpush1.msra.mxu0 %v1899
        %1955 = vmatprep.subr.mxu0 0.0
        %1956 = vmatpush1.msra.mxu0 %v1900
        %1957 = vmatprep.subr.mxu0 0.0
        %1958 = vmatpush1.msra.mxu0 0.0
        %1959 = vmatprep.subr.mxu0 0.0
        %1960 = vmatpush1.msra.mxu0 0.0
        %1961 = vmatprep.subr.mxu0 0.0
        %1962 = vmatpush1.msra.mxu0 0.0
        %1963 = vmatprep.subr.mxu0 0.0
        %1964 = vmatpush1.msra.mxu0 0.0
        %1965 = vmatprep.subr.mxu0 0.0
        %1966 = vmatpush1.msra.mxu0 0.0
        %1967 = vmatprep.subr.mxu0 0.0
        %1968 = vmatpush1.msra.mxu0 0.0
        %1969 = vmatprep.subr.mxu0 0.0
        %1970 = vmatpush1.msra.mxu0 0.0
        %1971 = vmatprep.subr.mxu0 0.0
        %1972 = vmatpush1.msra.mxu0 0.0
        %1973 = vmatprep.subr.mxu0 0.0
        %1974 = vmatpush1.msra.mxu0 0.0
        %1975 = vmatprep.subr.mxu0 0.0
        %1976 = vmatpush1.msra.mxu0 0.0
        %1977 = vmatprep.subr.mxu0 0.0
        %1978 = vmatpush1.msra.mxu0 0.0
        %1979 = vmatprep.subr.mxu0 0.0
        %1980 = vmatpush1.msra.mxu0 0.0
        %1981 = vmatprep.subr.mxu0 0.0
        %1982 = vmatpush1.msra.mxu0 0.0
        %1983 = vmatprep.subr.mxu0 0.0
        %1984 = vmatpush1.msra.mxu0 0.0
        %1985 = vmatprep.subr.mxu0 0.0
        %1986 = vmatpush1.msra.mxu0 0.0
        %1987 = vmatprep.subr.mxu0 0.0
        %1988 = vmatpush1.msra.mxu0 0.0
        %1989 = vmatprep.subr.mxu0 0.0
        %1990 = vmatpush1.msra.mxu0 0.0
        %1991 = vmatprep.subr.mxu0 0.0
        %1992 = vmatpush1.msra.mxu0 0.0
        %1993 = vmatprep.subr.mxu0 0.0
        %1994 = vmatpush1.msra.mxu0 0.0
        %1995 = vmatprep.subr.mxu0 0.0
        %1996 = vmatpush1.msra.mxu0 0.0
        %1997 = vmatprep.mubr.f32.mxu0 0.0
        %1998 = vmatmul.mubr.f32.gmra.mrb[0].mxu0 %v1922
        %v1999 = vpop.f32.mrb[0].mxu0
        %v2000 = vadd.f32 %v1904, %v1999
        %v2001 = vpop.f32.mrb[0].mxu0
        %2002 = vmatprep.mubr.f32.mxu0 0.0
        %2003 = vmatmul.mubr.f32.gmra.mrb[0].mxu0 %v1925
        %v2004 = vpop.f32.mrb[0].mxu0
        %v2005 = vadd.f32 %v1909, %v2004
        %v2006 = vpop.f32.mrb[0].mxu0
        %2007 = vmatprep.mubr.f32.mxu0 0.0
        %2008 = vmatmul.mubr.f32.gmra.mrb[0].mxu0 %v1928
        %v2009 = vpop.f32.mrb[0].mxu0
        %v2010 = vadd.f32 %v1914, %v2009
        %v2011 = vpop.f32.mrb[0].mxu0
        %2012 = vmatprep.mubr.f32.mxu0 0.0
        %2013 = vmatmul.mubr.f32.gmra.mrb[0].mxu0 %v1931
        %v2014 = vpop.f32.mrb[0].mxu0
        %v2015 = vadd.f32 %v1919, %v2014
        %v2016 = vpop.f32.mrb[0].mxu0
        %2017 = vdwg.mxu0
        %v2018 = vmax.f32 %v2000, 0.0
        %v2019 = vmax.f32 %v2005, 0.0
        %v2020 = vmax.f32 %v2010, 0.0
        %v2021 = vmax.f32 %v2015, 0.0
        %v2022 = vld [vmem:[%s27] sm:$0xff]
        %v2023 = vld [vmem:[%s27 + $0x8] sm:$0xff]
        %v2024 = vld [vmem:[%s27 + $0x10] sm:$0xff]
        %v2025 = vld [vmem:[%s27 + $0x18] sm:$0xff]
        %v2026 = vld [vmem:[%s29] sm:$0xff]
        %v2027 = vld [vmem:[%s29 + $0x8] sm:$0xff]
        %v2028 = vld [vmem:[%s29 + $0x10] sm:$0xff]
        %v2029 = vld [vmem:[%s29 + $0x18] sm:$0xff]
        %2030 = vrot.lane.b32.xlu0 %v2018, 1
        %v2031 = vpop.permute.xlu0 %2030
        %2032 = vrot.lane.b32.xlu0 %v2019, 1
        %v2033 = vpop.permute.xlu0 %2032
        %2034 = vrot.lane.b32.xlu0 %v2020, 1
        %v2035 = vpop.permute.xlu0 %2034
        %2036 = vrot.lane.b32.xlu0 %v2021, 1
        %v2037 = vpop.permute.xlu0 %2036
        %v2038 = vsel %vm1142, %v2031, 0.0
        %v2039 = vsel %vm1142, %v2033, 0.0
        %v2040 = vsel %vm1142, %v2035, 0.0
        %v2041 = vsel %vm1142, %v2037, 0.0
        %2042 = vrot.lane.b32.xlu0 %v2018, 127
        %v2043 = vpop.permute.xlu0 %2042
        %2044 = vrot.lane.b32.xlu0 %v2019, 127
        %v2045 = vpop.permute.xlu0 %2044
        %2046 = vrot.lane.b32.xlu0 %v2020, 127
        %v2047 = vpop.permute.xlu0 %2046
        %2048 = vrot.lane.b32.xlu0 %v2021, 127
        %v2049 = vpop.permute.xlu0 %2048
        %v2050 = vsel %vm1149, %v2043, %v2038
        %v2051 = vsel %vm1149, %v2045, %v2039
        %v2052 = vsel %vm1149, %v2047, %v2040
        %v2053 = vsel %vm1149, %v2049, %v2041
        %v2054 = vsel %vm1156, %v2043, 0.0
        %v2055 = vsel %vm1156, %v2045, 0.0
        %v2056 = vsel %vm1156, %v2047, 0.0
        %v2057 = vsel %vm1156, %v2049, 0.0
        %v2058 = vsel %vm1159, %v2031, %v2054
        %v2059 = vsel %vm1159, %v2033, %v2055
        %v2060 = vsel %vm1159, %v2035, %v2056
        %v2061 = vsel %vm1159, %v2037, %v2057
        %2063 = vset.pattern.permute.xlu0 0
        %2064 = vperm.xlu0 %2063, %v2026
        %v2065 = vpop.permute.xlu0 %2064
        %2068 = vset.pattern.permute.xlu0 0
        %2069 = vperm.xlu0 %2068, %v2027
        %v2070 = vpop.permute.xlu0 %2069
        %2073 = vset.pattern.permute.xlu0 0
        %2074 = vperm.xlu0 %2073, %v2028
        %v2075 = vpop.permute.xlu0 %2074
        %2078 = vset.pattern.permute.xlu0 0
        %2079 = vperm.xlu0 %2078, %v2029
        %v2080 = vpop.permute.xlu0 %2079
        %v2083 = vsel %vm1469, %v2022, 0
        %v2086 = vsel %vm1469, %v2023, 0
        %v2089 = vsel %vm1469, %v2024, 0
        %v2092 = vsel %vm1469, %v2025, 0
        %2094 = vmatprep.subr.mxu0 0.0
        %2095 = vmatpush1.msra.mxu0 %v2050
        %2096 = vmatprep.subr.mxu0 0.0
        %2097 = vmatpush1.msra.mxu0 %v2051
        %2098 = vmatprep.subr.mxu0 0.0
        %2099 = vmatpush1.msra.mxu0 %v2052
        %2100 = vmatprep.subr.mxu0 0.0
        %2101 = vmatpush1.msra.mxu0 %v2053
        %2102 = vmatprep.subr.mxu0 0.0
        %2103 = vmatpush1.msra.mxu0 %v2018
        %2104 = vmatprep.subr.mxu0 0.0
        %2105 = vmatpush1.msra.mxu0 %v2019
        %2106 = vmatprep.subr.mxu0 0.0
        %2107 = vmatpush1.msra.mxu0 %v2020
        %2108 = vmatprep.subr.mxu0 0.0
        %2109 = vmatpush1.msra.mxu0 %v2021
        %2110 = vmatprep.subr.mxu0 0.0
        %2111 = vmatpush1.msra.mxu0 %v2058
        %2112 = vmatprep.subr.mxu0 0.0
        %2113 = vmatpush1.msra.mxu0 %v2059
        %2114 = vmatprep.subr.mxu0 0.0
        %2115 = vmatpush1.msra.mxu0 %v2060
        %2116 = vmatprep.subr.mxu0 0.0
        %2117 = vmatpush1.msra.mxu0 %v2061
        %2118 = vmatprep.subr.mxu0 0.0
        %2119 = vmatpush1.msra.mxu0 0.0
        %2120 = vmatprep.subr.mxu0 0.0
        %2121 = vmatpush1.msra.mxu0 0.0
        %2122 = vmatprep.subr.mxu0 0.0
        %2123 = vmatpush1.msra.mxu0 0.0
        %2124 = vmatprep.subr.mxu0 0.0
        %2125 = vmatpush1.msra.mxu0 0.0
        %2126 = vmatprep.subr.mxu0 0.0
        %2127 = vmatpush1.msra.mxu0 0.0
        %2128 = vmatprep.subr.mxu0 0.0
        %2129 = vmatpush1.msra.mxu0 0.0
        %2130 = vmatprep.subr.mxu0 0.0
        %2131 = vmatpush1.msra.mxu0 0.0
        %2132 = vmatprep.subr.mxu0 0.0
        %2133 = vmatpush1.msra.mxu0 0.0
        %2134 = vmatprep.subr.mxu0 0.0
        %2135 = vmatpush1.msra.mxu0 0.0
        %2136 = vmatprep.subr.mxu0 0.0
        %2137 = vmatpush1.msra.mxu0 0.0
        %2138 = vmatprep.subr.mxu0 0.0
        %2139 = vmatpush1.msra.mxu0 0.0
        %2140 = vmatprep.subr.mxu0 0.0
        %2141 = vmatpush1.msra.mxu0 0.0
        %2142 = vmatprep.subr.mxu0 0.0
        %2143 = vmatpush1.msra.mxu0 0.0
        %2144 = vmatprep.subr.mxu0 0.0
        %2145 = vmatpush1.msra.mxu0 0.0
        %2146 = vmatprep.subr.mxu0 0.0
        %2147 = vmatpush1.msra.mxu0 0.0
        %2148 = vmatprep.subr.mxu0 0.0
        %2149 = vmatpush1.msra.mxu0 0.0
        %2150 = vmatprep.subr.mxu0 0.0
        %2151 = vmatpush1.msra.mxu0 0.0
        %2152 = vmatprep.subr.mxu0 0.0
        %2153 = vmatpush1.msra.mxu0 0.0
        %2154 = vmatprep.subr.mxu0 0.0
        %2155 = vmatpush1.msra.mxu0 0.0
        %2156 = vmatprep.subr.mxu0 0.0
        %2157 = vmatpush1.msra.mxu0 0.0
        %2158 = vmatprep.mubr.f32.mxu0 0.0
        %2159 = vmatmul.mubr.f32.gmra.mrb[0].mxu0 %v2083
        %v2160 = vpop.f32.mrb[0].mxu0
        %v2161 = vadd.f32 %v2065, %v2160
        %v2162 = vpop.f32.mrb[0].mxu0
        %2163 = vmatprep.mubr.f32.mxu0 0.0
        %2164 = vmatmul.mubr.f32.gmra.mrb[0].mxu0 %v2086
        %v2165 = vpop.f32.mrb[0].mxu0
        %v2166 = vadd.f32 %v2070, %v2165
        %v2167 = vpop.f32.mrb[0].mxu0
        %2168 = vmatprep.mubr.f32.mxu0 0.0
        %2169 = vmatmul.mubr.f32.gmra.mrb[0].mxu0 %v2089
        %v2170 = vpop.f32.mrb[0].mxu0
        %v2171 = vadd.f32 %v2075, %v2170
        %v2172 = vpop.f32.mrb[0].mxu0
        %2173 = vmatprep.mubr.f32.mxu0 0.0
        %2174 = vmatmul.mubr.f32.gmra.mrb[0].mxu0 %v2092
        %v2175 = vpop.f32.mrb[0].mxu0
        %v2176 = vadd.f32 %v2080, %v2175
        %v2177 = vpop.f32.mrb[0].mxu0
        %2178 = vdwg.mxu0
        %v2179 = vadd.f32 %v2161, %v1843
        %v2180 = vadd.f32 %v2166, %v1848
        %v2181 = vadd.f32 %v2171, %v1853
        %v2182 = vadd.f32 %v2176, %v1858
        %v2183 = vmax.f32 %v2179, 0.0
        %v2184 = vmax.f32 %v2180, 0.0
        %v2185 = vmax.f32 %v2181, 0.0
        %v2186 = vmax.f32 %v2182, 0.0
        %v2187 = vld [vmem:[%s31] sm:$0xff]
        %v2188 = vld [vmem:[%s31 + $0x8] sm:$0xff]
        %v2189 = vld [vmem:[%s31 + $0x10] sm:$0xff]
        %v2190 = vld [vmem:[%s31 + $0x18] sm:$0xff]
        %v2191 = vld [vmem:[%s33] sm:$0xff]
        %v2192 = vld [vmem:[%s33 + $0x8] sm:$0xff]
        %v2193 = vld [vmem:[%s33 + $0x10] sm:$0xff]
        %v2194 = vld [vmem:[%s33 + $0x18] sm:$0xff]
        %2196 = vset.pattern.permute.xlu0 0
        %2197 = vperm.xlu0 %2196, %v2191
        %v2198 = vpop.permute.xlu0 %2197
        %2201 = vset.pattern.permute.xlu0 0
        %2202 = vperm.xlu0 %2201, %v2192
        %v2203 = vpop.permute.xlu0 %2202
        %2206 = vset.pattern.permute.xlu0 0
        %2207 = vperm.xlu0 %2206, %v2193
        %v2208 = vpop.permute.xlu0 %2207
        %2211 = vset.pattern.permute.xlu0 0
        %2212 = vperm.xlu0 %2211, %v2194
        %v2213 = vpop.permute.xlu0 %2212
        %v2216 = vsel %vm1311, %v2187, 0
        %v2219 = vsel %vm1311, %v2188, 0
        %v2222 = vsel %vm1311, %v2189, 0
        %v2225 = vsel %vm1311, %v2190, 0
        %2227 = vmatprep.subr.mxu0 0.0
        %2228 = vmatpush1.msra.mxu0 %v2183
        %2229 = vmatprep.subr.mxu0 0.0
        %2230 = vmatpush1.msra.mxu0 %v2184
        %2231 = vmatprep.subr.mxu0 0.0
        %2232 = vmatpush1.msra.mxu0 %v2185
        %2233 = vmatprep.subr.mxu0 0.0
        %2234 = vmatpush1.msra.mxu0 %v2186
        %2235 = vmatprep.subr.mxu0 0.0
        %2236 = vmatpush1.msra.mxu0 0.0
        %2237 = vmatprep.subr.mxu0 0.0
        %2238 = vmatpush1.msra.mxu0 0.0
        %2239 = vmatprep.subr.mxu0 0.0
        %2240 = vmatpush1.msra.mxu0 0.0
        %2241 = vmatprep.subr.mxu0 0.0
        %2242 = vmatpush1.msra.mxu0 0.0
        %2243 = vmatprep.subr.mxu0 0.0
        %2244 = vmatpush1.msra.mxu0 0.0
        %2245 = vmatprep.subr.mxu0 0.0
        %2246 = vmatpush1.msra.mxu0 0.0
        %2247 = vmatprep.subr.mxu0 0.0
        %2248 = vmatpush1.msra.mxu0 0.0
        %2249 = vmatprep.subr.mxu0 0.0
        %2250 = vmatpush1.msra.mxu0 0.0
        %2251 = vmatprep.subr.mxu0 0.0
        %2252 = vmatpush1.msra.mxu0 0.0
        %2253 = vmatprep.subr.mxu0 0.0
        %2254 = vmatpush1.msra.mxu0 0.0
        %2255 = vmatprep.subr.mxu0 0.0
        %2256 = vmatpush1.msra.mxu0 0.0
        %2257 = vmatprep.subr.mxu0 0.0
        %2258 = vmatpush1.msra.mxu0 0.0
        %2259 = vmatprep.subr.mxu0 0.0
        %2260 = vmatpush1.msra.mxu0 0.0
        %2261 = vmatprep.subr.mxu0 0.0
        %2262 = vmatpush1.msra.mxu0 0.0
        %2263 = vmatprep.subr.mxu0 0.0
        %2264 = vmatpush1.msra.mxu0 0.0
        %2265 = vmatprep.subr.mxu0 0.0
        %2266 = vmatpush1.msra.mxu0 0.0
        %2267 = vmatprep.subr.mxu0 0.0
        %2268 = vmatpush1.msra.mxu0 0.0
        %2269 = vmatprep.subr.mxu0 0.0
        %2270 = vmatpush1.msra.mxu0 0.0
        %2271 = vmatprep.subr.mxu0 0.0
        %2272 = vmatpush1.msra.mxu0 0.0
        %2273 = vmatprep.subr.mxu0 0.0
        %2274 = vmatpush1.msra.mxu0 0.0
        %2275 = vmatprep.subr.mxu0 0.0
        %2276 = vmatpush1.msra.mxu0 0.0
        %2277 = vmatprep.subr.mxu0 0.0
        %2278 = vmatpush1.msra.mxu0 0.0
        %2279 = vmatprep.subr.mxu0 0.0
        %2280 = vmatpush1.msra.mxu0 0.0
        %2281 = vmatprep.subr.mxu0 0.0
        %2282 = vmatpush1.msra.mxu0 0.0
        %2283 = vmatprep.subr.mxu0 0.0
        %2284 = vmatpush1.msra.mxu0 0.0
        %2285 = vmatprep.subr.mxu0 0.0
        %2286 = vmatpush1.msra.mxu0 0.0
        %2287 = vmatprep.subr.mxu0 0.0
        %2288 = vmatpush1.msra.mxu0 0.0
        %2289 = vmatprep.subr.mxu0 0.0
        %2290 = vmatpush1.msra.mxu0 0.0
        %2291 = vmatprep.mubr.f32.mxu0 0.0
        %2292 = vmatmul.mubr.f32.gmra.mrb[0].mxu0 %v2216
        %v2293 = vpop.f32.mrb[0].mxu0
        %v2294 = vadd.f32 %v2198, %v2293
        %v2295 = vpop.f32.mrb[0].mxu0
        %2296 = vmatprep.mubr.f32.mxu0 0.0
        %2297 = vmatmul.mubr.f32.gmra.mrb[0].mxu0 %v2219
        %v2298 = vpop.f32.mrb[0].mxu0
        %v2299 = vadd.f32 %v2203, %v2298
        %v2300 = vpop.f32.mrb[0].mxu0
        %2301 = vmatprep.mubr.f32.mxu0 0.0
        %2302 = vmatmul.mubr.f32.gmra.mrb[0].mxu0 %v2222
        %v2303 = vpop.f32.mrb[0].mxu0
        %v2304 = vadd.f32 %v2208, %v2303
        %v2305 = vpop.f32.mrb[0].mxu0
        %2306 = vmatprep.mubr.f32.mxu0 0.0
        %2307 = vmatmul.mubr.f32.gmra.mrb[0].mxu0 %v2225
        %v2308 = vpop.f32.mrb[0].mxu0
        %v2309 = vadd.f32 %v2213, %v2308
        %v2310 = vpop.f32.mrb[0].mxu0
        %2311 = vdwg.mxu0
        %v2312 = vld [vmem:[%s35] sm:$0xff]
        %v2313 = vld [vmem:[%s35 + $0x8] sm:$0xff]
        %v2314 = vld [vmem:[%s35 + $0x10] sm:$0xff]
        %v2315 = vld [vmem:[%s35 + $0x18] sm:$0xff]
        %v2316 = vld [vmem:[%s37] sm:$0xff]
        %v2317 = vld [vmem:[%s37 + $0x8] sm:$0xff]
        %v2318 = vld [vmem:[%s37 + $0x10] sm:$0xff]
        %v2319 = vld [vmem:[%s37 + $0x18] sm:$0xff]
        %2320 = vrot.lane.b32.xlu0 %v2183, 1
        %v2321 = vpop.permute.xlu0 %2320
        %2322 = vrot.lane.b32.xlu0 %v2184, 1
        %v2323 = vpop.permute.xlu0 %2322
        %2324 = vrot.lane.b32.xlu0 %v2185, 1
        %v2325 = vpop.permute.xlu0 %2324
        %2326 = vrot.lane.b32.xlu0 %v2186, 1
        %v2327 = vpop.permute.xlu0 %2326
        %v2328 = vsel %vm1142, %v2321, 0.0
        %v2329 = vsel %vm1142, %v2323, 0.0
        %v2330 = vsel %vm1142, %v2325, 0.0
        %v2331 = vsel %vm1142, %v2327, 0.0
        %2332 = vrot.lane.b32.xlu0 %v2183, 127
        %v2333 = vpop.permute.xlu0 %2332
        %2334 = vrot.lane.b32.xlu0 %v2184, 127
        %v2335 = vpop.permute.xlu0 %2334
        %2336 = vrot.lane.b32.xlu0 %v2185, 127
        %v2337 = vpop.permute.xlu0 %2336
        %2338 = vrot.lane.b32.xlu0 %v2186, 127
        %v2339 = vpop.permute.xlu0 %2338
        %v2340 = vsel %vm1149, %v2333, %v2328
        %v2341 = vsel %vm1149, %v2335, %v2329
        %v2342 = vsel %vm1149, %v2337, %v2330
        %v2343 = vsel %vm1149, %v2339, %v2331
        %v2344 = vsel %vm1156, %v2333, 0.0
        %v2345 = vsel %vm1156, %v2335, 0.0
        %v2346 = vsel %vm1156, %v2337, 0.0
        %v2347 = vsel %vm1156, %v2339, 0.0
        %v2348 = vsel %vm1159, %v2321, %v2344
        %v2349 = vsel %vm1159, %v2323, %v2345
        %v2350 = vsel %vm1159, %v2325, %v2346
        %v2351 = vsel %vm1159, %v2327, %v2347
        %2353 = vset.pattern.permute.xlu0 0
        %2354 = vperm.xlu0 %2353, %v2316
        %v2355 = vpop.permute.xlu0 %2354
        %2358 = vset.pattern.permute.xlu0 0
        %2359 = vperm.xlu0 %2358, %v2317
        %v2360 = vpop.permute.xlu0 %2359
        %2363 = vset.pattern.permute.xlu0 0
        %2364 = vperm.xlu0 %2363, %v2318
        %v2365 = vpop.permute.xlu0 %2364
        %2368 = vset.pattern.permute.xlu0 0
        %2369 = vperm.xlu0 %2368, %v2319
        %v2370 = vpop.permute.xlu0 %2369
        %v2373 = vsel %vm1469, %v2312, 0
        %v2376 = vsel %vm1469, %v2313, 0
        %v2379 = vsel %vm1469, %v2314, 0
        %v2382 = vsel %vm1469, %v2315, 0
        %2384 = vmatprep.subr.mxu0 0.0
        %2385 = vmatpush1.msra.mxu0 %v2340
        %2386 = vmatprep.subr.mxu0 0.0
        %2387 = vmatpush1.msra.mxu0 %v2341
        %2388 = vmatprep.subr.mxu0 0.0
        %2389 = vmatpush1.msra.mxu0 %v2342
        %2390 = vmatprep.subr.mxu0 0.0
        %2391 = vmatpush1.msra.mxu0 %v2343
        %2392 = vmatprep.subr.mxu0 0.0
        %2393 = vmatpush1.msra.mxu0 %v2183
        %2394 = vmatprep.subr.mxu0 0.0
        %2395 = vmatpush1.msra.mxu0 %v2184
        %2396 = vmatprep.subr.mxu0 0.0
        %2397 = vmatpush1.msra.mxu0 %v2185
        %2398 = vmatprep.subr.mxu0 0.0
        %2399 = vmatpush1.msra.mxu0 %v2186
        %2400 = vmatprep.subr.mxu0 0.0
        %2401 = vmatpush1.msra.mxu0 %v2348
        %2402 = vmatprep.subr.mxu0 0.0
        %2403 = vmatpush1.msra.mxu0 %v2349
        %2404 = vmatprep.subr.mxu0 0.0
        %2405 = vmatpush1.msra.mxu0 %v2350
        %2406 = vmatprep.subr.mxu0 0.0
        %2407 = vmatpush1.msra.mxu0 %v2351
        %2408 = vmatprep.subr.mxu0 0.0
        %2409 = vmatpush1.msra.mxu0 0.0
        %2410 = vmatprep.subr.mxu0 0.0
        %2411 = vmatpush1.msra.mxu0 0.0
        %2412 = vmatprep.subr.mxu0 0.0
        %2413 = vmatpush1.msra.mxu0 0.0
        %2414 = vmatprep.subr.mxu0 0.0
        %2415 = vmatpush1.msra.mxu0 0.0
        %2416 = vmatprep.subr.mxu0 0.0
        %2417 = vmatpush1.msra.mxu0 0.0
        %2418 = vmatprep.subr.mxu0 0.0
        %2419 = vmatpush1.msra.mxu0 0.0
        %2420 = vmatprep.subr.mxu0 0.0
        %2421 = vmatpush1.msra.mxu0 0.0
        %2422 = vmatprep.subr.mxu0 0.0
        %2423 = vmatpush1.msra.mxu0 0.0
        %2424 = vmatprep.subr.mxu0 0.0
        %2425 = vmatpush1.msra.mxu0 0.0
        %2426 = vmatprep.subr.mxu0 0.0
        %2427 = vmatpush1.msra.mxu0 0.0
        %2428 = vmatprep.subr.mxu0 0.0
        %2429 = vmatpush1.msra.mxu0 0.0
        %2430 = vmatprep.subr.mxu0 0.0
        %2431 = vmatpush1.msra.mxu0 0.0
        %2432 = vmatprep.subr.mxu0 0.0
        %2433 = vmatpush1.msra.mxu0 0.0
        %2434 = vmatprep.subr.mxu0 0.0
        %2435 = vmatpush1.msra.mxu0 0.0
        %2436 = vmatprep.subr.mxu0 0.0
        %2437 = vmatpush1.msra.mxu0 0.0
        %2438 = vmatprep.subr.mxu0 0.0
        %2439 = vmatpush1.msra.mxu0 0.0
        %2440 = vmatprep.subr.mxu0 0.0
        %2441 = vmatpush1.msra.mxu0 0.0
        %2442 = vmatprep.subr.mxu0 0.0
        %2443 = vmatpush1.msra.mxu0 0.0
        %2444 = vmatprep.subr.mxu0 0.0
        %2445 = vmatpush1.msra.mxu0 0.0
        %2446 = vmatprep.subr.mxu0 0.0
        %2447 = vmatpush1.msra.mxu0 0.0
        %2448 = vmatprep.mubr.f32.mxu0 0.0
        %2449 = vmatmul.mubr.f32.gmra.mrb[0].mxu0 %v2373
        %v2450 = vpop.f32.mrb[0].mxu0
        %v2451 = vadd.f32 %v2355, %v2450
        %v2452 = vpop.f32.mrb[0].mxu0
        %2453 = vmatprep.mubr.f32.mxu0 0.0
        %2454 = vmatmul.mubr.f32.gmra.mrb[0].mxu0 %v2376
        %v2455 = vpop.f32.mrb[0].mxu0
        %v2456 = vadd.f32 %v2360, %v2455
        %v2457 = vpop.f32.mrb[0].mxu0
        %2458 = vmatprep.mubr.f32.mxu0 0.0
        %2459 = vmatmul.mubr.f32.gmra.mrb[0].mxu0 %v2379
        %v2460 = vpop.f32.mrb[0].mxu0
        %v2461 = vadd.f32 %v2365, %v2460
        %v2462 = vpop.f32.mrb[0].mxu0
        %2463 = vmatprep.mubr.f32.mxu0 0.0
        %2464 = vmatmul.mubr.f32.gmra.mrb[0].mxu0 %v2382
        %v2465 = vpop.f32.mrb[0].mxu0
        %v2466 = vadd.f32 %v2370, %v2465
        %v2467 = vpop.f32.mrb[0].mxu0
        %2468 = vdwg.mxu0
        %v2469 = vmax.f32 %v2451, 0.0
        %v2470 = vmax.f32 %v2456, 0.0
        %v2471 = vmax.f32 %v2461, 0.0
        %v2472 = vmax.f32 %v2466, 0.0
        %v2473 = vld [vmem:[%s39] sm:$0xff]
        %v2474 = vld [vmem:[%s39 + $0x8] sm:$0xff]
        %v2475 = vld [vmem:[%s39 + $0x10] sm:$0xff]
        %v2476 = vld [vmem:[%s39 + $0x18] sm:$0xff]
        %v2477 = vld [vmem:[%s41] sm:$0xff]
        %v2478 = vld [vmem:[%s41 + $0x8] sm:$0xff]
        %v2479 = vld [vmem:[%s41 + $0x10] sm:$0xff]
        %v2480 = vld [vmem:[%s41 + $0x18] sm:$0xff]
        %2481 = vrot.lane.b32.xlu0 %v2469, 1
        %v2482 = vpop.permute.xlu0 %2481
        %2483 = vrot.lane.b32.xlu0 %v2470, 1
        %v2484 = vpop.permute.xlu0 %2483
        %2485 = vrot.lane.b32.xlu0 %v2471, 1
        %v2486 = vpop.permute.xlu0 %2485
        %2487 = vrot.lane.b32.xlu0 %v2472, 1
        %v2488 = vpop.permute.xlu0 %2487
        %v2489 = vsel %vm1142, %v2482, 0.0
        %v2490 = vsel %vm1142, %v2484, 0.0
        %v2491 = vsel %vm1142, %v2486, 0.0
        %v2492 = vsel %vm1142, %v2488, 0.0
        %2493 = vrot.lane.b32.xlu0 %v2469, 127
        %v2494 = vpop.permute.xlu0 %2493
        %2495 = vrot.lane.b32.xlu0 %v2470, 127
        %v2496 = vpop.permute.xlu0 %2495
        %2497 = vrot.lane.b32.xlu0 %v2471, 127
        %v2498 = vpop.permute.xlu0 %2497
        %2499 = vrot.lane.b32.xlu0 %v2472, 127
        %v2500 = vpop.permute.xlu0 %2499
        %v2501 = vsel %vm1149, %v2494, %v2489
        %v2502 = vsel %vm1149, %v2496, %v2490
        %v2503 = vsel %vm1149, %v2498, %v2491
        %v2504 = vsel %vm1149, %v2500, %v2492
        %v2505 = vsel %vm1156, %v2494, 0.0
        %v2506 = vsel %vm1156, %v2496, 0.0
        %v2507 = vsel %vm1156, %v2498, 0.0
        %v2508 = vsel %vm1156, %v2500, 0.0
        %v2509 = vsel %vm1159, %v2482, %v2505
        %v2510 = vsel %vm1159, %v2484, %v2506
        %v2511 = vsel %vm1159, %v2486, %v2507
        %v2512 = vsel %vm1159, %v2488, %v2508
        %2514 = vset.pattern.permute.xlu0 0
        %2515 = vperm.xlu0 %2514, %v2477
        %v2516 = vpop.permute.xlu0 %2515
        %2519 = vset.pattern.permute.xlu0 0
        %2520 = vperm.xlu0 %2519, %v2478
        %v2521 = vpop.permute.xlu0 %2520
        %2524 = vset.pattern.permute.xlu0 0
        %2525 = vperm.xlu0 %2524, %v2479
        %v2526 = vpop.permute.xlu0 %2525
        %2529 = vset.pattern.permute.xlu0 0
        %2530 = vperm.xlu0 %2529, %v2480
        %v2531 = vpop.permute.xlu0 %2530
        %v2534 = vsel %vm1469, %v2473, 0
        %v2537 = vsel %vm1469, %v2474, 0
        %v2540 = vsel %vm1469, %v2475, 0
        %v2543 = vsel %vm1469, %v2476, 0
        %2545 = vmatprep.subr.mxu0 0.0
        %2546 = vmatpush1.msra.mxu0 %v2501
        %2547 = vmatprep.subr.mxu0 0.0
        %2548 = vmatpush1.msra.mxu0 %v2502
        %2549 = vmatprep.subr.mxu0 0.0
        %2550 = vmatpush1.msra.mxu0 %v2503
        %2551 = vmatprep.subr.mxu0 0.0
        %2552 = vmatpush1.msra.mxu0 %v2504
        %2553 = vmatprep.subr.mxu0 0.0
        %2554 = vmatpush1.msra.mxu0 %v2469
        %2555 = vmatprep.subr.mxu0 0.0
        %2556 = vmatpush1.msra.mxu0 %v2470
        %2557 = vmatprep.subr.mxu0 0.0
        %2558 = vmatpush1.msra.mxu0 %v2471
        %2559 = vmatprep.subr.mxu0 0.0
        %2560 = vmatpush1.msra.mxu0 %v2472
        %2561 = vmatprep.subr.mxu0 0.0
        %2562 = vmatpush1.msra.mxu0 %v2509
        %2563 = vmatprep.subr.mxu0 0.0
        %2564 = vmatpush1.msra.mxu0 %v2510
        %2565 = vmatprep.subr.mxu0 0.0
        %2566 = vmatpush1.msra.mxu0 %v2511
        %2567 = vmatprep.subr.mxu0 0.0
        %2568 = vmatpush1.msra.mxu0 %v2512
        %2569 = vmatprep.subr.mxu0 0.0
        %2570 = vmatpush1.msra.mxu0 0.0
        %2571 = vmatprep.subr.mxu0 0.0
        %2572 = vmatpush1.msra.mxu0 0.0
        %2573 = vmatprep.subr.mxu0 0.0
        %2574 = vmatpush1.msra.mxu0 0.0
        %2575 = vmatprep.subr.mxu0 0.0
        %2576 = vmatpush1.msra.mxu0 0.0
        %2577 = vmatprep.subr.mxu0 0.0
        %2578 = vmatpush1.msra.mxu0 0.0
        %2579 = vmatprep.subr.mxu0 0.0
        %2580 = vmatpush1.msra.mxu0 0.0
        %2581 = vmatprep.subr.mxu0 0.0
        %2582 = vmatpush1.msra.mxu0 0.0
        %2583 = vmatprep.subr.mxu0 0.0
        %2584 = vmatpush1.msra.mxu0 0.0
        %2585 = vmatprep.subr.mxu0 0.0
        %2586 = vmatpush1.msra.mxu0 0.0
        %2587 = vmatprep.subr.mxu0 0.0
        %2588 = vmatpush1.msra.mxu0 0.0
        %2589 = vmatprep.subr.mxu0 0.0
        %2590 = vmatpush1.msra.mxu0 0.0
        %2591 = vmatprep.subr.mxu0 0.0
        %2592 = vmatpush1.msra.mxu0 0.0
        %2593 = vmatprep.subr.mxu0 0.0
        %2594 = vmatpush1.msra.mxu0 0.0
        %2595 = vmatprep.subr.mxu0 0.0
        %2596 = vmatpush1.msra.mxu0 0.0
        %2597 = vmatprep.subr.mxu0 0.0
        %2598 = vmatpush1.msra.mxu0 0.0
        %2599 = vmatprep.subr.mxu0 0.0
        %2600 = vmatpush1.msra.mxu0 0.0
        %2601 = vmatprep.subr.mxu0 0.0
        %2602 = vmatpush1.msra.mxu0 0.0
        %2603 = vmatprep.subr.mxu0 0.0
        %2604 = vmatpush1.msra.mxu0 0.0
        %2605 = vmatprep.subr.mxu0 0.0
        %2606 = vmatpush1.msra.mxu0 0.0
        %2607 = vmatprep.subr.mxu0 0.0
        %2608 = vmatpush1.msra.mxu0 0.0
        %2609 = vmatprep.mubr.f32.mxu0 0.0
        %2610 = vmatmul.mubr.f32.gmra.mrb[0].mxu0 %v2534
        %v2611 = vpop.f32.mrb[0].mxu0
        %v2612 = vadd.f32 %v2516, %v2611
        %v2613 = vpop.f32.mrb[0].mxu0
        %2614 = vmatprep.mubr.f32.mxu0 0.0
        %2615 = vmatmul.mubr.f32.gmra.mrb[0].mxu0 %v2537
        %v2616 = vpop.f32.mrb[0].mxu0
        %v2617 = vadd.f32 %v2521, %v2616
        %v2618 = vpop.f32.mrb[0].mxu0
        %2619 = vmatprep.mubr.f32.mxu0 0.0
        %2620 = vmatmul.mubr.f32.gmra.mrb[0].mxu0 %v2540
        %v2621 = vpop.f32.mrb[0].mxu0
        %v2622 = vadd.f32 %v2526, %v2621
        %v2623 = vpop.f32.mrb[0].mxu0
        %2624 = vmatprep.mubr.f32.mxu0 0.0
        %2625 = vmatmul.mubr.f32.gmra.mrb[0].mxu0 %v2543
        %v2626 = vpop.f32.mrb[0].mxu0
        %v2627 = vadd.f32 %v2531, %v2626
        %v2628 = vpop.f32.mrb[0].mxu0
        %2629 = vdwg.mxu0
        %v2630 = vadd.f32 %v2612, %v2294
        %v2631 = vadd.f32 %v2617, %v2299
        %v2632 = vadd.f32 %v2622, %v2304
        %v2633 = vadd.f32 %v2627, %v2309
        %v2634 = vmax.f32 %v2630, 0.0
        %v2635 = vmax.f32 %v2631, 0.0
        %v2636 = vmax.f32 %v2632, 0.0
        %v2637 = vmax.f32 %v2633, 0.0
        %v2638 = vld [vmem:[%s43] sm:$0xff]
        %v2639 = vld [vmem:[%s43 + $0x8] sm:$0xff]
        %v2640 = vld [vmem:[%s43 + $0x10] sm:$0xff]
        %v2641 = vld [vmem:[%s43 + $0x18] sm:$0xff]
        %v2642 = vld [vmem:[%s45] sm:$0xff]
        %v2643 = vld [vmem:[%s45 + $0x8] sm:$0xff]
        %v2644 = vld [vmem:[%s45 + $0x10] sm:$0xff]
        %v2645 = vld [vmem:[%s45 + $0x18] sm:$0xff]
        %2647 = vset.pattern.permute.xlu0 0
        %2648 = vperm.xlu0 %2647, %v2642
        %v2649 = vpop.permute.xlu0 %2648
        %2652 = vset.pattern.permute.xlu0 0
        %2653 = vperm.xlu0 %2652, %v2643
        %v2654 = vpop.permute.xlu0 %2653
        %2657 = vset.pattern.permute.xlu0 0
        %2658 = vperm.xlu0 %2657, %v2644
        %v2659 = vpop.permute.xlu0 %2658
        %2662 = vset.pattern.permute.xlu0 0
        %2663 = vperm.xlu0 %2662, %v2645
        %v2664 = vpop.permute.xlu0 %2663
        %v2667 = vsel %vm1311, %v2638, 0
        %v2670 = vsel %vm1311, %v2639, 0
        %v2673 = vsel %vm1311, %v2640, 0
        %v2676 = vsel %vm1311, %v2641, 0
        %2678 = vmatprep.subr.mxu0 0.0
        %2679 = vmatpush1.msra.mxu0 %v2634
        %2680 = vmatprep.subr.mxu0 0.0
        %2681 = vmatpush1.msra.mxu0 %v2635
        %2682 = vmatprep.subr.mxu0 0.0
        %2683 = vmatpush1.msra.mxu0 %v2636
        %2684 = vmatprep.subr.mxu0 0.0
        %2685 = vmatpush1.msra.mxu0 %v2637
        %2686 = vmatprep.subr.mxu0 0.0
        %2687 = vmatpush1.msra.mxu0 0.0
        %2688 = vmatprep.subr.mxu0 0.0
        %2689 = vmatpush1.msra.mxu0 0.0
        %2690 = vmatprep.subr.mxu0 0.0
        %2691 = vmatpush1.msra.mxu0 0.0
        %2692 = vmatprep.subr.mxu0 0.0
        %2693 = vmatpush1.msra.mxu0 0.0
        %2694 = vmatprep.subr.mxu0 0.0
        %2695 = vmatpush1.msra.mxu0 0.0
        %2696 = vmatprep.subr.mxu0 0.0
        %2697 = vmatpush1.msra.mxu0 0.0
        %2698 = vmatprep.subr.mxu0 0.0
        %2699 = vmatpush1.msra.mxu0 0.0
        %2700 = vmatprep.subr.mxu0 0.0
        %2701 = vmatpush1.msra.mxu0 0.0
        %2702 = vmatprep.subr.mxu0 0.0
        %2703 = vmatpush1.msra.mxu0 0.0
        %2704 = vmatprep.subr.mxu0 0.0
        %2705 = vmatpush1.msra.mxu0 0.0
        %2706 = vmatprep.subr.mxu0 0.0
        %2707 = vmatpush1.msra.mxu0 0.0
        %2708 = vmatprep.subr.mxu0 0.0
        %2709 = vmatpush1.msra.mxu0 0.0
        %2710 = vmatprep.subr.mxu0 0.0
        %2711 = vmatpush1.msra.mxu0 0.0
        %2712 = vmatprep.subr.mxu0 0.0
        %2713 = vmatpush1.msra.mxu0 0.0
        %2714 = vmatprep.subr.mxu0 0.0
        %2715 = vmatpush1.msra.mxu0 0.0
        %2716 = vmatprep.subr.mxu0 0.0
        %2717 = vmatpush1.msra.mxu0 0.0
        %2718 = vmatprep.subr.mxu0 0.0
        %2719 = vmatpush1.msra.mxu0 0.0
        %2720 = vmatprep.subr.mxu0 0.0
        %2721 = vmatpush1.msra.mxu0 0.0
        %2722 = vmatprep.subr.mxu0 0.0
        %2723 = vmatpush1.msra.mxu0 0.0
        %2724 = vmatprep.subr.mxu0 0.0
        %2725 = vmatpush1.msra.mxu0 0.0
        %2726 = vmatprep.subr.mxu0 0.0
        %2727 = vmatpush1.msra.mxu0 0.0
        %2728 = vmatprep.subr.mxu0 0.0
        %2729 = vmatpush1.msra.mxu0 0.0
        %2730 = vmatprep.subr.mxu0 0.0
        %2731 = vmatpush1.msra.mxu0 0.0
        %2732 = vmatprep.subr.mxu0 0.0
        %2733 = vmatpush1.msra.mxu0 0.0
        %2734 = vmatprep.subr.mxu0 0.0
        %2735 = vmatpush1.msra.mxu0 0.0
        %2736 = vmatprep.subr.mxu0 0.0
        %2737 = vmatpush1.msra.mxu0 0.0
        %2738 = vmatprep.subr.mxu0 0.0
        %2739 = vmatpush1.msra.mxu0 0.0
        %2740 = vmatprep.subr.mxu0 0.0
        %2741 = vmatpush1.msra.mxu0 0.0
        %2742 = vmatprep.mubr.f32.mxu0 0.0
        %2743 = vmatmul.mubr.f32.gmra.mrb[0].mxu0 %v2667
        %v2744 = vpop.f32.mrb[0].mxu0
        %v2745 = vadd.f32 %v2649, %v2744
        %v2746 = vpop.f32.mrb[0].mxu0
        %2747 = vmatprep.mubr.f32.mxu0 0.0
        %2748 = vmatmul.mubr.f32.gmra.mrb[0].mxu0 %v2670
        %v2749 = vpop.f32.mrb[0].mxu0
        %v2750 = vadd.f32 %v2654, %v2749
        %v2751 = vpop.f32.mrb[0].mxu0
        %2752 = vmatprep.mubr.f32.mxu0 0.0
        %2753 = vmatmul.mubr.f32.gmra.mrb[0].mxu0 %v2673
        %v2754 = vpop.f32.mrb[0].mxu0
        %v2755 = vadd.f32 %v2659, %v2754
        %v2756 = vpop.f32.mrb[0].mxu0
        %2757 = vmatprep.mubr.f32.mxu0 0.0
        %2758 = vmatmul.mubr.f32.gmra.mrb[0].mxu0 %v2676
        %v2759 = vpop.f32.mrb[0].mxu0
        %v2760 = vadd.f32 %v2664, %v2759
        %v2761 = vpop.f32.mrb[0].mxu0
        %2762 = vdwg.mxu0
        %v2763 = vld [vmem:[%s47] sm:$0xff]
        %v2764 = vld [vmem:[%s47 + $0x8] sm:$0xff]
        %v2765 = vld [vmem:[%s47 + $0x10] sm:$0xff]
        %v2766 = vld [vmem:[%s47 + $0x18] sm:$0xff]
        %v2767 = vld [vmem:[%s49] sm:$0xff]
        %v2768 = vld [vmem:[%s49 + $0x8] sm:$0xff]
        %v2769 = vld [vmem:[%s49 + $0x10] sm:$0xff]
        %v2770 = vld [vmem:[%s49 + $0x18] sm:$0xff]
        %2771 = vrot.lane.b32.xlu0 %v2634, 1
        %v2772 = vpop.permute.xlu0 %2771
        %2773 = vrot.lane.b32.xlu0 %v2635, 1
        %v2774 = vpop.permute.xlu0 %2773
        %2775 = vrot.lane.b32.xlu0 %v2636, 1
        %v2776 = vpop.permute.xlu0 %2775
        %2777 = vrot.lane.b32.xlu0 %v2637, 1
        %v2778 = vpop.permute.xlu0 %2777
        %v2779 = vsel %vm1142, %v2772, 0.0
        %v2780 = vsel %vm1142, %v2774, 0.0
        %v2781 = vsel %vm1142, %v2776, 0.0
        %v2782 = vsel %vm1142, %v2778, 0.0
        %2783 = vrot.lane.b32.xlu0 %v2634, 127
        %v2784 = vpop.permute.xlu0 %2783
        %2785 = vrot.lane.b32.xlu0 %v2635, 127
        %v2786 = vpop.permute.xlu0 %2785
        %2787 = vrot.lane.b32.xlu0 %v2636, 127
        %v2788 = vpop.permute.xlu0 %2787
        %2789 = vrot.lane.b32.xlu0 %v2637, 127
        %v2790 = vpop.permute.xlu0 %2789
        %v2791 = vsel %vm1149, %v2784, %v2779
        %v2792 = vsel %vm1149, %v2786, %v2780
        %v2793 = vsel %vm1149, %v2788, %v2781
        %v2794 = vsel %vm1149, %v2790, %v2782
        %v2795 = vsel %vm1156, %v2784, 0.0
        %v2796 = vsel %vm1156, %v2786, 0.0
        %v2797 = vsel %vm1156, %v2788, 0.0
        %v2798 = vsel %vm1156, %v2790, 0.0
        %v2799 = vsel %vm1159, %v2772, %v2795
        %v2800 = vsel %vm1159, %v2774, %v2796
        %v2801 = vsel %vm1159, %v2776, %v2797
        %v2802 = vsel %vm1159, %v2778, %v2798
        %2804 = vset.pattern.permute.xlu0 0
        %2805 = vperm.xlu0 %2804, %v2767
        %v2806 = vpop.permute.xlu0 %2805
        %2809 = vset.pattern.permute.xlu0 0
        %2810 = vperm.xlu0 %2809, %v2768
        %v2811 = vpop.permute.xlu0 %2810
        %2814 = vset.pattern.permute.xlu0 0
        %2815 = vperm.xlu0 %2814, %v2769
        %v2816 = vpop.permute.xlu0 %2815
        %2819 = vset.pattern.permute.xlu0 0
        %2820 = vperm.xlu0 %2819, %v2770
        %v2821 = vpop.permute.xlu0 %2820
        %v2824 = vsel %vm1469, %v2763, 0
        %v2827 = vsel %vm1469, %v2764, 0
        %v2830 = vsel %vm1469, %v2765, 0
        %v2833 = vsel %vm1469, %v2766, 0
        %2835 = vmatprep.subr.mxu0 0.0
        %2836 = vmatpush1.msra.mxu0 %v2791
        %2837 = vmatprep.subr.mxu0 0.0
        %2838 = vmatpush1.msra.mxu0 %v2792
        %2839 = vmatprep.subr.mxu0 0.0
        %2840 = vmatpush1.msra.mxu0 %v2793
        %2841 = vmatprep.subr.mxu0 0.0
        %2842 = vmatpush1.msra.mxu0 %v2794
        %2843 = vmatprep.subr.mxu0 0.0
        %2844 = vmatpush1.msra.mxu0 %v2634
        %2845 = vmatprep.subr.mxu0 0.0
        %2846 = vmatpush1.msra.mxu0 %v2635
        %2847 = vmatprep.subr.mxu0 0.0
        %2848 = vmatpush1.msra.mxu0 %v2636
        %2849 = vmatprep.subr.mxu0 0.0
        %2850 = vmatpush1.msra.mxu0 %v2637
        %2851 = vmatprep.subr.mxu0 0.0
        %2852 = vmatpush1.msra.mxu0 %v2799
        %2853 = vmatprep.subr.mxu0 0.0
        %2854 = vmatpush1.msra.mxu0 %v2800
        %2855 = vmatprep.subr.mxu0 0.0
        %2856 = vmatpush1.msra.mxu0 %v2801
        %2857 = vmatprep.subr.mxu0 0.0
        %2858 = vmatpush1.msra.mxu0 %v2802
        %2859 = vmatprep.subr.mxu0 0.0
        %2860 = vmatpush1.msra.mxu0 0.0
        %2861 = vmatprep.subr.mxu0 0.0
        %2862 = vmatpush1.msra.mxu0 0.0
        %2863 = vmatprep.subr.mxu0 0.0
        %2864 = vmatpush1.msra.mxu0 0.0
        %2865 = vmatprep.subr.mxu0 0.0
        %2866 = vmatpush1.msra.mxu0 0.0
        %2867 = vmatprep.subr.mxu0 0.0
        %2868 = vmatpush1.msra.mxu0 0.0
        %2869 = vmatprep.subr.mxu0 0.0
        %2870 = vmatpush1.msra.mxu0 0.0
        %2871 = vmatprep.subr.mxu0 0.0
        %2872 = vmatpush1.msra.mxu0 0.0
        %2873 = vmatprep.subr.mxu0 0.0
        %2874 = vmatpush1.msra.mxu0 0.0
        %2875 = vmatprep.subr.mxu0 0.0
        %2876 = vmatpush1.msra.mxu0 0.0
        %2877 = vmatprep.subr.mxu0 0.0
        %2878 = vmatpush1.msra.mxu0 0.0
        %2879 = vmatprep.subr.mxu0 0.0
        %2880 = vmatpush1.msra.mxu0 0.0
        %2881 = vmatprep.subr.mxu0 0.0
        %2882 = vmatpush1.msra.mxu0 0.0
        %2883 = vmatprep.subr.mxu0 0.0
        %2884 = vmatpush1.msra.mxu0 0.0
        %2885 = vmatprep.subr.mxu0 0.0
        %2886 = vmatpush1.msra.mxu0 0.0
        %2887 = vmatprep.subr.mxu0 0.0
        %2888 = vmatpush1.msra.mxu0 0.0
        %2889 = vmatprep.subr.mxu0 0.0
        %2890 = vmatpush1.msra.mxu0 0.0
        %2891 = vmatprep.subr.mxu0 0.0
        %2892 = vmatpush1.msra.mxu0 0.0
        %2893 = vmatprep.subr.mxu0 0.0
        %2894 = vmatpush1.msra.mxu0 0.0
        %2895 = vmatprep.subr.mxu0 0.0
        %2896 = vmatpush1.msra.mxu0 0.0
        %2897 = vmatprep.subr.mxu0 0.0
        %2898 = vmatpush1.msra.mxu0 0.0
        %2899 = vmatprep.mubr.f32.mxu0 0.0
        %2900 = vmatmul.mubr.f32.gmra.mrb[0].mxu0 %v2824
        %v2901 = vpop.f32.mrb[0].mxu0
        %v2902 = vadd.f32 %v2806, %v2901
        %v2903 = vpop.f32.mrb[0].mxu0
        %2904 = vmatprep.mubr.f32.mxu0 0.0
        %2905 = vmatmul.mubr.f32.gmra.mrb[0].mxu0 %v2827
        %v2906 = vpop.f32.mrb[0].mxu0
        %v2907 = vadd.f32 %v2811, %v2906
        %v2908 = vpop.f32.mrb[0].mxu0
        %2909 = vmatprep.mubr.f32.mxu0 0.0
        %2910 = vmatmul.mubr.f32.gmra.mrb[0].mxu0 %v2830
        %v2911 = vpop.f32.mrb[0].mxu0
        %v2912 = vadd.f32 %v2816, %v2911
        %v2913 = vpop.f32.mrb[0].mxu0
        %2914 = vmatprep.mubr.f32.mxu0 0.0
        %2915 = vmatmul.mubr.f32.gmra.mrb[0].mxu0 %v2833
        %v2916 = vpop.f32.mrb[0].mxu0
        %v2917 = vadd.f32 %v2821, %v2916
        %v2918 = vpop.f32.mrb[0].mxu0
        %2919 = vdwg.mxu0
        %v2920 = vmax.f32 %v2902, 0.0
        %v2921 = vmax.f32 %v2907, 0.0
        %v2922 = vmax.f32 %v2912, 0.0
        %v2923 = vmax.f32 %v2917, 0.0
        %v2924 = vld [vmem:[%s51] sm:$0xff]
        %v2925 = vld [vmem:[%s51 + $0x8] sm:$0xff]
        %v2926 = vld [vmem:[%s51 + $0x10] sm:$0xff]
        %v2927 = vld [vmem:[%s51 + $0x18] sm:$0xff]
        %v2928 = vld [vmem:[%s53] sm:$0xff]
        %v2929 = vld [vmem:[%s53 + $0x8] sm:$0xff]
        %v2930 = vld [vmem:[%s53 + $0x10] sm:$0xff]
        %v2931 = vld [vmem:[%s53 + $0x18] sm:$0xff]
        %2932 = vrot.lane.b32.xlu0 %v2920, 1
        %v2933 = vpop.permute.xlu0 %2932
        %2934 = vrot.lane.b32.xlu0 %v2921, 1
        %v2935 = vpop.permute.xlu0 %2934
        %2936 = vrot.lane.b32.xlu0 %v2922, 1
        %v2937 = vpop.permute.xlu0 %2936
        %2938 = vrot.lane.b32.xlu0 %v2923, 1
        %v2939 = vpop.permute.xlu0 %2938
        %v2940 = vsel %vm1142, %v2933, 0.0
        %v2941 = vsel %vm1142, %v2935, 0.0
        %v2942 = vsel %vm1142, %v2937, 0.0
        %v2943 = vsel %vm1142, %v2939, 0.0
        %2944 = vrot.lane.b32.xlu0 %v2920, 127
        %v2945 = vpop.permute.xlu0 %2944
        %2946 = vrot.lane.b32.xlu0 %v2921, 127
        %v2947 = vpop.permute.xlu0 %2946
        %2948 = vrot.lane.b32.xlu0 %v2922, 127
        %v2949 = vpop.permute.xlu0 %2948
        %2950 = vrot.lane.b32.xlu0 %v2923, 127
        %v2951 = vpop.permute.xlu0 %2950
        %v2952 = vsel %vm1149, %v2945, %v2940
        %v2953 = vsel %vm1149, %v2947, %v2941
        %v2954 = vsel %vm1149, %v2949, %v2942
        %v2955 = vsel %vm1149, %v2951, %v2943
        %v2956 = vsel %vm1156, %v2945, 0.0
        %v2957 = vsel %vm1156, %v2947, 0.0
        %v2958 = vsel %vm1156, %v2949, 0.0
        %v2959 = vsel %vm1156, %v2951, 0.0
        %v2960 = vsel %vm1159, %v2933, %v2956
        %v2961 = vsel %vm1159, %v2935, %v2957
        %v2962 = vsel %vm1159, %v2937, %v2958
        %v2963 = vsel %vm1159, %v2939, %v2959
        %2965 = vset.pattern.permute.xlu0 0
        %2966 = vperm.xlu0 %2965, %v2928
        %v2967 = vpop.permute.xlu0 %2966
        %2970 = vset.pattern.permute.xlu0 0
        %2971 = vperm.xlu0 %2970, %v2929
        %v2972 = vpop.permute.xlu0 %2971
        %2975 = vset.pattern.permute.xlu0 0
        %2976 = vperm.xlu0 %2975, %v2930
        %v2977 = vpop.permute.xlu0 %2976
        %2980 = vset.pattern.permute.xlu0 0
        %2981 = vperm.xlu0 %2980, %v2931
        %v2982 = vpop.permute.xlu0 %2981
        %v2985 = vsel %vm1469, %v2924, 0
        %v2988 = vsel %vm1469, %v2925, 0
        %v2991 = vsel %vm1469, %v2926, 0
        %v2994 = vsel %vm1469, %v2927, 0
        %2996 = vmatprep.subr.mxu0 0.0
        %2997 = vmatpush1.msra.mxu0 %v2952
        %2998 = vmatprep.subr.mxu0 0.0
        %2999 = vmatpush1.msra.mxu0 %v2953
        %3000 = vmatprep.subr.mxu0 0.0
        %3001 = vmatpush1.msra.mxu0 %v2954
        %3002 = vmatprep.subr.mxu0 0.0
        %3003 = vmatpush1.msra.mxu0 %v2955
        %3004 = vmatprep.subr.mxu0 0.0
        %3005 = vmatpush1.msra.mxu0 %v2920
        %3006 = vmatprep.subr.mxu0 0.0
        %3007 = vmatpush1.msra.mxu0 %v2921
        %3008 = vmatprep.subr.mxu0 0.0
        %3009 = vmatpush1.msra.mxu0 %v2922
        %3010 = vmatprep.subr.mxu0 0.0
        %3011 = vmatpush1.msra.mxu0 %v2923
        %3012 = vmatprep.subr.mxu0 0.0
        %3013 = vmatpush1.msra.mxu0 %v2960
        %3014 = vmatprep.subr.mxu0 0.0
        %3015 = vmatpush1.msra.mxu0 %v2961
        %3016 = vmatprep.subr.mxu0 0.0
        %3017 = vmatpush1.msra.mxu0 %v2962
        %3018 = vmatprep.subr.mxu0 0.0
        %3019 = vmatpush1.msra.mxu0 %v2963
        %3020 = vmatprep.subr.mxu0 0.0
        %3021 = vmatpush1.msra.mxu0 0.0
        %3022 = vmatprep.subr.mxu0 0.0
        %3023 = vmatpush1.msra.mxu0 0.0
        %3024 = vmatprep.subr.mxu0 0.0
        %3025 = vmatpush1.msra.mxu0 0.0
        %3026 = vmatprep.subr.mxu0 0.0
        %3027 = vmatpush1.msra.mxu0 0.0
        %3028 = vmatprep.subr.mxu0 0.0
        %3029 = vmatpush1.msra.mxu0 0.0
        %3030 = vmatprep.subr.mxu0 0.0
        %3031 = vmatpush1.msra.mxu0 0.0
        %3032 = vmatprep.subr.mxu0 0.0
        %3033 = vmatpush1.msra.mxu0 0.0
        %3034 = vmatprep.subr.mxu0 0.0
        %3035 = vmatpush1.msra.mxu0 0.0
        %3036 = vmatprep.subr.mxu0 0.0
        %3037 = vmatpush1.msra.mxu0 0.0
        %3038 = vmatprep.subr.mxu0 0.0
        %3039 = vmatpush1.msra.mxu0 0.0
        %3040 = vmatprep.subr.mxu0 0.0
        %3041 = vmatpush1.msra.mxu0 0.0
        %3042 = vmatprep.subr.mxu0 0.0
        %3043 = vmatpush1.msra.mxu0 0.0
        %3044 = vmatprep.subr.mxu0 0.0
        %3045 = vmatpush1.msra.mxu0 0.0
        %3046 = vmatprep.subr.mxu0 0.0
        %3047 = vmatpush1.msra.mxu0 0.0
        %3048 = vmatprep.subr.mxu0 0.0
        %3049 = vmatpush1.msra.mxu0 0.0
        %3050 = vmatprep.subr.mxu0 0.0
        %3051 = vmatpush1.msra.mxu0 0.0
        %3052 = vmatprep.subr.mxu0 0.0
        %3053 = vmatpush1.msra.mxu0 0.0
        %3054 = vmatprep.subr.mxu0 0.0
        %3055 = vmatpush1.msra.mxu0 0.0
        %3056 = vmatprep.subr.mxu0 0.0
        %3057 = vmatpush1.msra.mxu0 0.0
        %3058 = vmatprep.subr.mxu0 0.0
        %3059 = vmatpush1.msra.mxu0 0.0
        %3060 = vmatprep.mubr.f32.mxu0 0.0
        %3061 = vmatmul.mubr.f32.gmra.mrb[0].mxu0 %v2985
        %v3062 = vpop.f32.mrb[0].mxu0
        %v3063 = vadd.f32 %v2967, %v3062
        %v3064 = vpop.f32.mrb[0].mxu0
        %3065 = vmatprep.mubr.f32.mxu0 0.0
        %3066 = vmatmul.mubr.f32.gmra.mrb[0].mxu0 %v2988
        %v3067 = vpop.f32.mrb[0].mxu0
        %v3068 = vadd.f32 %v2972, %v3067
        %v3069 = vpop.f32.mrb[0].mxu0
        %3070 = vmatprep.mubr.f32.mxu0 0.0
        %3071 = vmatmul.mubr.f32.gmra.mrb[0].mxu0 %v2991
        %v3072 = vpop.f32.mrb[0].mxu0
        %v3073 = vadd.f32 %v2977, %v3072
        %v3074 = vpop.f32.mrb[0].mxu0
        %3075 = vmatprep.mubr.f32.mxu0 0.0
        %3076 = vmatmul.mubr.f32.gmra.mrb[0].mxu0 %v2994
        %v3077 = vpop.f32.mrb[0].mxu0
        %v3078 = vadd.f32 %v2982, %v3077
        %v3079 = vpop.f32.mrb[0].mxu0
        %3080 = vdwg.mxu0
        %v3081 = vadd.f32 %v3063, %v2745
        %v3082 = vadd.f32 %v3068, %v2750
        %v3083 = vadd.f32 %v3073, %v2755
        %v3084 = vadd.f32 %v3078, %v2760
        %v3085 = vmax.f32 %v3081, 0.0
        %v3086 = vmax.f32 %v3082, 0.0
        %v3087 = vmax.f32 %v3083, 0.0
        %v3088 = vmax.f32 %v3084, 0.0
        %v3089 = vld [vmem:[%s55] sm:$0xff]
        %v3090 = vld [vmem:[%s55 + $0x8] sm:$0xff]
        %v3091 = vld [vmem:[%s55 + $0x10] sm:$0xff]
        %v3092 = vld [vmem:[%s55 + $0x18] sm:$0xff]
        %v3093 = vld [vmem:[%s57] sm:$0xff]
        %v3094 = vld [vmem:[%s57 + $0x8] sm:$0xff]
        %v3095 = vld [vmem:[%s57 + $0x10] sm:$0xff]
        %v3096 = vld [vmem:[%s57 + $0x18] sm:$0xff]
        %3098 = vset.pattern.permute.xlu0 0
        %3099 = vperm.xlu0 %3098, %v3093
        %v3100 = vpop.permute.xlu0 %3099
        %3103 = vset.pattern.permute.xlu0 0
        %3104 = vperm.xlu0 %3103, %v3094
        %v3105 = vpop.permute.xlu0 %3104
        %3108 = vset.pattern.permute.xlu0 0
        %3109 = vperm.xlu0 %3108, %v3095
        %v3110 = vpop.permute.xlu0 %3109
        %3113 = vset.pattern.permute.xlu0 0
        %3114 = vperm.xlu0 %3113, %v3096
        %v3115 = vpop.permute.xlu0 %3114
        %v3118 = vsel %vm1311, %v3089, 0
        %v3121 = vsel %vm1311, %v3090, 0
        %v3124 = vsel %vm1311, %v3091, 0
        %v3127 = vsel %vm1311, %v3092, 0
        %3129 = vmatprep.subr.mxu0 0.0
        %3130 = vmatpush1.msra.mxu0 %v3085
        %3131 = vmatprep.subr.mxu0 0.0
        %3132 = vmatpush1.msra.mxu0 %v3086
        %3133 = vmatprep.subr.mxu0 0.0
        %3134 = vmatpush1.msra.mxu0 %v3087
        %3135 = vmatprep.subr.mxu0 0.0
        %3136 = vmatpush1.msra.mxu0 %v3088
        %3137 = vmatprep.subr.mxu0 0.0
        %3138 = vmatpush1.msra.mxu0 0.0
        %3139 = vmatprep.subr.mxu0 0.0
        %3140 = vmatpush1.msra.mxu0 0.0
        %3141 = vmatprep.subr.mxu0 0.0
        %3142 = vmatpush1.msra.mxu0 0.0
        %3143 = vmatprep.subr.mxu0 0.0
        %3144 = vmatpush1.msra.mxu0 0.0
        %3145 = vmatprep.subr.mxu0 0.0
        %3146 = vmatpush1.msra.mxu0 0.0
        %3147 = vmatprep.subr.mxu0 0.0
        %3148 = vmatpush1.msra.mxu0 0.0
        %3149 = vmatprep.subr.mxu0 0.0
        %3150 = vmatpush1.msra.mxu0 0.0
        %3151 = vmatprep.subr.mxu0 0.0
        %3152 = vmatpush1.msra.mxu0 0.0
        %3153 = vmatprep.subr.mxu0 0.0
        %3154 = vmatpush1.msra.mxu0 0.0
        %3155 = vmatprep.subr.mxu0 0.0
        %3156 = vmatpush1.msra.mxu0 0.0
        %3157 = vmatprep.subr.mxu0 0.0
        %3158 = vmatpush1.msra.mxu0 0.0
        %3159 = vmatprep.subr.mxu0 0.0
        %3160 = vmatpush1.msra.mxu0 0.0
        %3161 = vmatprep.subr.mxu0 0.0
        %3162 = vmatpush1.msra.mxu0 0.0
        %3163 = vmatprep.subr.mxu0 0.0
        %3164 = vmatpush1.msra.mxu0 0.0
        %3165 = vmatprep.subr.mxu0 0.0
        %3166 = vmatpush1.msra.mxu0 0.0
        %3167 = vmatprep.subr.mxu0 0.0
        %3168 = vmatpush1.msra.mxu0 0.0
        %3169 = vmatprep.subr.mxu0 0.0
        %3170 = vmatpush1.msra.mxu0 0.0
        %3171 = vmatprep.subr.mxu0 0.0
        %3172 = vmatpush1.msra.mxu0 0.0
        %3173 = vmatprep.subr.mxu0 0.0
        %3174 = vmatpush1.msra.mxu0 0.0
        %3175 = vmatprep.subr.mxu0 0.0
        %3176 = vmatpush1.msra.mxu0 0.0
        %3177 = vmatprep.subr.mxu0 0.0
        %3178 = vmatpush1.msra.mxu0 0.0
        %3179 = vmatprep.subr.mxu0 0.0
        %3180 = vmatpush1.msra.mxu0 0.0
        %3181 = vmatprep.subr.mxu0 0.0
        %3182 = vmatpush1.msra.mxu0 0.0
        %3183 = vmatprep.subr.mxu0 0.0
        %3184 = vmatpush1.msra.mxu0 0.0
        %3185 = vmatprep.subr.mxu0 0.0
        %3186 = vmatpush1.msra.mxu0 0.0
        %3187 = vmatprep.subr.mxu0 0.0
        %3188 = vmatpush1.msra.mxu0 0.0
        %3189 = vmatprep.subr.mxu0 0.0
        %3190 = vmatpush1.msra.mxu0 0.0
        %3191 = vmatprep.subr.mxu0 0.0
        %3192 = vmatpush1.msra.mxu0 0.0
        %3193 = vmatprep.mubr.f32.mxu0 0.0
        %3194 = vmatmul.mubr.f32.gmra.mrb[0].mxu0 %v3118
        %v3195 = vpop.f32.mrb[0].mxu0
        %v3196 = vadd.f32 %v3100, %v3195
        %v3197 = vpop.f32.mrb[0].mxu0
        %3198 = vmatprep.mubr.f32.mxu0 0.0
        %3199 = vmatmul.mubr.f32.gmra.mrb[0].mxu0 %v3121
        %v3200 = vpop.f32.mrb[0].mxu0
        %v3201 = vadd.f32 %v3105, %v3200
        %v3202 = vpop.f32.mrb[0].mxu0
        %3203 = vmatprep.mubr.f32.mxu0 0.0
        %3204 = vmatmul.mubr.f32.gmra.mrb[0].mxu0 %v3124
        %v3205 = vpop.f32.mrb[0].mxu0
        %v3206 = vadd.f32 %v3110, %v3205
        %v3207 = vpop.f32.mrb[0].mxu0
        %3208 = vmatprep.mubr.f32.mxu0 0.0
        %3209 = vmatmul.mubr.f32.gmra.mrb[0].mxu0 %v3127
        %v3210 = vpop.f32.mrb[0].mxu0
        %v3211 = vadd.f32 %v3115, %v3210
        %v3212 = vpop.f32.mrb[0].mxu0
        %3213 = vdwg.mxu0
        %v3214 = vld [vmem:[%s59] sm:$0xff]
        %v3215 = vld [vmem:[%s59 + $0x8] sm:$0xff]
        %v3216 = vld [vmem:[%s59 + $0x10] sm:$0xff]
        %v3217 = vld [vmem:[%s59 + $0x18] sm:$0xff]
        %v3218 = vld [vmem:[%s61] sm:$0xff]
        %v3219 = vld [vmem:[%s61 + $0x8] sm:$0xff]
        %v3220 = vld [vmem:[%s61 + $0x10] sm:$0xff]
        %v3221 = vld [vmem:[%s61 + $0x18] sm:$0xff]
        %3222 = vrot.lane.b32.xlu0 %v3085, 1
        %v3223 = vpop.permute.xlu0 %3222
        %3224 = vrot.lane.b32.xlu0 %v3086, 1
        %v3225 = vpop.permute.xlu0 %3224
        %3226 = vrot.lane.b32.xlu0 %v3087, 1
        %v3227 = vpop.permute.xlu0 %3226
        %3228 = vrot.lane.b32.xlu0 %v3088, 1
        %v3229 = vpop.permute.xlu0 %3228
        %v3230 = vsel %vm1142, %v3223, 0.0
        %v3231 = vsel %vm1142, %v3225, 0.0
        %v3232 = vsel %vm1142, %v3227, 0.0
        %v3233 = vsel %vm1142, %v3229, 0.0
        %3234 = vrot.lane.b32.xlu0 %v3085, 127
        %v3235 = vpop.permute.xlu0 %3234
        %3236 = vrot.lane.b32.xlu0 %v3086, 127
        %v3237 = vpop.permute.xlu0 %3236
        %3238 = vrot.lane.b32.xlu0 %v3087, 127
        %v3239 = vpop.permute.xlu0 %3238
        %3240 = vrot.lane.b32.xlu0 %v3088, 127
        %v3241 = vpop.permute.xlu0 %3240
        %v3242 = vsel %vm1149, %v3235, %v3230
        %v3243 = vsel %vm1149, %v3237, %v3231
        %v3244 = vsel %vm1149, %v3239, %v3232
        %v3245 = vsel %vm1149, %v3241, %v3233
        %v3246 = vsel %vm1156, %v3235, 0.0
        %v3247 = vsel %vm1156, %v3237, 0.0
        %v3248 = vsel %vm1156, %v3239, 0.0
        %v3249 = vsel %vm1156, %v3241, 0.0
        %v3250 = vsel %vm1159, %v3223, %v3246
        %v3251 = vsel %vm1159, %v3225, %v3247
        %v3252 = vsel %vm1159, %v3227, %v3248
        %v3253 = vsel %vm1159, %v3229, %v3249
        %3255 = vset.pattern.permute.xlu0 0
        %3256 = vperm.xlu0 %3255, %v3218
        %v3257 = vpop.permute.xlu0 %3256
        %3260 = vset.pattern.permute.xlu0 0
        %3261 = vperm.xlu0 %3260, %v3219
        %v3262 = vpop.permute.xlu0 %3261
        %3265 = vset.pattern.permute.xlu0 0
        %3266 = vperm.xlu0 %3265, %v3220
        %v3267 = vpop.permute.xlu0 %3266
        %3270 = vset.pattern.permute.xlu0 0
        %3271 = vperm.xlu0 %3270, %v3221
        %v3272 = vpop.permute.xlu0 %3271
        %v3275 = vsel %vm1469, %v3214, 0
        %v3278 = vsel %vm1469, %v3215, 0
        %v3281 = vsel %vm1469, %v3216, 0
        %v3284 = vsel %vm1469, %v3217, 0
        %3286 = vmatprep.subr.mxu0 0.0
        %3287 = vmatpush1.msra.mxu0 %v3242
        %3288 = vmatprep.subr.mxu0 0.0
        %3289 = vmatpush1.msra.mxu0 %v3243
        %3290 = vmatprep.subr.mxu0 0.0
        %3291 = vmatpush1.msra.mxu0 %v3244
        %3292 = vmatprep.subr.mxu0 0.0
        %3293 = vmatpush1.msra.mxu0 %v3245
        %3294 = vmatprep.subr.mxu0 0.0
        %3295 = vmatpush1.msra.mxu0 %v3085
        %3296 = vmatprep.subr.mxu0 0.0
        %3297 = vmatpush1.msra.mxu0 %v3086
        %3298 = vmatprep.subr.mxu0 0.0
        %3299 = vmatpush1.msra.mxu0 %v3087
        %3300 = vmatprep.subr.mxu0 0.0
        %3301 = vmatpush1.msra.mxu0 %v3088
        %3302 = vmatprep.subr.mxu0 0.0
        %3303 = vmatpush1.msra.mxu0 %v3250
        %3304 = vmatprep.subr.mxu0 0.0
        %3305 = vmatpush1.msra.mxu0 %v3251
        %3306 = vmatprep.subr.mxu0 0.0
        %3307 = vmatpush1.msra.mxu0 %v3252
        %3308 = vmatprep.subr.mxu0 0.0
        %3309 = vmatpush1.msra.mxu0 %v3253
        %3310 = vmatprep.subr.mxu0 0.0
        %3311 = vmatpush1.msra.mxu0 0.0
        %3312 = vmatprep.subr.mxu0 0.0
        %3313 = vmatpush1.msra.mxu0 0.0
        %3314 = vmatprep.subr.mxu0 0.0
        %3315 = vmatpush1.msra.mxu0 0.0
        %3316 = vmatprep.subr.mxu0 0.0
        %3317 = vmatpush1.msra.mxu0 0.0
        %3318 = vmatprep.subr.mxu0 0.0
        %3319 = vmatpush1.msra.mxu0 0.0
        %3320 = vmatprep.subr.mxu0 0.0
        %3321 = vmatpush1.msra.mxu0 0.0
        %3322 = vmatprep.subr.mxu0 0.0
        %3323 = vmatpush1.msra.mxu0 0.0
        %3324 = vmatprep.subr.mxu0 0.0
        %3325 = vmatpush1.msra.mxu0 0.0
        %3326 = vmatprep.subr.mxu0 0.0
        %3327 = vmatpush1.msra.mxu0 0.0
        %3328 = vmatprep.subr.mxu0 0.0
        %3329 = vmatpush1.msra.mxu0 0.0
        %3330 = vmatprep.subr.mxu0 0.0
        %3331 = vmatpush1.msra.mxu0 0.0
        %3332 = vmatprep.subr.mxu0 0.0
        %3333 = vmatpush1.msra.mxu0 0.0
        %3334 = vmatprep.subr.mxu0 0.0
        %3335 = vmatpush1.msra.mxu0 0.0
        %3336 = vmatprep.subr.mxu0 0.0
        %3337 = vmatpush1.msra.mxu0 0.0
        %3338 = vmatprep.subr.mxu0 0.0
        %3339 = vmatpush1.msra.mxu0 0.0
        %3340 = vmatprep.subr.mxu0 0.0
        %3341 = vmatpush1.msra.mxu0 0.0
        %3342 = vmatprep.subr.mxu0 0.0
        %3343 = vmatpush1.msra.mxu0 0.0
        %3344 = vmatprep.subr.mxu0 0.0
        %3345 = vmatpush1.msra.mxu0 0.0
        %3346 = vmatprep.subr.mxu0 0.0
        %3347 = vmatpush1.msra.mxu0 0.0
        %3348 = vmatprep.subr.mxu0 0.0
        %3349 = vmatpush1.msra.mxu0 0.0
        %3350 = vmatprep.mubr.f32.mxu0 0.0
        %3351 = vmatmul.mubr.f32.gmra.mrb[0].mxu0 %v3275
        %v3352 = vpop.f32.mrb[0].mxu0
        %v3353 = vadd.f32 %v3257, %v3352
        %v3354 = vpop.f32.mrb[0].mxu0
        %3355 = vmatprep.mubr.f32.mxu0 0.0
        %3356 = vmatmul.mubr.f32.gmra.mrb[0].mxu0 %v3278
        %v3357 = vpop.f32.mrb[0].mxu0
        %v3358 = vadd.f32 %v3262, %v3357
        %v3359 = vpop.f32.mrb[0].mxu0
        %3360 = vmatprep.mubr.f32.mxu0 0.0
        %3361 = vmatmul.mubr.f32.gmra.mrb[0].mxu0 %v3281
        %v3362 = vpop.f32.mrb[0].mxu0
        %v3363 = vadd.f32 %v3267, %v3362
        %v3364 = vpop.f32.mrb[0].mxu0
        %3365 = vmatprep.mubr.f32.mxu0 0.0
        %3366 = vmatmul.mubr.f32.gmra.mrb[0].mxu0 %v3284
        %v3367 = vpop.f32.mrb[0].mxu0
        %v3368 = vadd.f32 %v3272, %v3367
        %v3369 = vpop.f32.mrb[0].mxu0
        %3370 = vdwg.mxu0
        %v3371 = vmax.f32 %v3353, 0.0
        %v3372 = vmax.f32 %v3358, 0.0
        %v3373 = vmax.f32 %v3363, 0.0
        %v3374 = vmax.f32 %v3368, 0.0
        %v3375 = vld [vmem:[%s63] sm:$0xff]
        %v3376 = vld [vmem:[%s63 + $0x8] sm:$0xff]
        %v3377 = vld [vmem:[%s63 + $0x10] sm:$0xff]
        %v3378 = vld [vmem:[%s63 + $0x18] sm:$0xff]
        %v3379 = vld [vmem:[%s65] sm:$0xff]
        %v3380 = vld [vmem:[%s65 + $0x8] sm:$0xff]
        %v3381 = vld [vmem:[%s65 + $0x10] sm:$0xff]
        %v3382 = vld [vmem:[%s65 + $0x18] sm:$0xff]
        %3383 = vrot.lane.b32.xlu0 %v3371, 1
        %v3384 = vpop.permute.xlu0 %3383
        %3385 = vrot.lane.b32.xlu0 %v3372, 1
        %v3386 = vpop.permute.xlu0 %3385
        %3387 = vrot.lane.b32.xlu0 %v3373, 1
        %v3388 = vpop.permute.xlu0 %3387
        %3389 = vrot.lane.b32.xlu0 %v3374, 1
        %v3390 = vpop.permute.xlu0 %3389
        %v3391 = vsel %vm1142, %v3384, 0.0
        %v3392 = vsel %vm1142, %v3386, 0.0
        %v3393 = vsel %vm1142, %v3388, 0.0
        %v3394 = vsel %vm1142, %v3390, 0.0
        %3395 = vrot.lane.b32.xlu0 %v3371, 127
        %v3396 = vpop.permute.xlu0 %3395
        %3397 = vrot.lane.b32.xlu0 %v3372, 127
        %v3398 = vpop.permute.xlu0 %3397
        %3399 = vrot.lane.b32.xlu0 %v3373, 127
        %v3400 = vpop.permute.xlu0 %3399
        %3401 = vrot.lane.b32.xlu0 %v3374, 127
        %v3402 = vpop.permute.xlu0 %3401
        %v3403 = vsel %vm1149, %v3396, %v3391
        %v3404 = vsel %vm1149, %v3398, %v3392
        %v3405 = vsel %vm1149, %v3400, %v3393
        %v3406 = vsel %vm1149, %v3402, %v3394
        %v3407 = vsel %vm1156, %v3396, 0.0
        %v3408 = vsel %vm1156, %v3398, 0.0
        %v3409 = vsel %vm1156, %v3400, 0.0
        %v3410 = vsel %vm1156, %v3402, 0.0
        %v3411 = vsel %vm1159, %v3384, %v3407
        %v3412 = vsel %vm1159, %v3386, %v3408
        %v3413 = vsel %vm1159, %v3388, %v3409
        %v3414 = vsel %vm1159, %v3390, %v3410
        %3416 = vset.pattern.permute.xlu0 0
        %3417 = vperm.xlu0 %3416, %v3379
        %v3418 = vpop.permute.xlu0 %3417
        %3421 = vset.pattern.permute.xlu0 0
        %3422 = vperm.xlu0 %3421, %v3380
        %v3423 = vpop.permute.xlu0 %3422
        %3426 = vset.pattern.permute.xlu0 0
        %3427 = vperm.xlu0 %3426, %v3381
        %v3428 = vpop.permute.xlu0 %3427
        %3431 = vset.pattern.permute.xlu0 0
        %3432 = vperm.xlu0 %3431, %v3382
        %v3433 = vpop.permute.xlu0 %3432
        %v3436 = vsel %vm1469, %v3375, 0
        %v3439 = vsel %vm1469, %v3376, 0
        %v3442 = vsel %vm1469, %v3377, 0
        %v3445 = vsel %vm1469, %v3378, 0
        %3447 = vmatprep.subr.mxu0 0.0
        %3448 = vmatpush1.msra.mxu0 %v3403
        %3449 = vmatprep.subr.mxu0 0.0
        %3450 = vmatpush1.msra.mxu0 %v3404
        %3451 = vmatprep.subr.mxu0 0.0
        %3452 = vmatpush1.msra.mxu0 %v3405
        %3453 = vmatprep.subr.mxu0 0.0
        %3454 = vmatpush1.msra.mxu0 %v3406
        %3455 = vmatprep.subr.mxu0 0.0
        %3456 = vmatpush1.msra.mxu0 %v3371
        %3457 = vmatprep.subr.mxu0 0.0
        %3458 = vmatpush1.msra.mxu0 %v3372
        %3459 = vmatprep.subr.mxu0 0.0
        %3460 = vmatpush1.msra.mxu0 %v3373
        %3461 = vmatprep.subr.mxu0 0.0
        %3462 = vmatpush1.msra.mxu0 %v3374
        %3463 = vmatprep.subr.mxu0 0.0
        %3464 = vmatpush1.msra.mxu0 %v3411
        %3465 = vmatprep.subr.mxu0 0.0
        %3466 = vmatpush1.msra.mxu0 %v3412
        %3467 = vmatprep.subr.mxu0 0.0
        %3468 = vmatpush1.msra.mxu0 %v3413
        %3469 = vmatprep.subr.mxu0 0.0
        %3470 = vmatpush1.msra.mxu0 %v3414
        %3471 = vmatprep.subr.mxu0 0.0
        %3472 = vmatpush1.msra.mxu0 0.0
        %3473 = vmatprep.subr.mxu0 0.0
        %3474 = vmatpush1.msra.mxu0 0.0
        %3475 = vmatprep.subr.mxu0 0.0
        %3476 = vmatpush1.msra.mxu0 0.0
        %3477 = vmatprep.subr.mxu0 0.0
        %3478 = vmatpush1.msra.mxu0 0.0
        %3479 = vmatprep.subr.mxu0 0.0
        %3480 = vmatpush1.msra.mxu0 0.0
        %3481 = vmatprep.subr.mxu0 0.0
        %3482 = vmatpush1.msra.mxu0 0.0
        %3483 = vmatprep.subr.mxu0 0.0
        %3484 = vmatpush1.msra.mxu0 0.0
        %3485 = vmatprep.subr.mxu0 0.0
        %3486 = vmatpush1.msra.mxu0 0.0
        %3487 = vmatprep.subr.mxu0 0.0
        %3488 = vmatpush1.msra.mxu0 0.0
        %3489 = vmatprep.subr.mxu0 0.0
        %3490 = vmatpush1.msra.mxu0 0.0
        %3491 = vmatprep.subr.mxu0 0.0
        %3492 = vmatpush1.msra.mxu0 0.0
        %3493 = vmatprep.subr.mxu0 0.0
        %3494 = vmatpush1.msra.mxu0 0.0
        %3495 = vmatprep.subr.mxu0 0.0
        %3496 = vmatpush1.msra.mxu0 0.0
        %3497 = vmatprep.subr.mxu0 0.0
        %3498 = vmatpush1.msra.mxu0 0.0
        %3499 = vmatprep.subr.mxu0 0.0
        %3500 = vmatpush1.msra.mxu0 0.0
        %3501 = vmatprep.subr.mxu0 0.0
        %3502 = vmatpush1.msra.mxu0 0.0
        %3503 = vmatprep.subr.mxu0 0.0
        %3504 = vmatpush1.msra.mxu0 0.0
        %3505 = vmatprep.subr.mxu0 0.0
        %3506 = vmatpush1.msra.mxu0 0.0
        %3507 = vmatprep.subr.mxu0 0.0
        %3508 = vmatpush1.msra.mxu0 0.0
        %3509 = vmatprep.subr.mxu0 0.0
        %3510 = vmatpush1.msra.mxu0 0.0
        %3511 = vmatprep.mubr.f32.mxu0 0.0
        %3512 = vmatmul.mubr.f32.gmra.mrb[0].mxu0 %v3436
        %v3513 = vpop.f32.mrb[0].mxu0
        %v3514 = vadd.f32 %v3418, %v3513
        %v3515 = vpop.f32.mrb[0].mxu0
        %3516 = vmatprep.mubr.f32.mxu0 0.0
        %3517 = vmatmul.mubr.f32.gmra.mrb[0].mxu0 %v3439
        %v3518 = vpop.f32.mrb[0].mxu0
        %v3519 = vadd.f32 %v3423, %v3518
        %v3520 = vpop.f32.mrb[0].mxu0
        %3521 = vmatprep.mubr.f32.mxu0 0.0
        %3522 = vmatmul.mubr.f32.gmra.mrb[0].mxu0 %v3442
        %v3523 = vpop.f32.mrb[0].mxu0
        %v3524 = vadd.f32 %v3428, %v3523
        %v3525 = vpop.f32.mrb[0].mxu0
        %3526 = vmatprep.mubr.f32.mxu0 0.0
        %3527 = vmatmul.mubr.f32.gmra.mrb[0].mxu0 %v3445
        %v3528 = vpop.f32.mrb[0].mxu0
        %v3529 = vadd.f32 %v3433, %v3528
        %v3530 = vpop.f32.mrb[0].mxu0
        %3531 = vdwg.mxu0
        %v3532 = vadd.f32 %v3514, %v3196
        %v3533 = vadd.f32 %v3519, %v3201
        %v3534 = vadd.f32 %v3524, %v3206
        %v3535 = vadd.f32 %v3529, %v3211
        %v3536 = vmax.f32 %v3532, 0.0
        %v3537 = vmax.f32 %v3533, 0.0
        %v3538 = vmax.f32 %v3534, 0.0
        %v3539 = vmax.f32 %v3535, 0.0
        %v3540 = vld [vmem:[%s67] sm:$0xff]
        %v3541 = vld [vmem:[%s67 + $0x8] sm:$0xff]
        %v3542 = vld [vmem:[%s67 + $0x10] sm:$0xff]
        %v3543 = vld [vmem:[%s67 + $0x18] sm:$0xff]
        %v3544 = vld [vmem:[%s69] sm:$0xff]
        %v3545 = vld [vmem:[%s69 + $0x8] sm:$0xff]
        %v3546 = vld [vmem:[%s69 + $0x10] sm:$0xff]
        %v3547 = vld [vmem:[%s69 + $0x18] sm:$0xff]
        %3548 = vrot.lane.b32.xlu0 %v3536, 1
        %v3549 = vpop.permute.xlu0 %3548
        %3550 = vrot.lane.b32.xlu0 %v3537, 1
        %v3551 = vpop.permute.xlu0 %3550
        %3552 = vrot.lane.b32.xlu0 %v3538, 1
        %v3553 = vpop.permute.xlu0 %3552
        %3554 = vrot.lane.b32.xlu0 %v3539, 1
        %v3555 = vpop.permute.xlu0 %3554
        %v3556 = vsel %vm1142, %v3549, 0.0
        %v3557 = vsel %vm1142, %v3551, 0.0
        %v3558 = vsel %vm1142, %v3553, 0.0
        %v3559 = vsel %vm1142, %v3555, 0.0
        %3560 = vrot.lane.b32.xlu0 %v3536, 127
        %v3561 = vpop.permute.xlu0 %3560
        %3562 = vrot.lane.b32.xlu0 %v3537, 127
        %v3563 = vpop.permute.xlu0 %3562
        %3564 = vrot.lane.b32.xlu0 %v3538, 127
        %v3565 = vpop.permute.xlu0 %3564
        %3566 = vrot.lane.b32.xlu0 %v3539, 127
        %v3567 = vpop.permute.xlu0 %3566
        %v3568 = vsel %vm1149, %v3561, %v3556
        %v3569 = vsel %vm1149, %v3563, %v3557
        %v3570 = vsel %vm1149, %v3565, %v3558
        %v3571 = vsel %vm1149, %v3567, %v3559
        %v3572 = vsel %vm1156, %v3561, 0.0
        %v3573 = vsel %vm1156, %v3563, 0.0
        %v3574 = vsel %vm1156, %v3565, 0.0
        %v3575 = vsel %vm1156, %v3567, 0.0
        %v3576 = vsel %vm1159, %v3549, %v3572
        %v3577 = vsel %vm1159, %v3551, %v3573
        %v3578 = vsel %vm1159, %v3553, %v3574
        %v3579 = vsel %vm1159, %v3555, %v3575
        %3581 = vset.pattern.permute.xlu0 0
        %3582 = vperm.xlu0 %3581, %v3544
        %v3583 = vpop.permute.xlu0 %3582
        %3586 = vset.pattern.permute.xlu0 0
        %3587 = vperm.xlu0 %3586, %v3545
        %v3588 = vpop.permute.xlu0 %3587
        %3591 = vset.pattern.permute.xlu0 0
        %3592 = vperm.xlu0 %3591, %v3546
        %v3593 = vpop.permute.xlu0 %3592
        %3596 = vset.pattern.permute.xlu0 0
        %3597 = vperm.xlu0 %3596, %v3547
        %v3598 = vpop.permute.xlu0 %3597
        %v3601 = vsel %vm1469, %v3540, 0
        %v3604 = vsel %vm1469, %v3541, 0
        %v3607 = vsel %vm1469, %v3542, 0
        %v3610 = vsel %vm1469, %v3543, 0
        %3612 = vmatprep.subr.mxu0 0.0
        %3613 = vmatpush1.msra.mxu0 %v3568
        %3614 = vmatprep.subr.mxu0 0.0
        %3615 = vmatpush1.msra.mxu0 %v3569
        %3616 = vmatprep.subr.mxu0 0.0
        %3617 = vmatpush1.msra.mxu0 %v3570
        %3618 = vmatprep.subr.mxu0 0.0
        %3619 = vmatpush1.msra.mxu0 %v3571
        %3620 = vmatprep.subr.mxu0 0.0
        %3621 = vmatpush1.msra.mxu0 %v3536
        %3622 = vmatprep.subr.mxu0 0.0
        %3623 = vmatpush1.msra.mxu0 %v3537
        %3624 = vmatprep.subr.mxu0 0.0
        %3625 = vmatpush1.msra.mxu0 %v3538
        %3626 = vmatprep.subr.mxu0 0.0
        %3627 = vmatpush1.msra.mxu0 %v3539
        %3628 = vmatprep.subr.mxu0 0.0
        %3629 = vmatpush1.msra.mxu0 %v3576
        %3630 = vmatprep.subr.mxu0 0.0
        %3631 = vmatpush1.msra.mxu0 %v3577
        %3632 = vmatprep.subr.mxu0 0.0
        %3633 = vmatpush1.msra.mxu0 %v3578
        %3634 = vmatprep.subr.mxu0 0.0
        %3635 = vmatpush1.msra.mxu0 %v3579
        %3636 = vmatprep.subr.mxu0 0.0
        %3637 = vmatpush1.msra.mxu0 0.0
        %3638 = vmatprep.subr.mxu0 0.0
        %3639 = vmatpush1.msra.mxu0 0.0
        %3640 = vmatprep.subr.mxu0 0.0
        %3641 = vmatpush1.msra.mxu0 0.0
        %3642 = vmatprep.subr.mxu0 0.0
        %3643 = vmatpush1.msra.mxu0 0.0
        %3644 = vmatprep.subr.mxu0 0.0
        %3645 = vmatpush1.msra.mxu0 0.0
        %3646 = vmatprep.subr.mxu0 0.0
        %3647 = vmatpush1.msra.mxu0 0.0
        %3648 = vmatprep.subr.mxu0 0.0
        %3649 = vmatpush1.msra.mxu0 0.0
        %3650 = vmatprep.subr.mxu0 0.0
        %3651 = vmatpush1.msra.mxu0 0.0
        %3652 = vmatprep.subr.mxu0 0.0
        %3653 = vmatpush1.msra.mxu0 0.0
        %3654 = vmatprep.subr.mxu0 0.0
        %3655 = vmatpush1.msra.mxu0 0.0
        %3656 = vmatprep.subr.mxu0 0.0
        %3657 = vmatpush1.msra.mxu0 0.0
        %3658 = vmatprep.subr.mxu0 0.0
        %3659 = vmatpush1.msra.mxu0 0.0
        %3660 = vmatprep.subr.mxu0 0.0
        %3661 = vmatpush1.msra.mxu0 0.0
        %3662 = vmatprep.subr.mxu0 0.0
        %3663 = vmatpush1.msra.mxu0 0.0
        %3664 = vmatprep.subr.mxu0 0.0
        %3665 = vmatpush1.msra.mxu0 0.0
        %3666 = vmatprep.subr.mxu0 0.0
        %3667 = vmatpush1.msra.mxu0 0.0
        %3668 = vmatprep.subr.mxu0 0.0
        %3669 = vmatpush1.msra.mxu0 0.0
        %3670 = vmatprep.subr.mxu0 0.0
        %3671 = vmatpush1.msra.mxu0 0.0
        %3672 = vmatprep.subr.mxu0 0.0
        %3673 = vmatpush1.msra.mxu0 0.0
        %3674 = vmatprep.subr.mxu0 0.0
        %3675 = vmatpush1.msra.mxu0 0.0
        %3676 = vmatprep.mubr.f32.mxu0 0.0
        %3677 = vmatmul.mubr.f32.gmra.mrb[0].mxu0 %v3601
        %v3678 = vpop.f32.mrb[0].mxu0
        %v3679 = vadd.f32 %v3583, %v3678
        %v3680 = vpop.f32.mrb[0].mxu0
        %3681 = vmatprep.mubr.f32.mxu0 0.0
        %3682 = vmatmul.mubr.f32.gmra.mrb[0].mxu0 %v3604
        %v3683 = vpop.f32.mrb[0].mxu0
        %v3684 = vadd.f32 %v3588, %v3683
        %v3685 = vpop.f32.mrb[0].mxu0
        %3686 = vmatprep.mubr.f32.mxu0 0.0
        %3687 = vmatmul.mubr.f32.gmra.mrb[0].mxu0 %v3607
        %v3688 = vpop.f32.mrb[0].mxu0
        %v3689 = vadd.f32 %v3593, %v3688
        %v3690 = vpop.f32.mrb[0].mxu0
        %3691 = vmatprep.mubr.f32.mxu0 0.0
        %3692 = vmatmul.mubr.f32.gmra.mrb[0].mxu0 %v3610
        %v3693 = vpop.f32.mrb[0].mxu0
        %v3694 = vadd.f32 %v3598, %v3693
        %v3695 = vpop.f32.mrb[0].mxu0
        %3696 = vdwg.mxu0
        %v3697 = vmax.f32 %v3679, 0.0
        %v3698 = vmax.f32 %v3684, 0.0
        %v3699 = vmax.f32 %v3689, 0.0
        %v3700 = vmax.f32 %v3694, 0.0
        %v3701 = vld [vmem:[%s71] sm:$0xff]
        %v3702 = vld [vmem:[%s71 + $0x8] sm:$0xff]
        %v3703 = vld [vmem:[%s71 + $0x10] sm:$0xff]
        %v3704 = vld [vmem:[%s71 + $0x18] sm:$0xff]
        %v3705 = vld [vmem:[%s73] sm:$0xff]
        %v3706 = vld [vmem:[%s73 + $0x8] sm:$0xff]
        %v3707 = vld [vmem:[%s73 + $0x10] sm:$0xff]
        %v3708 = vld [vmem:[%s73 + $0x18] sm:$0xff]
        %3710 = vset.pattern.permute.xlu0 0
        %3711 = vperm.xlu0 %3710, %v3705
        %v3712 = vpop.permute.xlu0 %3711
        %3715 = vset.pattern.permute.xlu0 0
        %3716 = vperm.xlu0 %3715, %v3706
        %v3717 = vpop.permute.xlu0 %3716
        %3720 = vset.pattern.permute.xlu0 0
        %3721 = vperm.xlu0 %3720, %v3707
        %v3722 = vpop.permute.xlu0 %3721
        %3725 = vset.pattern.permute.xlu0 0
        %3726 = vperm.xlu0 %3725, %v3708
        %v3727 = vpop.permute.xlu0 %3726
        %v3730 = vsel %vm1311, %v3701, 0
        %v3733 = vsel %vm1311, %v3702, 0
        %v3736 = vsel %vm1311, %v3703, 0
        %v3739 = vsel %vm1311, %v3704, 0
        %3741 = vmatprep.subr.mxu0 0.0
        %3742 = vmatpush1.msra.mxu0 %v3697
        %3743 = vmatprep.subr.mxu0 0.0
        %3744 = vmatpush1.msra.mxu0 %v3698
        %3745 = vmatprep.subr.mxu0 0.0
        %3746 = vmatpush1.msra.mxu0 %v3699
        %3747 = vmatprep.subr.mxu0 0.0
        %3748 = vmatpush1.msra.mxu0 %v3700
        %3749 = vmatprep.subr.mxu0 0.0
        %3750 = vmatpush1.msra.mxu0 0.0
        %3751 = vmatprep.subr.mxu0 0.0
        %3752 = vmatpush1.msra.mxu0 0.0
        %3753 = vmatprep.subr.mxu0 0.0
        %3754 = vmatpush1.msra.mxu0 0.0
        %3755 = vmatprep.subr.mxu0 0.0
        %3756 = vmatpush1.msra.mxu0 0.0
        %3757 = vmatprep.subr.mxu0 0.0
        %3758 = vmatpush1.msra.mxu0 0.0
        %3759 = vmatprep.subr.mxu0 0.0
        %3760 = vmatpush1.msra.mxu0 0.0
        %3761 = vmatprep.subr.mxu0 0.0
        %3762 = vmatpush1.msra.mxu0 0.0
        %3763 = vmatprep.subr.mxu0 0.0
        %3764 = vmatpush1.msra.mxu0 0.0
        %3765 = vmatprep.subr.mxu0 0.0
        %3766 = vmatpush1.msra.mxu0 0.0
        %3767 = vmatprep.subr.mxu0 0.0
        %3768 = vmatpush1.msra.mxu0 0.0
        %3769 = vmatprep.subr.mxu0 0.0
        %3770 = vmatpush1.msra.mxu0 0.0
        %3771 = vmatprep.subr.mxu0 0.0
        %3772 = vmatpush1.msra.mxu0 0.0
        %3773 = vmatprep.subr.mxu0 0.0
        %3774 = vmatpush1.msra.mxu0 0.0
        %3775 = vmatprep.subr.mxu0 0.0
        %3776 = vmatpush1.msra.mxu0 0.0
        %3777 = vmatprep.subr.mxu0 0.0
        %3778 = vmatpush1.msra.mxu0 0.0
        %3779 = vmatprep.subr.mxu0 0.0
        %3780 = vmatpush1.msra.mxu0 0.0
        %3781 = vmatprep.subr.mxu0 0.0
        %3782 = vmatpush1.msra.mxu0 0.0
        %3783 = vmatprep.subr.mxu0 0.0
        %3784 = vmatpush1.msra.mxu0 0.0
        %3785 = vmatprep.subr.mxu0 0.0
        %3786 = vmatpush1.msra.mxu0 0.0
        %3787 = vmatprep.subr.mxu0 0.0
        %3788 = vmatpush1.msra.mxu0 0.0
        %3789 = vmatprep.subr.mxu0 0.0
        %3790 = vmatpush1.msra.mxu0 0.0
        %3791 = vmatprep.subr.mxu0 0.0
        %3792 = vmatpush1.msra.mxu0 0.0
        %3793 = vmatprep.subr.mxu0 0.0
        %3794 = vmatpush1.msra.mxu0 0.0
        %3795 = vmatprep.subr.mxu0 0.0
        %3796 = vmatpush1.msra.mxu0 0.0
        %3797 = vmatprep.subr.mxu0 0.0
        %3798 = vmatpush1.msra.mxu0 0.0
        %3799 = vmatprep.subr.mxu0 0.0
        %3800 = vmatpush1.msra.mxu0 0.0
        %3801 = vmatprep.subr.mxu0 0.0
        %3802 = vmatpush1.msra.mxu0 0.0
        %3803 = vmatprep.subr.mxu0 0.0
        %3804 = vmatpush1.msra.mxu0 0.0
        %3805 = vmatprep.mubr.f32.mxu0 0.0
        %3806 = vmatmul.mubr.f32.gmra.mrb[0].mxu0 %v3730
        %v3807 = vpop.f32.mrb[0].mxu0
        %v3808 = vadd.f32 %v3712, %v3807
        %v3809 = vpop.f32.mrb[0].mxu0
        %3810 = vmatprep.mubr.f32.mxu0 0.0
        %3811 = vmatmul.mubr.f32.gmra.mrb[0].mxu0 %v3733
        %v3812 = vpop.f32.mrb[0].mxu0
        %v3813 = vadd.f32 %v3717, %v3812
        %v3814 = vpop.f32.mrb[0].mxu0
        %3815 = vmatprep.mubr.f32.mxu0 0.0
        %3816 = vmatmul.mubr.f32.gmra.mrb[0].mxu0 %v3736
        %v3817 = vpop.f32.mrb[0].mxu0
        %v3818 = vadd.f32 %v3722, %v3817
        %v3819 = vpop.f32.mrb[0].mxu0
        %3820 = vmatprep.mubr.f32.mxu0 0.0
        %3821 = vmatmul.mubr.f32.gmra.mrb[0].mxu0 %v3739
        %v3822 = vpop.f32.mrb[0].mxu0
        %v3823 = vadd.f32 %v3727, %v3822
        %v3824 = vpop.f32.mrb[0].mxu0
        %3825 = vdwg.mxu0
        %v3826 = vmax.f32 %v3808, 0.0
        %v3827 = vmax.f32 %v3813, 0.0
        %v3828 = vmax.f32 %v3818, 0.0
        %v3829 = vmax.f32 %v3823, 0.0
        %3830 = vst [vmem:[%s1117] sm:$0xff] %v3826
        %3831 = vst [vmem:[%s1117 + $0x8] sm:$0xff] %v3827
        %3832 = vst [vmem:[%s1117 + $0x10] sm:$0xff] %v3828
        %3833 = vst [vmem:[%s1117 + $0x18] sm:$0xff] %v3829
        %s3834 = sand.u32 %s879, 1
        %s3835 = scalar_lea.sflag [#allocation3], %s3834
        %s3836 = sand.u32 %s879, 1
        %s3837 = smul.addr %s3836, 32
        %s3838 = scalar_lea.vmem [#allocation2], %s3837
        // Predicated region
        $region169: #{tpu_custom_call.1} parent=167 // pred_check
          %p3839 = pneg %p889
        $region170: #{tpu_custom_call.1} parent=167 // pred_check_branch
          %3841 = sbr.rel (%p3839) target = $region172
        $region171: #{tpu_custom_call.1} parent=167 // pred_region
          %s3843 = ssub.s32 512, 512
          %3844 = vsyncadd %s3835, %s3843
          %s3845 = smul.addr %s89, 4
          %s3846 = smul.addr %s3845, 128
          %s3847 = scalar_lea.hbm %s75, %s3846
          %s3848 = sshll.u32 %s3838, 4
          %s3849 = int_to_ptr.vmem [resolvable:$true] %s3848
          %3854 = dma.vmem_to_hbm [thread:$0]  %s3849, 512, %s3847, %s3835, 128, 128, 8
        $region172: #{tpu_custom_call.1} parent=167 // pred_fallthru
          _
      $region168: #{tpu_custom_call.1} parent=5 // pred_fallthru
        _
      %p3855 = scmp.le.s32.totalorder 2, %s84
      // Predicated region
      $region173: #{tpu_custom_call.1} parent=5 // pred_check
        %p3856 = pneg %p3855
      $region174: #{tpu_custom_call.1} parent=5 // pred_check_branch
        %3858 = sbr.rel (%p3856) target = $region176
      $region175: #{tpu_custom_call.1} parent=5 // pred_region
        %s3859 = ssub.s32 %s84, 2
        // Predicated region
        $region177: #{tpu_custom_call.1} parent=175 // pred_check
          %p3860 = pneg %p895
        $region178: #{tpu_custom_call.1} parent=175 // pred_check_branch
          %3862 = sbr.rel (%p3860) target = $region180
        $region179: #{tpu_custom_call.1} parent=175 // pred_region
          %s3863 = sand.u32 %s880, 1
          %s3864 = scalar_lea.sflag [#allocation3], %s3863
          %s3865 = sand.u32 %s880, 1
          %s3866 = smul.addr %s3865, 32
          %s3867 = scalar_lea.vmem [#allocation2], %s3866
          %3868 = dma.done %s3864, 512
        $region180: #{tpu_custom_call.1} parent=175 // pred_fallthru
          _
      $region176: #{tpu_custom_call.1} parent=5 // pred_fallthru
        _
    $region6: #{tpu_custom_call.1} parent=1 // loop_footer
      %s88 = sadd.s32 1, %s84
    $region7: #{tpu_custom_call.1} parent=1 // loop_footer_branch
      %83 = sbr.rel target = $region3
    $region8: #{tpu_custom_call.1} parent=1 // loop_exit
      _
    %3869 = vsyncpa [#allocation3], 1
    %s3870 = scalar_lea.sflag [#allocation3], 1
    %3871 = vsyncpa %s3870, 1

</llo_original>
